<compile_context>
chip_gen: v7x
topology: tpu7x:2x2x1
jax: 0.10.0
libtpu: 0.0.40
codegen_flags: <defaults>
</compile_context>

<pallas_src>
import functools

import jax
import jax.numpy as jnp
from jax.experimental import pallas as pl
from jax.experimental.pallas import tpu as pltpu

SIGNAL_LENGTH = 44100
H1, H2, OUT = 512, 256, 1

TK_DEFAULT = 2048      # K tile of the first (huge) Linear layer
NSPLIT_DEFAULT = 2     # leading "parallel" axis (2 TensorCores on v7x)


def _w1_partial_kernel(x_ref, w1_ref, part_ref, acc_ref):
    """Partial (B, 512) = x[:, K_chunk] @ W1[K_chunk, :] for one split.

    Grid: (split s [parallel], k-tile [arbitrary]).  Each split owns a
    contiguous 1/NSPLIT chunk of K; on v7x the parallel axis is sharded
    across the two TensorCores so each core streams half of W1 from HBM.
    """
    k = pl.program_id(1)

    @pl.when(k == 0)
    def _():
        acc_ref[...] = jnp.zeros_like(acc_ref)

    # Hot path: (B, tk) @ (tk, 512) accumulation on the MXU.
    acc_ref[...] += jnp.dot(x_ref[...], w1_ref[...],
                            preferred_element_type=jnp.float32)

    @pl.when(k == pl.num_programs(1) - 1)
    def _():
        part_ref[...] = acc_ref[...][None, :, :]        # (1, B, 512)


def _head_kernel(part_ref, b1_ref, w2_ref, b2_ref, w3_ref, b3_ref, o_ref):
    """Combine split partials and run the small tail of the MLP (one grid pt)."""
    h1 = jnp.sum(part_ref[...], axis=0) + b1_ref[...]            # (B, 512)
    h1 = jnp.where(h1 > 0, h1, 0.2 * h1)                         # LeakyReLU(0.2)
    h2 = jnp.dot(h1, w2_ref[...],
                 preferred_element_type=jnp.float32) + b2_ref[...]
    h2 = jnp.where(h2 > 0, h2, 0.2 * h2)                         # LeakyReLU(0.2)
    h3 = jnp.dot(h2, w3_ref[...],
                 preferred_element_type=jnp.float32) + b3_ref[...]
    o_ref[...] = jax.nn.sigmoid(h3)                              # (B, 1)


def pad_w1(w1, *, tk=TK_DEFAULT, nsplit=NSPLIT_DEFAULT):
    """One-time parameter prep: zero-pad W1's K dim to a multiple of nsplit*tk.

    Call this ONCE (at init / checkpoint-load time), never per forward call.
    """
    K = w1.shape[0]
    k_pad = (-K) % (nsplit * tk)
    if k_pad:
        w1 = jnp.pad(w1, ((0, k_pad), (0, 0)))
    return w1


@functools.partial(jax.jit, static_argnames=("tk", "nsplit"))
def discriminator_forward(x, w1_padded, b1, w2, b2, w3, b3, *,
                          tk=TK_DEFAULT, nsplit=NSPLIT_DEFAULT):
    """x: (B, SIGNAL_LENGTH) f32 -> (B, 1) f32 in [0, 1].

    `w1_padded` must come from `pad_w1` (K padded to a multiple of nsplit*tk).
    """
    B, K = x.shape
    Kp = w1_padded.shape[0]
    assert Kp % (nsplit * tk) == 0 and Kp >= K
    ksteps = Kp // (nsplit * tk)

    # Per-call padding touches only x (cheap); W1 is already padded.
    if Kp != K:
        x = jnp.pad(x, ((0, 0), (0, Kp - K)))

    # Stage 1: stream W1 from HBM, accumulate per-split partial activations.
    partials = pl.pallas_call(
        _w1_partial_kernel,
        out_shape=jax.ShapeDtypeStruct((nsplit, B, H1), jnp.float32),
        grid_spec=pltpu.PrefetchScalarGridSpec(
            num_scalar_prefetch=0,
            grid=(nsplit, ksteps),
            in_specs=[
                pl.BlockSpec((B, tk), lambda s, k: (0, s * ksteps + k)),   # x
                pl.BlockSpec((tk, H1), lambda s, k: (s * ksteps + k, 0)),  # W1
            ],
            out_specs=pl.BlockSpec((1, B, H1), lambda s, k: (s, 0, 0)),
            scratch_shapes=[pltpu.VMEM((B, H1), jnp.float32)],
        ),
        compiler_params=pltpu.CompilerParams(
            dimension_semantics=("parallel", "arbitrary"),
            vmem_limit_bytes=32 * 1024 * 1024),
    )(x, w1_padded)

    # Stage 2: tiny fused epilogue (combine partials + layers 2/3 + sigmoid).
    # All operands fit in VMEM as whole arrays (default BlockSpecs, no grid).
    out = pl.pallas_call(
        _head_kernel,
        out_shape=jax.ShapeDtypeStruct((B, OUT), jnp.float32),
    )(partials, b1, w2, b2, w3, b3)
    return out


def init_params(key):
    """Deterministic init mimicking nn.Linear's U(-1/sqrt(fan_in), 1/sqrt(fan_in))."""
    def linear(key, fan_in, fan_out):
        kw, kb = jax.random.split(key)
        bound = 1.0 / jnp.sqrt(fan_in)
        w = jax.random.uniform(kw, (fan_in, fan_out), jnp.float32, -bound, bound)
        b = jax.random.uniform(kb, (1, fan_out), jnp.float32, -bound, bound)
        return w, b

    k1, k2, k3 = jax.random.split(key, 3)
    w1, b1 = linear(k1, SIGNAL_LENGTH, H1)
    w2, b2 = linear(k2, H1, H2)
    w3, b3 = linear(k3, H2, OUT)
    return w1, b1, w2, b2, w3, b3


def reference_forward(x, w1, b1, w2, b2, w3, b3):
    h = x @ w1 + b1
    h = jnp.where(h > 0, h, 0.2 * h)
    h = h @ w2 + b2
    h = jnp.where(h > 0, h, 0.2 * h)
    h = h @ w3 + b3
    return jax.nn.sigmoid(h)


if __name__ == "__main__":
    key = jax.random.PRNGKey(0)
    k_params, k_x = jax.random.split(key)

    w1, b1, w2, b2, w3, b3 = init_params(k_params)
    w1p = pad_w1(w1)          # one-time prep, hoisted out of the call path

    batch = 2
    x = jax.random.normal(k_x, (batch, SIGNAL_LENGTH), jnp.float32)

    out = discriminator_forward(x, w1p, b1, w2, b2, w3, b3)
    out = jax.block_until_ready(out)

    ref = reference_forward(x, w1, b1, w2, b2, w3, b3)
    assert out.shape == (batch, 1), out.shape
    assert jnp.allclose(out, ref, atol=1e-4, rtol=1e-4), (out, ref)

    print("KERNEL_OK")
</pallas_src>

<mosaic_0001>
module attributes {stable_mosaic.version = 11 : i64} {
  func.func @_w1_partial_kernel(%arg0: i32, %arg1: i32, %arg2: memref<2x2048xf32, #tpu.memory_space<vmem>>, %arg3: memref<2048x512xf32, #tpu.memory_space<vmem>>, %arg4: memref<1x2x512xf32, #tpu.memory_space<vmem>>, %arg5: memref<2x512xf32, #tpu.memory_space<vmem>>) attributes {dimension_semantics = [#tpu.dimension_semantics<parallel>, #tpu.dimension_semantics<arbitrary>], iteration_bounds = array<i64: 2, 11>, scalar_prefetch = 0 : i64, scratch_operands = 1 : i64, tpu.core_type = #tpu.core_type<tc>, window_params = [{transform_indices = @transform_0, window_bounds = array<i64: 2, 2048>}, {transform_indices = @transform_1, window_bounds = array<i64: 2048, 512>}, {transform_indices = @transform_2, window_bounds = array<i64: 1, 2, 512>}]} {
    %c0_i32 = arith.constant 0 : i32
    %0 = arith.cmpi eq, %arg1, %c0_i32 : i32
    %1 = arith.extui %0 : i1 to i32
    %c0_i32_0 = arith.constant 0 : i32
    %2 = arith.cmpi ne, %1, %c0_i32_0 : i32
    scf.if %2 {
      %cst_9 = arith.constant 0.000000e+00 : f32
      %12 = vector.broadcast %cst_9 : f32 to vector<2x512xf32>
      %c0_10 = arith.constant 0 : index
      %c0_11 = arith.constant 0 : index
      %13 = vector.load %arg5[%c0_10, %c0_11] : memref<2x512xf32, #tpu.memory_space<vmem>>, vector<2x512xf32>
      tpu.vector_store %arg5[%c0_10, %c0_11], %12 {strides = array<i32>} : memref<2x512xf32, #tpu.memory_space<vmem>>, vector<2x512xf32>,
    } else {
    }
    %c0 = arith.constant 0 : index
    %c0_1 = arith.constant 0 : index
    %3 = vector.load %arg5[%c0, %c0_1] : memref<2x512xf32, #tpu.memory_space<vmem>>, vector<2x512xf32>
    %c0_2 = arith.constant 0 : index
    %c0_3 = arith.constant 0 : index
    %4 = vector.load %arg2[%c0_2, %c0_3] : memref<2x2048xf32, #tpu.memory_space<vmem>>, vector<2x2048xf32>
    %c0_4 = arith.constant 0 : index
    %c0_5 = arith.constant 0 : index
    %5 = vector.load %arg3[%c0_4, %c0_5] : memref<2048x512xf32, #tpu.memory_space<vmem>>, vector<2048x512xf32>
    %cst = arith.constant dense<0.000000e+00> : vector<2x512xf32>
    %6 = tpu.matmul %4, %5, %cst {dimension_numbers = #tpu.dot_dimension_numbers<[1], [0], [0], [1], [0, 0, 1, 1], [], []>} : vector<2x2048xf32>, vector<2048x512xf32>, vector<2x512xf32> -> vector<2x512xf32>
    %7 = arith.addf %3, %6 : vector<2x512xf32>
    %c0_6 = arith.constant 0 : index
    %c0_7 = arith.constant 0 : index
    %8 = vector.load %arg5[%c0_6, %c0_7] : memref<2x512xf32, #tpu.memory_space<vmem>>, vector<2x512xf32>
    tpu.vector_store %arg5[%c0_6, %c0_7], %7 {strides = array<i32>} : memref<2x512xf32, #tpu.memory_space<vmem>>, vector<2x512xf32>,
    %c10_i32 = arith.constant 10 : i32
    %9 = arith.cmpi eq, %arg1, %c10_i32 : i32
    %10 = arith.extui %9 : i1 to i32
    %c0_i32_8 = arith.constant 0 : i32
    %11 = arith.cmpi ne, %10, %c0_i32_8 : i32
    scf.if %11 {
      %c0_9 = arith.constant 0 : index
      %c0_10 = arith.constant 0 : index
      %12 = vector.load %arg5[%c0_9, %c0_10] : memref<2x512xf32, #tpu.memory_space<vmem>>, vector<2x512xf32>
      %13 = vector.shape_cast %12 : vector<2x512xf32> to vector<1x2x512xf32>
      %c0_11 = arith.constant 0 : index
      %c0_12 = arith.constant 0 : index
      %c0_13 = arith.constant 0 : index
      %14 = vector.load %arg4[%c0_11, %c0_12, %c0_13] : memref<1x2x512xf32, #tpu.memory_space<vmem>>, vector<1x2x512xf32>
      tpu.vector_store %arg4[%c0_11, %c0_12, %c0_13], %13 {strides = array<i32>} : memref<1x2x512xf32, #tpu.memory_space<vmem>>, vector<1x2x512xf32>,
    } else {
    }
    return
  }
  func.func @transform_0(%arg0: i32, %arg1: i32) -> (i32, i32) {
    %c11_i32 = arith.constant 11 : i32
    %0 = arith.muli %arg0, %c11_i32 : i32
    %1 = arith.addi %0, %arg1 : i32
    %c0_i32 = arith.constant 0 : i32
    %c0_i32_0 = arith.constant 0 : i32
    return %c0_i32, %1 : i32, i32
  }
  func.func @transform_1(%arg0: i32, %arg1: i32) -> (i32, i32) {
    %c11_i32 = arith.constant 11 : i32
    %0 = arith.muli %arg0, %c11_i32 : i32
    %1 = arith.addi %0, %arg1 : i32
    %c0_i32 = arith.constant 0 : i32
    %c0_i32_0 = arith.constant 0 : i32
    return %1, %c0_i32 : i32, i32
  }
  func.func @transform_2(%arg0: i32, %arg1: i32) -> (i32, i32, i32) {
    %c0_i32 = arith.constant 0 : i32
    %c0_i32_0 = arith.constant 0 : i32
    %c0_i32_1 = arith.constant 0 : i32
    return %arg0, %c0_i32, %c0_i32_0 : i32, i32, i32
  }
}

module attributes {stable_mosaic.version = 11 : i64} {
  func.func @_head_kernel(%arg0: memref<2x2x512xf32, #tpu.memory_space<vmem>>, %arg1: memref<1x512xf32, #tpu.memory_space<vmem>>, %arg2: memref<512x256xf32, #tpu.memory_space<vmem>>, %arg3: memref<1x256xf32, #tpu.memory_space<vmem>>, %arg4: memref<256x1xf32, #tpu.memory_space<vmem>>, %arg5: memref<1x1xf32, #tpu.memory_space<vmem>>, %arg6: memref<2x1xf32, #tpu.memory_space<vmem>>) attributes {dimension_semantics = [], scalar_prefetch = 0 : i64, scratch_operands = 0 : i64, tpu.core_type = #tpu.core_type<tc>} {
    %c0 = arith.constant 0 : index
    %c0_0 = arith.constant 0 : index
    %c0_1 = arith.constant 0 : index
    %0 = vector.load %arg0[%c0, %c0_0, %c0_1] : memref<2x2x512xf32, #tpu.memory_space<vmem>>, vector<2x2x512xf32>
    %cst = arith.constant dense<0.000000e+00> : vector<2x512xf32>
    %1 = vector.multi_reduction <add>, %0, %cst [0] : vector<2x2x512xf32> to vector<2x512xf32>
    %c0_2 = arith.constant 0 : index
    %c0_3 = arith.constant 0 : index
    %2 = vector.load %arg1[%c0_2, %c0_3] : memref<1x512xf32, #tpu.memory_space<vmem>>, vector<1x512xf32>
    %3 = vector.broadcast %2 : vector<1x512xf32> to vector<2x512xf32>
    %4 = arith.addf %1, %3 : vector<2x512xf32>
    %cst_4 = arith.constant 0.000000e+00 : f32
    %5 = vector.broadcast %cst_4 : f32 to vector<2x512xf32>
    %6 = arith.cmpf ogt, %4, %5 : vector<2x512xf32>
    %cst_5 = arith.constant 2.000000e-01 : f32
    %7 = vector.broadcast %cst_5 : f32 to vector<2x512xf32>
    %8 = arith.mulf %7, %4 : vector<2x512xf32>
    %9 = arith.select %6, %4, %8 : vector<2x512xi1>, vector<2x512xf32>
    %c0_6 = arith.constant 0 : index
    %c0_7 = arith.constant 0 : index
    %10 = vector.load %arg2[%c0_6, %c0_7] : memref<512x256xf32, #tpu.memory_space<vmem>>, vector<512x256xf32>
    %cst_8 = arith.constant dense<0.000000e+00> : vector<2x256xf32>
    %11 = tpu.matmul %9, %10, %cst_8 {dimension_numbers = #tpu.dot_dimension_numbers<[1], [0], [0], [1], [0, 0, 1, 1], [], []>} : vector<2x512xf32>, vector<512x256xf32>, vector<2x256xf32> -> vector<2x256xf32>
    %c0_9 = arith.constant 0 : index
    %c0_10 = arith.constant 0 : index
    %12 = vector.load %arg3[%c0_9, %c0_10] : memref<1x256xf32, #tpu.memory_space<vmem>>, vector<1x256xf32>
    %13 = vector.broadcast %12 : vector<1x256xf32> to vector<2x256xf32>
    %14 = arith.addf %11, %13 : vector<2x256xf32>
    %cst_11 = arith.constant 0.000000e+00 : f32
    %15 = vector.broadcast %cst_11 : f32 to vector<2x256xf32>
    %16 = arith.cmpf ogt, %14, %15 : vector<2x256xf32>
    %cst_12 = arith.constant 2.000000e-01 : f32
    %17 = vector.broadcast %cst_12 : f32 to vector<2x256xf32>
    %18 = arith.mulf %17, %14 : vector<2x256xf32>
    %19 = arith.select %16, %14, %18 : vector<2x256xi1>, vector<2x256xf32>
    %c0_13 = arith.constant 0 : index
    %c0_14 = arith.constant 0 : index
    %20 = vector.load %arg4[%c0_13, %c0_14] : memref<256x1xf32, #tpu.memory_space<vmem>>, vector<256x1xf32>
    %cst_15 = arith.constant dense<0.000000e+00> : vector<2x1xf32>
    %21 = tpu.matmul %19, %20, %cst_15 {dimension_numbers = #tpu.dot_dimension_numbers<[1], [0], [0], [1], [0, 0, 1, 1], [], []>} : vector<2x256xf32>, vector<256x1xf32>, vector<2x1xf32> -> vector<2x1xf32>
    %c0_16 = arith.constant 0 : index
    %c0_17 = arith.constant 0 : index
    %22 = vector.load %arg5[%c0_16, %c0_17] : memref<1x1xf32, #tpu.memory_space<vmem>>, vector<1x1xf32>
    %23 = vector.broadcast %22 : vector<1x1xf32> to vector<2x1xf32>
    %24 = arith.addf %21, %23 : vector<2x1xf32>
    %25 = arith.negf %24 : vector<2x1xf32>
    %26 = math.exp %25 : vector<2x1xf32>
    %cst_18 = arith.constant 1.000000e+00 : f32
    %27 = vector.broadcast %cst_18 : f32 to vector<2x1xf32>
    %28 = arith.addf %27, %26 : vector<2x1xf32>
    %29 = arith.divf %27, %28 : vector<2x1xf32>
    %c0_19 = arith.constant 0 : index
    %c0_20 = arith.constant 0 : index
    %30 = vector.load %arg6[%c0_19, %c0_20] : memref<2x1xf32, #tpu.memory_space<vmem>>, vector<2x1xf32>
    tpu.vector_store %arg6[%c0_19, %c0_20], %29 {strides = array<i32>} : memref<2x1xf32, #tpu.memory_space<vmem>>, vector<2x1xf32>,
    return
  }
}

</mosaic_0001>

<llo_original>
// kernel: discriminator_forward.3
$region0: #{discriminator_forward.3}
  #allocation0 [shape = 'u32[]', space=smem, size = 0x4, offset = 0x4, fixed_abs, tag = 'smem constant byte address 0x4 - core index']
  #allocation1 [shape = 'u32[144,128]{1,0:T(1,128)}', space=vmem, size = 0x12000, scoped, tag = 'internal scratch']
  #allocation2 [shape = 'f32[1,1]{1,0:T(1,128)S(1)}', space=vmem, size = 0x200, scoped, tag = 'scoped memory for discriminator_forward.3']
  %s0 = inlined_call_operand.vmem [shape: f32[2,2,512], index: 0, kind: input, shape index: {}]
  %s1 = inlined_call_operand.vmem [shape: f32[1,512], index: 1, kind: input, shape index: {}]
  %s2 = inlined_call_operand.vmem [shape: f32[512,256], index: 2, kind: input, shape index: {}]
  %s3 = inlined_call_operand.vmem [shape: f32[1,256], index: 3, kind: input, shape index: {}]
  %s4 = inlined_call_operand.vmem [shape: f32[256,1], index: 4, kind: input, shape index: {}]
  %s5 = inlined_call_operand.<no memory space> [shape: f32[1,1], index: 5, kind: input, shape index: {}]
  %s6 = inlined_call_operand.vmem [shape: f32[2,1], index: 6, kind: output, shape index: {}]
  %s7 = sld [smem:[#allocation0]]
  $region34: #{discriminator_forward.3} parent=0
    _
  %s9 = ssub.s32 1, %s7
  %s10 = scalar_select 0, %s9, %s7
  %v11 = vstv %s5
  %12 = vst [vmem:[#allocation2] sm:$0x1] %v11
  // Predicated region
  $region2: #{discriminator_forward.3} parent=0 // pred_check
    _
  $region3: #{discriminator_forward.3} parent=0 // pred_check_branch
    %14 = sbr.rel (0) target = $region5
  $region4: #{discriminator_forward.3} parent=0 // pred_region
    _
  $region5: #{discriminator_forward.3} parent=0 // pred_fallthru
    _
  // Predicated region
  $region6: #{discriminator_forward.3} parent=0 // pred_check
    _
  $region7: #{discriminator_forward.3} parent=0 // pred_check_branch
    %16 = sbr.rel (0) target = $region9
  $region8: #{discriminator_forward.3} parent=0 // pred_region
    _
  $region9: #{discriminator_forward.3} parent=0 // pred_fallthru
    _
  // Predicated region
  $region10: #{discriminator_forward.3} parent=0 // pred_check
    _
  $region11: #{discriminator_forward.3} parent=0 // pred_check_branch
    %18 = sbr.rel (0) target = $region13
  $region12: #{discriminator_forward.3} parent=0 // pred_region
    _
  $region13: #{discriminator_forward.3} parent=0 // pred_fallthru
    _
  // Predicated region
  $region14: #{discriminator_forward.3} parent=0 // pred_check
    _
  $region15: #{discriminator_forward.3} parent=0 // pred_check_branch
    %20 = sbr.rel (0) target = $region17
  $region16: #{discriminator_forward.3} parent=0 // pred_region
    _
  $region17: #{discriminator_forward.3} parent=0 // pred_fallthru
    _
  // Predicated region
  $region18: #{discriminator_forward.3} parent=0 // pred_check
    _
  $region19: #{discriminator_forward.3} parent=0 // pred_check_branch
    %22 = sbr.rel (0) target = $region21
  $region20: #{discriminator_forward.3} parent=0 // pred_region
    _
  $region21: #{discriminator_forward.3} parent=0 // pred_fallthru
    _
  // Predicated region
  $region22: #{discriminator_forward.3} parent=0 // pred_check
    _
  $region23: #{discriminator_forward.3} parent=0 // pred_check_branch
    %24 = sbr.rel (0) target = $region25
  $region24: #{discriminator_forward.3} parent=0 // pred_region
    _
  $region25: #{discriminator_forward.3} parent=0 // pred_fallthru
    _
  %v25 = vld [vmem:[%s0] sm:$0xff]
  %v26 = vld [vmem:[%s0 + $0x8] sm:$0xff]
  %v29 = vcombine.high %v25, %v25
  %v31 = vunpack.c.l.s4 1983009808
  %v32 = vunpack.c.0.s8 %v31
  %v33 = vlaneseq
  %v34 = vshrl.u32 %v33, 7
  %v35 = vsub.s32 %v32, %v34
  %v36 = vrot.slane %v25, %v35
  %v38 = vunpack.c.l.s4 1983009808
  %v39 = vunpack.c.0.s8 %v38
  %v40 = vlaneseq
  %v41 = vshrl.u32 %v40, 7
  %v42 = vsub.s32 %v39, %v41
  %v43 = vrot.slane %v29, %v42
  %v44 = vcombine.high %v36, %v36
  %v45 = vcombine.high %v43, %v43
  %v46 = vcombine.high %v26, %v26
  %v48 = vunpack.c.l.s4 1983009808
  %v49 = vunpack.c.0.s8 %v48
  %v50 = vlaneseq
  %v51 = vshrl.u32 %v50, 7
  %v52 = vsub.s32 %v49, %v51
  %v53 = vrot.slane %v26, %v52
  %v55 = vunpack.c.l.s4 1983009808
  %v56 = vunpack.c.0.s8 %v55
  %v57 = vlaneseq
  %v58 = vshrl.u32 %v57, 7
  %v59 = vsub.s32 %v56, %v58
  %v60 = vrot.slane %v46, %v59
  %v61 = vcombine.high %v53, %v53
  %v62 = vcombine.high %v60, %v60
  %vm71 = vcmask 1041408
  %v72 = vsel %vm71, %v36, 0.0
  %v73 = vsel %vm71, %v53, 0.0
  %v74 = vadd.f32 %v72, %v73
  %v75 = vsel %vm71, %v44, 0.0
  %v76 = vsel %vm71, %v61, 0.0
  %v77 = vadd.f32 %v75, %v76
  %v78 = vsel %vm71, %v43, 0.0
  %v79 = vsel %vm71, %v60, 0.0
  %v80 = vadd.f32 %v78, %v79
  %v81 = vsel %vm71, %v45, 0.0
  %v82 = vsel %vm71, %v62, 0.0
  %v83 = vadd.f32 %v81, %v82
  %v84 = vld [vmem:[%s1] sm:$0xf]
  %v86 = vlaneseq
  %v87 = vshrl.u32 %v86, 7
  %v88 = vsub.s32 0, %v87
  %v89 = vrot.slane %v84, %v88
  %v90 = vlaneseq
  %v91 = vshrl.u32 %v90, 7
  %v92 = vsub.s32 1, %v91
  %v93 = vrot.slane %v84, %v92
  %v94 = vlaneseq
  %v95 = vshrl.u32 %v94, 7
  %v96 = vsub.s32 2, %v95
  %v97 = vrot.slane %v84, %v96
  %v98 = vlaneseq
  %v99 = vshrl.u32 %v98, 7
  %v100 = vsub.s32 3, %v99
  %v101 = vrot.slane %v84, %v100
  %v106 = vadd.f32 %v74, %v89
  %v107 = vadd.f32 %v77, %v93
  %v108 = vadd.f32 %v80, %v97
  %v109 = vadd.f32 %v83, %v101
  %vm110 = vcmp.gt.f32.partialorder %v106, 0.0
  %vm111 = vcmp.gt.f32.partialorder %v107, 0.0
  %vm112 = vcmp.gt.f32.partialorder %v108, 0.0
  %vm113 = vcmp.gt.f32.partialorder %v109, 0.0
  %v114 = vmul.f32 %v106, 0.2
  %v115 = vmul.f32 %v107, 0.2
  %v116 = vmul.f32 %v108, 0.2
  %v117 = vmul.f32 %v109, 0.2
  %v118 = vsel %vm110, %v106, %v114
  %v119 = vsel %vm111, %v107, %v115
  %v120 = vsel %vm112, %v108, %v116
  %v121 = vsel %vm113, %v109, %v117
  %v122 = vld [vmem:[%s2] sm:$0xff]
  %v123 = vld [vmem:[%s2 + $0x8] sm:$0xff]
  %v124 = vld [vmem:[%s2 + $0x10] sm:$0xff]
  %v125 = vld [vmem:[%s2 + $0x18] sm:$0xff]
  %v126 = vld [vmem:[%s2 + $0x20] sm:$0xff]
  %v127 = vld [vmem:[%s2 + $0x28] sm:$0xff]
  %v128 = vld [vmem:[%s2 + $0x30] sm:$0xff]
  %v129 = vld [vmem:[%s2 + $0x38] sm:$0xff]
  %v130 = vld [vmem:[%s2 + $0x40] sm:$0xff]
  %v131 = vld [vmem:[%s2 + $0x48] sm:$0xff]
  %v132 = vld [vmem:[%s2 + $0x50] sm:$0xff]
  %v133 = vld [vmem:[%s2 + $0x58] sm:$0xff]
  %v134 = vld [vmem:[%s2 + $0x60] sm:$0xff]
  %v135 = vld [vmem:[%s2 + $0x68] sm:$0xff]
  %v136 = vld [vmem:[%s2 + $0x70] sm:$0xff]
  %v137 = vld [vmem:[%s2 + $0x78] sm:$0xff]
  %v138 = vld [vmem:[%s2 + $0x80] sm:$0xff]
  %v139 = vld [vmem:[%s2 + $0x88] sm:$0xff]
  %v140 = vld [vmem:[%s2 + $0x90] sm:$0xff]
  %v141 = vld [vmem:[%s2 + $0x98] sm:$0xff]
  %v142 = vld [vmem:[%s2 + $0xa0] sm:$0xff]
  %v143 = vld [vmem:[%s2 + $0xa8] sm:$0xff]
  %v144 = vld [vmem:[%s2 + $0xb0] sm:$0xff]
  %v145 = vld [vmem:[%s2 + $0xb8] sm:$0xff]
  %v146 = vld [vmem:[%s2 + $0xc0] sm:$0xff]
  %v147 = vld [vmem:[%s2 + $0xc8] sm:$0xff]
  %v148 = vld [vmem:[%s2 + $0xd0] sm:$0xff]
  %v149 = vld [vmem:[%s2 + $0xd8] sm:$0xff]
  %v150 = vld [vmem:[%s2 + $0xe0] sm:$0xff]
  %v151 = vld [vmem:[%s2 + $0xe8] sm:$0xff]
  %v152 = vld [vmem:[%s2 + $0xf0] sm:$0xff]
  %v153 = vld [vmem:[%s2 + $0xf8] sm:$0xff]
  %v154 = vld [vmem:[%s2 + $0x100] sm:$0xff]
  %v155 = vld [vmem:[%s2 + $0x108] sm:$0xff]
  %v156 = vld [vmem:[%s2 + $0x110] sm:$0xff]
  %v157 = vld [vmem:[%s2 + $0x118] sm:$0xff]
  %v158 = vld [vmem:[%s2 + $0x120] sm:$0xff]
  %v159 = vld [vmem:[%s2 + $0x128] sm:$0xff]
  %v160 = vld [vmem:[%s2 + $0x130] sm:$0xff]
  %v161 = vld [vmem:[%s2 + $0x138] sm:$0xff]
  %v162 = vld [vmem:[%s2 + $0x140] sm:$0xff]
  %v163 = vld [vmem:[%s2 + $0x148] sm:$0xff]
  %v164 = vld [vmem:[%s2 + $0x150] sm:$0xff]
  %v165 = vld [vmem:[%s2 + $0x158] sm:$0xff]
  %v166 = vld [vmem:[%s2 + $0x160] sm:$0xff]
  %v167 = vld [vmem:[%s2 + $0x168] sm:$0xff]
  %v168 = vld [vmem:[%s2 + $0x170] sm:$0xff]
  %v169 = vld [vmem:[%s2 + $0x178] sm:$0xff]
  %v170 = vld [vmem:[%s2 + $0x180] sm:$0xff]
  %v171 = vld [vmem:[%s2 + $0x188] sm:$0xff]
  %v172 = vld [vmem:[%s2 + $0x190] sm:$0xff]
  %v173 = vld [vmem:[%s2 + $0x198] sm:$0xff]
  %v174 = vld [vmem:[%s2 + $0x1a0] sm:$0xff]
  %v175 = vld [vmem:[%s2 + $0x1a8] sm:$0xff]
  %v176 = vld [vmem:[%s2 + $0x1b0] sm:$0xff]
  %v177 = vld [vmem:[%s2 + $0x1b8] sm:$0xff]
  %v178 = vld [vmem:[%s2 + $0x1c0] sm:$0xff]
  %v179 = vld [vmem:[%s2 + $0x1c8] sm:$0xff]
  %v180 = vld [vmem:[%s2 + $0x1d0] sm:$0xff]
  %v181 = vld [vmem:[%s2 + $0x1d8] sm:$0xff]
  %v182 = vld [vmem:[%s2 + $0x1e0] sm:$0xff]
  %v183 = vld [vmem:[%s2 + $0x1e8] sm:$0xff]
  %v184 = vld [vmem:[%s2 + $0x1f0] sm:$0xff]
  %v185 = vld [vmem:[%s2 + $0x1f8] sm:$0xff]
  %v186 = vld [vmem:[%s2 + $0x200] sm:$0xff]
  %v187 = vld [vmem:[%s2 + $0x208] sm:$0xff]
  %v188 = vld [vmem:[%s2 + $0x210] sm:$0xff]
  %v189 = vld [vmem:[%s2 + $0x218] sm:$0xff]
  %v190 = vld [vmem:[%s2 + $0x220] sm:$0xff]
  %v191 = vld [vmem:[%s2 + $0x228] sm:$0xff]
  %v192 = vld [vmem:[%s2 + $0x230] sm:$0xff]
  %v193 = vld [vmem:[%s2 + $0x238] sm:$0xff]
  %v194 = vld [vmem:[%s2 + $0x240] sm:$0xff]
  %v195 = vld [vmem:[%s2 + $0x248] sm:$0xff]
  %v196 = vld [vmem:[%s2 + $0x250] sm:$0xff]
  %v197 = vld [vmem:[%s2 + $0x258] sm:$0xff]
  %v198 = vld [vmem:[%s2 + $0x260] sm:$0xff]
  %v199 = vld [vmem:[%s2 + $0x268] sm:$0xff]
  %v200 = vld [vmem:[%s2 + $0x270] sm:$0xff]
  %v201 = vld [vmem:[%s2 + $0x278] sm:$0xff]
  %v202 = vld [vmem:[%s2 + $0x280] sm:$0xff]
  %v203 = vld [vmem:[%s2 + $0x288] sm:$0xff]
  %v204 = vld [vmem:[%s2 + $0x290] sm:$0xff]
  %v205 = vld [vmem:[%s2 + $0x298] sm:$0xff]
  %v206 = vld [vmem:[%s2 + $0x2a0] sm:$0xff]
  %v207 = vld [vmem:[%s2 + $0x2a8] sm:$0xff]
  %v208 = vld [vmem:[%s2 + $0x2b0] sm:$0xff]
  %v209 = vld [vmem:[%s2 + $0x2b8] sm:$0xff]
  %v210 = vld [vmem:[%s2 + $0x2c0] sm:$0xff]
  %v211 = vld [vmem:[%s2 + $0x2c8] sm:$0xff]
  %v212 = vld [vmem:[%s2 + $0x2d0] sm:$0xff]
  %v213 = vld [vmem:[%s2 + $0x2d8] sm:$0xff]
  %v214 = vld [vmem:[%s2 + $0x2e0] sm:$0xff]
  %v215 = vld [vmem:[%s2 + $0x2e8] sm:$0xff]
  %v216 = vld [vmem:[%s2 + $0x2f0] sm:$0xff]
  %v217 = vld [vmem:[%s2 + $0x2f8] sm:$0xff]
  %v218 = vld [vmem:[%s2 + $0x300] sm:$0xff]
  %v219 = vld [vmem:[%s2 + $0x308] sm:$0xff]
  %v220 = vld [vmem:[%s2 + $0x310] sm:$0xff]
  %v221 = vld [vmem:[%s2 + $0x318] sm:$0xff]
  %v222 = vld [vmem:[%s2 + $0x320] sm:$0xff]
  %v223 = vld [vmem:[%s2 + $0x328] sm:$0xff]
  %v224 = vld [vmem:[%s2 + $0x330] sm:$0xff]
  %v225 = vld [vmem:[%s2 + $0x338] sm:$0xff]
  %v226 = vld [vmem:[%s2 + $0x340] sm:$0xff]
  %v227 = vld [vmem:[%s2 + $0x348] sm:$0xff]
  %v228 = vld [vmem:[%s2 + $0x350] sm:$0xff]
  %v229 = vld [vmem:[%s2 + $0x358] sm:$0xff]
  %v230 = vld [vmem:[%s2 + $0x360] sm:$0xff]
  %v231 = vld [vmem:[%s2 + $0x368] sm:$0xff]
  %v232 = vld [vmem:[%s2 + $0x370] sm:$0xff]
  %v233 = vld [vmem:[%s2 + $0x378] sm:$0xff]
  %v234 = vld [vmem:[%s2 + $0x380] sm:$0xff]
  %v235 = vld [vmem:[%s2 + $0x388] sm:$0xff]
  %v236 = vld [vmem:[%s2 + $0x390] sm:$0xff]
  %v237 = vld [vmem:[%s2 + $0x398] sm:$0xff]
  %v238 = vld [vmem:[%s2 + $0x3a0] sm:$0xff]
  %v239 = vld [vmem:[%s2 + $0x3a8] sm:$0xff]
  %v240 = vld [vmem:[%s2 + $0x3b0] sm:$0xff]
  %v241 = vld [vmem:[%s2 + $0x3b8] sm:$0xff]
  %v242 = vld [vmem:[%s2 + $0x3c0] sm:$0xff]
  %v243 = vld [vmem:[%s2 + $0x3c8] sm:$0xff]
  %v244 = vld [vmem:[%s2 + $0x3d0] sm:$0xff]
  %v245 = vld [vmem:[%s2 + $0x3d8] sm:$0xff]
  %v246 = vld [vmem:[%s2 + $0x3e0] sm:$0xff]
  %v247 = vld [vmem:[%s2 + $0x3e8] sm:$0xff]
  %v248 = vld [vmem:[%s2 + $0x3f0] sm:$0xff]
  %v249 = vld [vmem:[%s2 + $0x3f8] sm:$0xff]
  %v250 = vld [vmem:[%s3] sm:$0x3]
  %v252 = vlaneseq
  %v253 = vshrl.u32 %v252, 7
  %v254 = vsub.s32 0, %v253
  %v255 = vrot.slane %v250, %v254
  %v256 = vlaneseq
  %v257 = vshrl.u32 %v256, 7
  %v258 = vsub.s32 1, %v257
  %v259 = vrot.slane %v250, %v258
  %262 = vmatprep.subr.mxu0 %v123
  %263 = vmatpush1.msra.mxu0 %v122
  %264 = vmatprep.subr.mxu0 %v125
  %265 = vmatpush1.msra.mxu0 %v124
  %266 = vmatprep.subr.mxu0 %v127
  %267 = vmatpush1.msra.mxu0 %v126
  %268 = vmatprep.subr.mxu0 %v129
  %269 = vmatpush1.msra.mxu0 %v128
  %270 = vmatprep.subr.mxu0 %v131
  %271 = vmatpush1.msra.mxu0 %v130
  %272 = vmatprep.subr.mxu0 %v133
  %273 = vmatpush1.msra.mxu0 %v132
  %274 = vmatprep.subr.mxu0 %v135
  %275 = vmatpush1.msra.mxu0 %v134
  %276 = vmatprep.subr.mxu0 %v137
  %277 = vmatpush1.msra.mxu0 %v136
  %278 = vmatprep.subr.mxu0 %v139
  %279 = vmatpush1.msra.mxu0 %v138
  %280 = vmatprep.subr.mxu0 %v141
  %281 = vmatpush1.msra.mxu0 %v140
  %282 = vmatprep.subr.mxu0 %v143
  %283 = vmatpush1.msra.mxu0 %v142
  %284 = vmatprep.subr.mxu0 %v145
  %285 = vmatpush1.msra.mxu0 %v144
  %286 = vmatprep.subr.mxu0 %v147
  %287 = vmatpush1.msra.mxu0 %v146
  %288 = vmatprep.subr.mxu0 %v149
  %289 = vmatpush1.msra.mxu0 %v148
  %290 = vmatprep.subr.mxu0 %v151
  %291 = vmatpush1.msra.mxu0 %v150
  %292 = vmatprep.subr.mxu0 %v153
  %293 = vmatpush1.msra.mxu0 %v152
  %294 = vmatprep.subr.mxu0 %v155
  %295 = vmatpush1.msra.mxu0 %v154
  %296 = vmatprep.subr.mxu0 %v157
  %297 = vmatpush1.msra.mxu0 %v156
  %298 = vmatprep.subr.mxu0 %v159
  %299 = vmatpush1.msra.mxu0 %v158
  %300 = vmatprep.subr.mxu0 %v161
  %301 = vmatpush1.msra.mxu0 %v160
  %302 = vmatprep.subr.mxu0 %v163
  %303 = vmatpush1.msra.mxu0 %v162
  %304 = vmatprep.subr.mxu0 %v165
  %305 = vmatpush1.msra.mxu0 %v164
  %306 = vmatprep.subr.mxu0 %v167
  %307 = vmatpush1.msra.mxu0 %v166
  %308 = vmatprep.subr.mxu0 %v169
  %309 = vmatpush1.msra.mxu0 %v168
  %310 = vmatprep.subr.mxu0 %v171
  %311 = vmatpush1.msra.mxu0 %v170
  %312 = vmatprep.subr.mxu0 %v173
  %313 = vmatpush1.msra.mxu0 %v172
  %314 = vmatprep.subr.mxu0 %v175
  %315 = vmatpush1.msra.mxu0 %v174
  %316 = vmatprep.subr.mxu0 %v177
  %317 = vmatpush1.msra.mxu0 %v176
  %318 = vmatprep.subr.mxu0 %v179
  %319 = vmatpush1.msra.mxu0 %v178
  %320 = vmatprep.subr.mxu0 %v181
  %321 = vmatpush1.msra.mxu0 %v180
  %322 = vmatprep.subr.mxu0 %v183
  %323 = vmatpush1.msra.mxu0 %v182
  %324 = vmatprep.subr.mxu0 %v185
  %325 = vmatpush1.msra.mxu0 %v184
  %326 = vmatprep.mubr.f32.mxu0 %v119
  %327 = vmatmul.mubr.f32.gmra.mrb[0].mxu0 %v118
  %v328 = vpop.f32.mrb[0].mxu0
  %v329 = vadd.f32 %v255, %v328
  %v330 = vpop.f32.mrb[0].mxu0
  %v331 = vadd.f32 %v259, %v330
  %332 = vdwg.mxu0
  %333 = vmatprep.subr.mxu0 %v187
  %334 = vmatpush1.msra.mxu0 %v186
  %335 = vmatprep.subr.mxu0 %v189
  %336 = vmatpush1.msra.mxu0 %v188
  %337 = vmatprep.subr.mxu0 %v191
  %338 = vmatpush1.msra.mxu0 %v190
  %339 = vmatprep.subr.mxu0 %v193
  %340 = vmatpush1.msra.mxu0 %v192
  %341 = vmatprep.subr.mxu0 %v195
  %342 = vmatpush1.msra.mxu0 %v194
  %343 = vmatprep.subr.mxu0 %v197
  %344 = vmatpush1.msra.mxu0 %v196
  %345 = vmatprep.subr.mxu0 %v199
  %346 = vmatpush1.msra.mxu0 %v198
  %347 = vmatprep.subr.mxu0 %v201
  %348 = vmatpush1.msra.mxu0 %v200
  %349 = vmatprep.subr.mxu0 %v203
  %350 = vmatpush1.msra.mxu0 %v202
  %351 = vmatprep.subr.mxu0 %v205
  %352 = vmatpush1.msra.mxu0 %v204
  %353 = vmatprep.subr.mxu0 %v207
  %354 = vmatpush1.msra.mxu0 %v206
  %355 = vmatprep.subr.mxu0 %v209
  %356 = vmatpush1.msra.mxu0 %v208
  %357 = vmatprep.subr.mxu0 %v211
  %358 = vmatpush1.msra.mxu0 %v210
  %359 = vmatprep.subr.mxu0 %v213
  %360 = vmatpush1.msra.mxu0 %v212
  %361 = vmatprep.subr.mxu0 %v215
  %362 = vmatpush1.msra.mxu0 %v214
  %363 = vmatprep.subr.mxu0 %v217
  %364 = vmatpush1.msra.mxu0 %v216
  %365 = vmatprep.subr.mxu0 %v219
  %366 = vmatpush1.msra.mxu0 %v218
  %367 = vmatprep.subr.mxu0 %v221
  %368 = vmatpush1.msra.mxu0 %v220
  %369 = vmatprep.subr.mxu0 %v223
  %370 = vmatpush1.msra.mxu0 %v222
  %371 = vmatprep.subr.mxu0 %v225
  %372 = vmatpush1.msra.mxu0 %v224
  %373 = vmatprep.subr.mxu0 %v227
  %374 = vmatpush1.msra.mxu0 %v226
  %375 = vmatprep.subr.mxu0 %v229
  %376 = vmatpush1.msra.mxu0 %v228
  %377 = vmatprep.subr.mxu0 %v231
  %378 = vmatpush1.msra.mxu0 %v230
  %379 = vmatprep.subr.mxu0 %v233
  %380 = vmatpush1.msra.mxu0 %v232
  %381 = vmatprep.subr.mxu0 %v235
  %382 = vmatpush1.msra.mxu0 %v234
  %383 = vmatprep.subr.mxu0 %v237
  %384 = vmatpush1.msra.mxu0 %v236
  %385 = vmatprep.subr.mxu0 %v239
  %386 = vmatpush1.msra.mxu0 %v238
  %387 = vmatprep.subr.mxu0 %v241
  %388 = vmatpush1.msra.mxu0 %v240
  %389 = vmatprep.subr.mxu0 %v243
  %390 = vmatpush1.msra.mxu0 %v242
  %391 = vmatprep.subr.mxu0 %v245
  %392 = vmatpush1.msra.mxu0 %v244
  %393 = vmatprep.subr.mxu0 %v247
  %394 = vmatpush1.msra.mxu0 %v246
  %395 = vmatprep.subr.mxu0 %v249
  %396 = vmatpush1.msra.mxu0 %v248
  %397 = vmatprep.mubr.f32.mxu0 %v121
  %398 = vmatmul.mubr.f32.gmra.mrb[0].mxu0 %v120
  %v399 = vpop.f32.mrb[0].mxu0
  %v400 = vadd.f32 %v329, %v399
  %v401 = vpop.f32.mrb[0].mxu0
  %v402 = vadd.f32 %v331, %v401
  %403 = vdwg.mxu0
  %vm404 = vcmp.gt.f32.partialorder %v400, 0.0
  %vm405 = vcmp.gt.f32.partialorder %v402, 0.0
  %v406 = vmul.f32 %v400, 0.2
  %v407 = vmul.f32 %v402, 0.2
  %v408 = vsel %vm404, %v400, %v406
  %v409 = vsel %vm405, %v402, %v407
  %v410 = vld [vmem:[%s4] sm:$0xff]
  %v411 = vld [vmem:[%s4 + $0x8] sm:$0xff]
  %v412 = vld [vmem:[%s4 + $0x10] sm:$0xff]
  %v413 = vld [vmem:[%s4 + $0x18] sm:$0xff]
  %v414 = vld [vmem:[%s4 + $0x20] sm:$0xff]
  %v415 = vld [vmem:[%s4 + $0x28] sm:$0xff]
  %v416 = vld [vmem:[%s4 + $0x30] sm:$0xff]
  %v417 = vld [vmem:[%s4 + $0x38] sm:$0xff]
  %v418 = vld [vmem:[%s4 + $0x40] sm:$0xff]
  %v419 = vld [vmem:[%s4 + $0x48] sm:$0xff]
  %v420 = vld [vmem:[%s4 + $0x50] sm:$0xff]
  %v421 = vld [vmem:[%s4 + $0x58] sm:$0xff]
  %v422 = vld [vmem:[%s4 + $0x60] sm:$0xff]
  %v423 = vld [vmem:[%s4 + $0x68] sm:$0xff]
  %v424 = vld [vmem:[%s4 + $0x70] sm:$0xff]
  %v425 = vld [vmem:[%s4 + $0x78] sm:$0xff]
  %v426 = vld [vmem:[%s4 + $0x80] sm:$0xff]
  %v427 = vld [vmem:[%s4 + $0x88] sm:$0xff]
  %v428 = vld [vmem:[%s4 + $0x90] sm:$0xff]
  %v429 = vld [vmem:[%s4 + $0x98] sm:$0xff]
  %v430 = vld [vmem:[%s4 + $0xa0] sm:$0xff]
  %v431 = vld [vmem:[%s4 + $0xa8] sm:$0xff]
  %v432 = vld [vmem:[%s4 + $0xb0] sm:$0xff]
  %v433 = vld [vmem:[%s4 + $0xb8] sm:$0xff]
  %v434 = vld [vmem:[%s4 + $0xc0] sm:$0xff]
  %v435 = vld [vmem:[%s4 + $0xc8] sm:$0xff]
  %v436 = vld [vmem:[%s4 + $0xd0] sm:$0xff]
  %v437 = vld [vmem:[%s4 + $0xd8] sm:$0xff]
  %v438 = vld [vmem:[%s4 + $0xe0] sm:$0xff]
  %v439 = vld [vmem:[%s4 + $0xe8] sm:$0xff]
  %v440 = vld [vmem:[%s4 + $0xf0] sm:$0xff]
  %v441 = vld [vmem:[%s4 + $0xf8] sm:$0xff]
  %v442 = vld [vmem:[#allocation2] sm:$0x1]
  %v444 = vlaneseq
  %v445 = vshrl.u32 %v444, 7
  %v446 = vsub.s32 0, %v445
  %v447 = vrot.slane %v442, %v446
  %449 = vmatprep.subr.mxu0 0.0
  %450 = vmatpush1.msra.mxu0 %v410
  %451 = vmatprep.subr.mxu0 0.0
  %452 = vmatpush1.msra.mxu0 %v411
  %453 = vmatprep.subr.mxu0 0.0
  %454 = vmatpush1.msra.mxu0 %v412
  %455 = vmatprep.subr.mxu0 0.0
  %456 = vmatpush1.msra.mxu0 %v413
  %457 = vmatprep.subr.mxu0 0.0
  %458 = vmatpush1.msra.mxu0 %v414
  %459 = vmatprep.subr.mxu0 0.0
  %460 = vmatpush1.msra.mxu0 %v415
  %461 = vmatprep.subr.mxu0 0.0
  %462 = vmatpush1.msra.mxu0 %v416
  %463 = vmatprep.subr.mxu0 0.0
  %464 = vmatpush1.msra.mxu0 %v417
  %465 = vmatprep.subr.mxu0 0.0
  %466 = vmatpush1.msra.mxu0 %v418
  %467 = vmatprep.subr.mxu0 0.0
  %468 = vmatpush1.msra.mxu0 %v419
  %469 = vmatprep.subr.mxu0 0.0
  %470 = vmatpush1.msra.mxu0 %v420
  %471 = vmatprep.subr.mxu0 0.0
  %472 = vmatpush1.msra.mxu0 %v421
  %473 = vmatprep.subr.mxu0 0.0
  %474 = vmatpush1.msra.mxu0 %v422
  %475 = vmatprep.subr.mxu0 0.0
  %476 = vmatpush1.msra.mxu0 %v423
  %477 = vmatprep.subr.mxu0 0.0
  %478 = vmatpush1.msra.mxu0 %v424
  %479 = vmatprep.subr.mxu0 0.0
  %480 = vmatpush1.msra.mxu0 %v425
  %481 = vmatprep.subr.mxu0 0.0
  %482 = vmatpush1.msra.mxu0 %v426
  %483 = vmatprep.subr.mxu0 0.0
  %484 = vmatpush1.msra.mxu0 %v427
  %485 = vmatprep.subr.mxu0 0.0
  %486 = vmatpush1.msra.mxu0 %v428
  %487 = vmatprep.subr.mxu0 0.0
  %488 = vmatpush1.msra.mxu0 %v429
  %489 = vmatprep.subr.mxu0 0.0
  %490 = vmatpush1.msra.mxu0 %v430
  %491 = vmatprep.subr.mxu0 0.0
  %492 = vmatpush1.msra.mxu0 %v431
  %493 = vmatprep.subr.mxu0 0.0
  %494 = vmatpush1.msra.mxu0 %v432
  %495 = vmatprep.subr.mxu0 0.0
  %496 = vmatpush1.msra.mxu0 %v433
  %497 = vmatprep.subr.mxu0 0.0
  %498 = vmatpush1.msra.mxu0 %v434
  %499 = vmatprep.subr.mxu0 0.0
  %500 = vmatpush1.msra.mxu0 %v435
  %501 = vmatprep.subr.mxu0 0.0
  %502 = vmatpush1.msra.mxu0 %v436
  %503 = vmatprep.subr.mxu0 0.0
  %504 = vmatpush1.msra.mxu0 %v437
  %505 = vmatprep.subr.mxu0 0.0
  %506 = vmatpush1.msra.mxu0 %v438
  %507 = vmatprep.subr.mxu0 0.0
  %508 = vmatpush1.msra.mxu0 %v439
  %509 = vmatprep.subr.mxu0 0.0
  %510 = vmatpush1.msra.mxu0 %v440
  %511 = vmatprep.subr.mxu0 0.0
  %512 = vmatpush1.msra.mxu0 %v441
  %513 = vmatprep.mubr.f32.mxu0 %v409
  %514 = vmatmul.mubr.f32.gmra.mrb[0].mxu0 %v408
  %v515 = vpop.f32.mrb[0].mxu0
  %v516 = vadd.f32 %v447, %v515
  %v517 = vpop.f32.mrb[0].mxu0
  %518 = vdwg.mxu0
  %v519 = vxor.u32 %v516, 2147483648
  %v520 = vmul.f32 %v519, 1.442695
  %v521 = vpow.pop %v520
  %v522 = vadd.f32 %v521, 1.0
  %v523 = vrcp.pop %v522
  %v524 = vmul.f32 1.0, %v523
  %vm525 = vcmask 1024
  %526 = vst.msk [vmem:[%s6] sm:$0x3] %vm525, %v524
  // Predicated region
  $region26: #{discriminator_forward.3} parent=0 // pred_check
    _
  $region27: #{discriminator_forward.3} parent=0 // pred_check_branch
    %528 = sbr.rel (0) target = $region29
  $region28: #{discriminator_forward.3} parent=0 // pred_region
    _
  $region29: #{discriminator_forward.3} parent=0 // pred_fallthru
    _
  // Predicated region
  $region30: #{discriminator_forward.3} parent=0 // pred_check
    _
  $region31: #{discriminator_forward.3} parent=0 // pred_check_branch
    %530 = sbr.rel (0) target = $region33
  $region32: #{discriminator_forward.3} parent=0 // pred_region
    _
  $region33: #{discriminator_forward.3} parent=0 // pred_fallthru
    _

// kernel: discriminator_forward.2
$region0: #{discriminator_forward.2}
  #allocation0 [shape = 'u32[]', space=smem, size = 0x4, offset = 0x4, fixed_abs, tag = 'smem constant byte address 0x4 - core index']
  #allocation1 [shape = 'u32[144,128]{1,0:T(1,128)}', space=vmem, size = 0x12000, scoped, tag = 'internal scratch']
  #allocation2 [shape = 'f32[2,512]{1,0:T(2,128)}', space=vmem, size = 0x1000, scoped, tag = 'scratch operand']
  %s0 = inlined_call_operand.vmem [shape: f32[2,45056], index: 0, kind: input, shape index: {}]
  %s1 = inlined_call_operand.hbm [shape: f32[45056,512], index: 1, kind: input, shape index: {}]
  %s2 = inlined_call_operand.vmem [shape: f32[2,2,512], index: 2, kind: output, shape index: {}]
  %s3 = sld [smem:[#allocation0]]
  $region53: #{discriminator_forward.2} parent=0
    _
  %s5 = ssub.s32 1, %s3
  %s6 = scalar_select 0, %s5, %s3
  $region1: #{discriminator_forward.2} parent=0
    #allocation3 [shape = 'u8[8388608]{0}', space=vmem, size = 0x800000, scoped, tag = 'input window, operand 1']
    #allocation4 [shape = 's32[2]{0}', space=sflag, size = 0x8, scoped, tag = 'scoped memory for discriminator_forward.2']
    %7 = vsyncpa [#allocation4], 0
    %s8 = scalar_lea.sflag [#allocation4], 1
    %9 = vsyncpa %s8, 0
    loop: start=0, step=1, limit=24
    $region2: #{discriminator_forward.2} parent=1 // loop_pre_header
      _
    $region3: #{discriminator_forward.2} parent=1 // loop_header
      %s11 = sphi 0, %s15
      %p12 = scmp.ge.s32.totalorder %s11, 24
      %s18 = sphi 0, %s30
      %s19 = sphi 0, %s26
      %s20 = sphi 0, %s18
      %s21 = sphi 0, %s19
      %s22 = sphi 0, %s20
      %s23 = sphi 0, %s21
      %s37 = sphi 0, %s39
      %s40 = sphi 0, %s37
      %s41 = sphi 0, %s40
      %s57 = sphi 0, %s41
      %s67 = sphi 0, %s69
      %s70 = sphi 0, %s67
      %s71 = sphi 0, %s70
      %s87 = sphi 0, %s71
      %s93 = sphi 0, %s95
      %s96 = sphi 0, %s93
      %s97 = sphi 0, %s96
      %s113 = sphi 0, %s97
    $region4: #{discriminator_forward.2} parent=1 // loop_header_branch
      %14 = sbr.rel (%p12) target = $region8
    $region5: #{discriminator_forward.2} parent=1 // loop_body
      %s16 = ssub.s32 %s11, 1
      %s17 = ssub.s32 %s11, 2
      %s24 = sadd.s32 1, %s19
      %p25 = scmp.ge.s32.totalorder %s24, 11
      %s26 = scalar_select %p25, 0, %s24
      %s27 = sadd.s32 1, %s18
      %s28 = scalar_select %p25, %s27, %s18
      %p29 = scmp.ge.s32.totalorder %s28, 2
      %s30 = scalar_select %p29, 0, %s28
      %s31 = smul.u32 %s18, 11
      %s32 = sadd.s32 %s31, %s19
      %s33 = smul.u32 %s30, 11
      %s34 = sadd.s32 %s33, %s26
      %s35 = ssub.s32 %s32, %s34
      %p36 = scmp.eq.s32.totalorder %s35, 0
      %s38 = sadd.s32 %s37, 1
      %s39 = scalar_select %p36, %s37, %s38
      %p42 = pneg %p36
      %p43 = scmp.eq.s32.totalorder %s11, 21
      %p44 = por %p42, %p43
      %p45 = scmp.ne.s32.totalorder %s37, %s40
      %p46 = scmp.eq.s32.totalorder %s11, 0
      %p47 = por %p45, %p46
      %p48 = scmp.ne.s32.totalorder %s37, %s40
      %p49 = scmp.eq.s32.totalorder %s16, 21
      %p50 = por %p48, %p49
      %p51 = scmp.ne.s32.totalorder %s40, %s41
      %p52 = scmp.eq.s32.totalorder %s16, 0
      %p53 = por %p51, %p52
      %p54 = scmp.ne.s32.totalorder %s40, %s41
      %p55 = scmp.eq.s32.totalorder %s17, 21
      %p56 = por %p54, %p55
      %p58 = scmp.ne.s32.totalorder %s41, %s57
      %p59 = scmp.eq.s32.totalorder %s17, 0
      %p60 = por %p58, %p59
      %s61 = smul.u32 %s18, 11
      %s62 = sadd.s32 %s61, %s19
      %s63 = smul.u32 %s30, 11
      %s64 = sadd.s32 %s63, %s26
      %s65 = ssub.s32 %s62, %s64
      %p66 = scmp.eq.s32.totalorder %s65, 0
      %s68 = sadd.s32 %s67, 1
      %s69 = scalar_select %p66, %s67, %s68
      %p72 = pneg %p66
      %p73 = scmp.eq.s32.totalorder %s11, 21
      %p74 = por %p72, %p73
      %p75 = scmp.ne.s32.totalorder %s67, %s70
      %p76 = scmp.eq.s32.totalorder %s11, 0
      %p77 = por %p75, %p76
      %p78 = scmp.ne.s32.totalorder %s67, %s70
      %p79 = scmp.eq.s32.totalorder %s16, 21
      %p80 = por %p78, %p79
      %p81 = scmp.ne.s32.totalorder %s70, %s71
      %p82 = scmp.eq.s32.totalorder %s16, 0
      %p83 = por %p81, %p82
      %p84 = scmp.ne.s32.totalorder %s70, %s71
      %p85 = scmp.eq.s32.totalorder %s17, 21
      %p86 = por %p84, %p85
      %p88 = scmp.ne.s32.totalorder %s71, %s87
      %p89 = scmp.eq.s32.totalorder %s17, 0
      %p90 = por %p88, %p89
      %s91 = ssub.s32 %s18, %s30
      %p92 = scmp.eq.s32.totalorder %s91, 0
      %s94 = sadd.s32 %s93, 1
      %s95 = scalar_select %p92, %s93, %s94
      %p98 = pneg %p92
      %p99 = scmp.eq.s32.totalorder %s11, 21
      %p100 = por %p98, %p99
      %p101 = scmp.ne.s32.totalorder %s93, %s96
      %p102 = scmp.eq.s32.totalorder %s11, 0
      %p103 = por %p101, %p102
      %p104 = scmp.ne.s32.totalorder %s93, %s96
      %p105 = scmp.eq.s32.totalorder %s16, 21
      %p106 = por %p104, %p105
      %p107 = scmp.ne.s32.totalorder %s96, %s97
      %p108 = scmp.eq.s32.totalorder %s16, 0
      %p109 = por %p107, %p108
      %p110 = scmp.ne.s32.totalorder %s96, %s97
      %p111 = scmp.eq.s32.totalorder %s17, 21
      %p112 = por %p110, %p111
      %p114 = scmp.ne.s32.totalorder %s97, %s113
      %p115 = scmp.eq.s32.totalorder %s17, 0
      %p116 = por %p114, %p115
      %p117 = scmp.le.s32.totalorder 1, %s11
      %p118 = scmp.lt.s32.totalorder %s11, 23
      %p119 = pnand %p117, %p118
      %p120 = pneg %p119
      // Predicated region
      $region9: #{discriminator_forward.2} parent=5 // pred_check
        _
      $region10: #{discriminator_forward.2} parent=5 // pred_check_branch
        %122 = sbr.rel (%p119) target = $region12
      $region11: #{discriminator_forward.2} parent=5 // pred_region
        %s123 = ssub.s32 %s11, 1
      $region12: #{discriminator_forward.2} parent=5 // pred_fallthru
        _
      %p124 = scmp.lt.s32.totalorder %s11, 22
      // Predicated region
      $region13: #{discriminator_forward.2} parent=5 // pred_check
        %p125 = pneg %p124
      $region14: #{discriminator_forward.2} parent=5 // pred_check_branch
        %127 = sbr.rel (%p125) target = $region16
      $region15: #{discriminator_forward.2} parent=5 // pred_region
        // Predicated region
        $region17: #{discriminator_forward.2} parent=15 // pred_check
          %p128 = pneg %p47
        $region18: #{discriminator_forward.2} parent=15 // pred_check_branch
          %130 = sbr.rel (%p128) target = $region20
        $region19: #{discriminator_forward.2} parent=15 // pred_region
          %s131 = smul.u32 %s18, 11
          %s132 = sadd.s32 %s131, %s19
          %s133 = smul.u32 16, %s132
          %p134 = scmp.lt.s32.totalorder %s133, 351
          %s135 = scalar_select %p134, %s133, 351
          %s136 = smul.addr %s135, 2
          %s137 = scalar_lea.vmem %s0, %s136
          %s138 = smul.u32 %s18, 11
          %s139 = sadd.s32 %s138, %s19
          %s140 = smul.u32 16, %s139
        $region20: #{discriminator_forward.2} parent=15 // pred_fallthru
          _
        // Predicated region
        $region21: #{discriminator_forward.2} parent=15 // pred_check
          %p141 = pneg %p77
        $region22: #{discriminator_forward.2} parent=15 // pred_check_branch
          %143 = sbr.rel (%p141) target = $region24
        $region23: #{discriminator_forward.2} parent=15 // pred_region
          %s144 = sand.u32 %s67, 1
          %s145 = scalar_lea.sflag [#allocation4], %s144
          %s146 = sand.u32 %s67, 1
          %s147 = smul.addr %s146, 8192
          %s148 = scalar_lea.vmem [#allocation3], %s147
          %s149 = smul.u32 %s18, 11
          %s150 = sadd.s32 %s149, %s19
          %s151 = smul.u32 256, %s150
          %s153 = ssub.s32 131072, 131072
          %154 = vsyncadd %s145, %s153
          %s155 = smul.addr %s151, 4
          %s156 = smul.addr %s155, 128
          %s157 = scalar_lea.hbm %s1, %s156
          %s158 = sshll.u32 %s148, 4
          %s159 = int_to_ptr.vmem [resolvable:$true] %s158
          %164 = dma.hbm_to_vmem [thread:$0]  %s157, 131072, %s159, %s145, 512, 512, 32
        $region24: #{discriminator_forward.2} parent=15 // pred_fallthru
          _
      $region16: #{discriminator_forward.2} parent=5 // pred_fallthru
        _
      %p165 = scmp.le.s32.totalorder 1, %s11
      %p166 = scmp.lt.s32.totalorder %s11, 23
      %p167 = pnand %p165, %p166
      %p168 = pneg %p167
      // Predicated region
      $region25: #{discriminator_forward.2} parent=5 // pred_check
        _
      $region26: #{discriminator_forward.2} parent=5 // pred_check_branch
        %170 = sbr.rel (%p167) target = $region28
      $region27: #{discriminator_forward.2} parent=5 // pred_region
        %s171 = ssub.s32 %s11, 1
        %s172 = sand.u32 %s70, 1
        %s173 = scalar_lea.sflag [#allocation4], %s172
        %s174 = sand.u32 %s70, 1
        %s175 = smul.addr %s174, 8192
        %s176 = scalar_lea.vmem [#allocation3], %s175
        // Predicated region
        $region29: #{discriminator_forward.2} parent=27 // pred_check
          %p177 = pneg %p83
        $region30: #{discriminator_forward.2} parent=27 // pred_check_branch
          %179 = sbr.rel (%p177) target = $region32
        $region31: #{discriminator_forward.2} parent=27 // pred_region
          %180 = dma.done %s173, 131072
        $region32: #{discriminator_forward.2} parent=27 // pred_fallthru
          _
        %s181 = smul.u32 %s20, 11
        %s182 = sadd.s32 %s181, %s21
        %s183 = smul.u32 16, %s182
        %p184 = scmp.lt.s32.totalorder %s183, 351
        %s185 = scalar_select %p184, %s183, 351
        %s186 = smul.addr %s185, 2
        %s187 = scalar_lea.vmem %s0, %s186
        %p188 = pneg %p53
        %p189 = pneg %p50
        %s190 = sand.u32 %s70, 1
        %s191 = scalar_lea.sflag [#allocation4], %s190
        %s192 = sand.u32 %s70, 1
        %s193 = smul.addr %s192, 8192
        %s194 = scalar_lea.vmem [#allocation3], %s193
        %p195 = pneg %p83
        %p196 = pneg %p80
        %p197 = pneg %p109
        %p198 = pneg %p106
        %p199 = scmp.lt.s32.totalorder %s20, 1
        %s200 = scalar_select %p199, %s20, 1
        %s201 = smul.addr %s200, 4
        %s202 = smul.addr %s201, 2
        %s203 = scalar_lea.vmem %s2, %s202
        %s204 = smul.u32 %s20, 11
        %s205 = sadd.s32 %s204, %s21
        %s206 = smul.u32 16, %s205
        %p207 = scmp.lt.s32.totalorder %s206, 351
        %s208 = scalar_select %p207, %s206, 351
        %s209 = smul.addr %s208, 2
        %s210 = scalar_lea.vmem %s0, %s209
        %s211 = smul.u32 %s20, 11
        %s212 = sadd.s32 %s211, %s21
        %s213 = smul.u32 16, %s212
        %s214 = smul.u32 %s20, 11
        %s215 = sadd.s32 %s214, %s21
        %s216 = smul.u32 256, %s215
        %p217 = scmp.lt.s32.totalorder %s20, 1
        %s218 = scalar_select %p217, %s20, 1
        %s219 = smul.addr %s218, 4
        %s220 = smul.addr %s219, 2
        %s221 = scalar_lea.vmem %s2, %s220
        %p222 = scmp.eq.s32.totalorder %s21, 0
        // Predicated region
        $region33: #{discriminator_forward.2} parent=27 // pred_check
          %p223 = pneg %p222
        $region34: #{discriminator_forward.2} parent=27 // pred_check_branch
          %225 = sbr.rel (%p223) target = $region36
        $region35: #{discriminator_forward.2} parent=27 // pred_region
          %226 = vst [vmem:[#allocation2] sm:$0xff] 0.0
        $region36: #{discriminator_forward.2} parent=27 // pred_fallthru
          _
        %v227 = vld [vmem:[#allocation2] sm:$0xff]
        %v228 = vld [vmem:[%s210] sm:$0xff]
        %v229 = vld [vmem:[%s210 + $0x8] sm:$0xff]
        %v230 = vld [vmem:[%s210 + $0x10] sm:$0xff]
        %v231 = vld [vmem:[%s210 + $0x18] sm:$0xff]
        %v232 = vld [vmem:[%s176] sm:$0xff]
        %v233 = vld [vmem:[%s176 + $0x8] sm:$0xff]
        %v234 = vld [vmem:[%s176 + $0x10] sm:$0xff]
        %v235 = vld [vmem:[%s176 + $0x18] sm:$0xff]
        %v236 = vld [vmem:[%s176 + $0x20] sm:$0xff]
        %v237 = vld [vmem:[%s176 + $0x28] sm:$0xff]
        %v238 = vld [vmem:[%s176 + $0x30] sm:$0xff]
        %v239 = vld [vmem:[%s176 + $0x38] sm:$0xff]
        %v240 = vld [vmem:[%s176 + $0x40] sm:$0xff]
        %v241 = vld [vmem:[%s176 + $0x48] sm:$0xff]
        %v242 = vld [vmem:[%s176 + $0x50] sm:$0xff]
        %v243 = vld [vmem:[%s176 + $0x58] sm:$0xff]
        %v244 = vld [vmem:[%s176 + $0x60] sm:$0xff]
        %v245 = vld [vmem:[%s176 + $0x68] sm:$0xff]
        %v246 = vld [vmem:[%s176 + $0x70] sm:$0xff]
        %v247 = vld [vmem:[%s176 + $0x78] sm:$0xff]
        %v248 = vld [vmem:[%s176 + $0x80] sm:$0xff]
        %v249 = vld [vmem:[%s176 + $0x88] sm:$0xff]
        %v250 = vld [vmem:[%s176 + $0x90] sm:$0xff]
        %v251 = vld [vmem:[%s176 + $0x98] sm:$0xff]
        %v252 = vld [vmem:[%s176 + $0xa0] sm:$0xff]
        %v253 = vld [vmem:[%s176 + $0xa8] sm:$0xff]
        %v254 = vld [vmem:[%s176 + $0xb0] sm:$0xff]
        %v255 = vld [vmem:[%s176 + $0xb8] sm:$0xff]
        %v256 = vld [vmem:[%s176 + $0xc0] sm:$0xff]
        %v257 = vld [vmem:[%s176 + $0xc8] sm:$0xff]
        %v258 = vld [vmem:[%s176 + $0xd0] sm:$0xff]
        %v259 = vld [vmem:[%s176 + $0xd8] sm:$0xff]
        %v260 = vld [vmem:[%s176 + $0xe0] sm:$0xff]
        %v261 = vld [vmem:[%s176 + $0xe8] sm:$0xff]
        %v262 = vld [vmem:[%s176 + $0xf0] sm:$0xff]
        %v263 = vld [vmem:[%s176 + $0xf8] sm:$0xff]
        %v264 = vld [vmem:[%s176 + $0x100] sm:$0xff]
        %v265 = vld [vmem:[%s176 + $0x108] sm:$0xff]
        %v266 = vld [vmem:[%s176 + $0x110] sm:$0xff]
        %v267 = vld [vmem:[%s176 + $0x118] sm:$0xff]
        %v268 = vld [vmem:[%s176 + $0x120] sm:$0xff]
        %v269 = vld [vmem:[%s176 + $0x128] sm:$0xff]
        %v270 = vld [vmem:[%s176 + $0x130] sm:$0xff]
        %v271 = vld [vmem:[%s176 + $0x138] sm:$0xff]
        %v272 = vld [vmem:[%s176 + $0x140] sm:$0xff]
        %v273 = vld [vmem:[%s176 + $0x148] sm:$0xff]
        %v274 = vld [vmem:[%s176 + $0x150] sm:$0xff]
        %v275 = vld [vmem:[%s176 + $0x158] sm:$0xff]
        %v276 = vld [vmem:[%s176 + $0x160] sm:$0xff]
        %v277 = vld [vmem:[%s176 + $0x168] sm:$0xff]
        %v278 = vld [vmem:[%s176 + $0x170] sm:$0xff]
        %v279 = vld [vmem:[%s176 + $0x178] sm:$0xff]
        %v280 = vld [vmem:[%s176 + $0x180] sm:$0xff]
        %v281 = vld [vmem:[%s176 + $0x188] sm:$0xff]
        %v282 = vld [vmem:[%s176 + $0x190] sm:$0xff]
        %v283 = vld [vmem:[%s176 + $0x198] sm:$0xff]
        %v284 = vld [vmem:[%s176 + $0x1a0] sm:$0xff]
        %v285 = vld [vmem:[%s176 + $0x1a8] sm:$0xff]
        %v286 = vld [vmem:[%s176 + $0x1b0] sm:$0xff]
        %v287 = vld [vmem:[%s176 + $0x1b8] sm:$0xff]
        %v288 = vld [vmem:[%s176 + $0x1c0] sm:$0xff]
        %v289 = vld [vmem:[%s176 + $0x1c8] sm:$0xff]
        %v290 = vld [vmem:[%s176 + $0x1d0] sm:$0xff]
        %v291 = vld [vmem:[%s176 + $0x1d8] sm:$0xff]
        %v292 = vld [vmem:[%s176 + $0x1e0] sm:$0xff]
        %v293 = vld [vmem:[%s176 + $0x1e8] sm:$0xff]
        %v294 = vld [vmem:[%s176 + $0x1f0] sm:$0xff]
        %v295 = vld [vmem:[%s176 + $0x1f8] sm:$0xff]
        %v296 = vld [vmem:[%s176 + $0x200] sm:$0xff]
        %v297 = vld [vmem:[%s176 + $0x208] sm:$0xff]
        %v298 = vld [vmem:[%s176 + $0x210] sm:$0xff]
        %v299 = vld [vmem:[%s176 + $0x218] sm:$0xff]
        %v300 = vld [vmem:[%s176 + $0x220] sm:$0xff]
        %v301 = vld [vmem:[%s176 + $0x228] sm:$0xff]
        %v302 = vld [vmem:[%s176 + $0x230] sm:$0xff]
        %v303 = vld [vmem:[%s176 + $0x238] sm:$0xff]
        %v304 = vld [vmem:[%s176 + $0x240] sm:$0xff]
        %v305 = vld [vmem:[%s176 + $0x248] sm:$0xff]
        %v306 = vld [vmem:[%s176 + $0x250] sm:$0xff]
        %v307 = vld [vmem:[%s176 + $0x258] sm:$0xff]
        %v308 = vld [vmem:[%s176 + $0x260] sm:$0xff]
        %v309 = vld [vmem:[%s176 + $0x268] sm:$0xff]
        %v310 = vld [vmem:[%s176 + $0x270] sm:$0xff]
        %v311 = vld [vmem:[%s176 + $0x278] sm:$0xff]
        %v312 = vld [vmem:[%s176 + $0x280] sm:$0xff]
        %v313 = vld [vmem:[%s176 + $0x288] sm:$0xff]
        %v314 = vld [vmem:[%s176 + $0x290] sm:$0xff]
        %v315 = vld [vmem:[%s176 + $0x298] sm:$0xff]
        %v316 = vld [vmem:[%s176 + $0x2a0] sm:$0xff]
        %v317 = vld [vmem:[%s176 + $0x2a8] sm:$0xff]
        %v318 = vld [vmem:[%s176 + $0x2b0] sm:$0xff]
        %v319 = vld [vmem:[%s176 + $0x2b8] sm:$0xff]
        %v320 = vld [vmem:[%s176 + $0x2c0] sm:$0xff]
        %v321 = vld [vmem:[%s176 + $0x2c8] sm:$0xff]
        %v322 = vld [vmem:[%s176 + $0x2d0] sm:$0xff]
        %v323 = vld [vmem:[%s176 + $0x2d8] sm:$0xff]
        %v324 = vld [vmem:[%s176 + $0x2e0] sm:$0xff]
        %v325 = vld [vmem:[%s176 + $0x2e8] sm:$0xff]
        %v326 = vld [vmem:[%s176 + $0x2f0] sm:$0xff]
        %v327 = vld [vmem:[%s176 + $0x2f8] sm:$0xff]
        %v328 = vld [vmem:[%s176 + $0x300] sm:$0xff]
        %v329 = vld [vmem:[%s176 + $0x308] sm:$0xff]
        %v330 = vld [vmem:[%s176 + $0x310] sm:$0xff]
        %v331 = vld [vmem:[%s176 + $0x318] sm:$0xff]
        %v332 = vld [vmem:[%s176 + $0x320] sm:$0xff]
        %v333 = vld [vmem:[%s176 + $0x328] sm:$0xff]
        %v334 = vld [vmem:[%s176 + $0x330] sm:$0xff]
        %v335 = vld [vmem:[%s176 + $0x338] sm:$0xff]
        %v336 = vld [vmem:[%s176 + $0x340] sm:$0xff]
        %v337 = vld [vmem:[%s176 + $0x348] sm:$0xff]
        %v338 = vld [vmem:[%s176 + $0x350] sm:$0xff]
        %v339 = vld [vmem:[%s176 + $0x358] sm:$0xff]
        %v340 = vld [vmem:[%s176 + $0x360] sm:$0xff]
        %v341 = vld [vmem:[%s176 + $0x368] sm:$0xff]
        %v342 = vld [vmem:[%s176 + $0x370] sm:$0xff]
        %v343 = vld [vmem:[%s176 + $0x378] sm:$0xff]
        %v344 = vld [vmem:[%s176 + $0x380] sm:$0xff]
        %v345 = vld [vmem:[%s176 + $0x388] sm:$0xff]
        %v346 = vld [vmem:[%s176 + $0x390] sm:$0xff]
        %v347 = vld [vmem:[%s176 + $0x398] sm:$0xff]
        %v348 = vld [vmem:[%s176 + $0x3a0] sm:$0xff]
        %v349 = vld [vmem:[%s176 + $0x3a8] sm:$0xff]
        %v350 = vld [vmem:[%s176 + $0x3b0] sm:$0xff]
        %v351 = vld [vmem:[%s176 + $0x3b8] sm:$0xff]
        %v352 = vld [vmem:[%s176 + $0x3c0] sm:$0xff]
        %v353 = vld [vmem:[%s176 + $0x3c8] sm:$0xff]
        %v354 = vld [vmem:[%s176 + $0x3d0] sm:$0xff]
        %v355 = vld [vmem:[%s176 + $0x3d8] sm:$0xff]
        %v356 = vld [vmem:[%s176 + $0x3e0] sm:$0xff]
        %v357 = vld [vmem:[%s176 + $0x3e8] sm:$0xff]
        %v358 = vld [vmem:[%s176 + $0x3f0] sm:$0xff]
        %v359 = vld [vmem:[%s176 + $0x3f8] sm:$0xff]
        %v360 = vld [vmem:[%s176 + $0x400] sm:$0xff]
        %v361 = vld [vmem:[%s176 + $0x408] sm:$0xff]
        %v362 = vld [vmem:[%s176 + $0x410] sm:$0xff]
        %v363 = vld [vmem:[%s176 + $0x418] sm:$0xff]
        %v364 = vld [vmem:[%s176 + $0x420] sm:$0xff]
        %v365 = vld [vmem:[%s176 + $0x428] sm:$0xff]
        %v366 = vld [vmem:[%s176 + $0x430] sm:$0xff]
        %v367 = vld [vmem:[%s176 + $0x438] sm:$0xff]
        %v368 = vld [vmem:[%s176 + $0x440] sm:$0xff]
        %v369 = vld [vmem:[%s176 + $0x448] sm:$0xff]
        %v370 = vld [vmem:[%s176 + $0x450] sm:$0xff]
        %v371 = vld [vmem:[%s176 + $0x458] sm:$0xff]
        %v372 = vld [vmem:[%s176 + $0x460] sm:$0xff]
        %v373 = vld [vmem:[%s176 + $0x468] sm:$0xff]
        %v374 = vld [vmem:[%s176 + $0x470] sm:$0xff]
        %v375 = vld [vmem:[%s176 + $0x478] sm:$0xff]
        %v376 = vld [vmem:[%s176 + $0x480] sm:$0xff]
        %v377 = vld [vmem:[%s176 + $0x488] sm:$0xff]
        %v378 = vld [vmem:[%s176 + $0x490] sm:$0xff]
        %v379 = vld [vmem:[%s176 + $0x498] sm:$0xff]
        %v380 = vld [vmem:[%s176 + $0x4a0] sm:$0xff]
        %v381 = vld [vmem:[%s176 + $0x4a8] sm:$0xff]
        %v382 = vld [vmem:[%s176 + $0x4b0] sm:$0xff]
        %v383 = vld [vmem:[%s176 + $0x4b8] sm:$0xff]
        %v384 = vld [vmem:[%s176 + $0x4c0] sm:$0xff]
        %v385 = vld [vmem:[%s176 + $0x4c8] sm:$0xff]
        %v386 = vld [vmem:[%s176 + $0x4d0] sm:$0xff]
        %v387 = vld [vmem:[%s176 + $0x4d8] sm:$0xff]
        %v388 = vld [vmem:[%s176 + $0x4e0] sm:$0xff]
        %v389 = vld [vmem:[%s176 + $0x4e8] sm:$0xff]
        %v390 = vld [vmem:[%s176 + $0x4f0] sm:$0xff]
        %v391 = vld [vmem:[%s176 + $0x4f8] sm:$0xff]
        %v392 = vld [vmem:[%s176 + $0x500] sm:$0xff]
        %v393 = vld [vmem:[%s176 + $0x508] sm:$0xff]
        %v394 = vld [vmem:[%s176 + $0x510] sm:$0xff]
        %v395 = vld [vmem:[%s176 + $0x518] sm:$0xff]
        %v396 = vld [vmem:[%s176 + $0x520] sm:$0xff]
        %v397 = vld [vmem:[%s176 + $0x528] sm:$0xff]
        %v398 = vld [vmem:[%s176 + $0x530] sm:$0xff]
        %v399 = vld [vmem:[%s176 + $0x538] sm:$0xff]
        %v400 = vld [vmem:[%s176 + $0x540] sm:$0xff]
        %v401 = vld [vmem:[%s176 + $0x548] sm:$0xff]
        %v402 = vld [vmem:[%s176 + $0x550] sm:$0xff]
        %v403 = vld [vmem:[%s176 + $0x558] sm:$0xff]
        %v404 = vld [vmem:[%s176 + $0x560] sm:$0xff]
        %v405 = vld [vmem:[%s176 + $0x568] sm:$0xff]
        %v406 = vld [vmem:[%s176 + $0x570] sm:$0xff]
        %v407 = vld [vmem:[%s176 + $0x578] sm:$0xff]
        %v408 = vld [vmem:[%s176 + $0x580] sm:$0xff]
        %v409 = vld [vmem:[%s176 + $0x588] sm:$0xff]
        %v410 = vld [vmem:[%s176 + $0x590] sm:$0xff]
        %v411 = vld [vmem:[%s176 + $0x598] sm:$0xff]
        %v412 = vld [vmem:[%s176 + $0x5a0] sm:$0xff]
        %v413 = vld [vmem:[%s176 + $0x5a8] sm:$0xff]
        %v414 = vld [vmem:[%s176 + $0x5b0] sm:$0xff]
        %v415 = vld [vmem:[%s176 + $0x5b8] sm:$0xff]
        %v416 = vld [vmem:[%s176 + $0x5c0] sm:$0xff]
        %v417 = vld [vmem:[%s176 + $0x5c8] sm:$0xff]
        %v418 = vld [vmem:[%s176 + $0x5d0] sm:$0xff]
        %v419 = vld [vmem:[%s176 + $0x5d8] sm:$0xff]
        %v420 = vld [vmem:[%s176 + $0x5e0] sm:$0xff]
        %v421 = vld [vmem:[%s176 + $0x5e8] sm:$0xff]
        %v422 = vld [vmem:[%s176 + $0x5f0] sm:$0xff]
        %v423 = vld [vmem:[%s176 + $0x5f8] sm:$0xff]
        %v424 = vld [vmem:[%s176 + $0x600] sm:$0xff]
        %v425 = vld [vmem:[%s176 + $0x608] sm:$0xff]
        %v426 = vld [vmem:[%s176 + $0x610] sm:$0xff]
        %v427 = vld [vmem:[%s176 + $0x618] sm:$0xff]
        %v428 = vld [vmem:[%s176 + $0x620] sm:$0xff]
        %v429 = vld [vmem:[%s176 + $0x628] sm:$0xff]
        %v430 = vld [vmem:[%s176 + $0x630] sm:$0xff]
        %v431 = vld [vmem:[%s176 + $0x638] sm:$0xff]
        %v432 = vld [vmem:[%s176 + $0x640] sm:$0xff]
        %v433 = vld [vmem:[%s176 + $0x648] sm:$0xff]
        %v434 = vld [vmem:[%s176 + $0x650] sm:$0xff]
        %v435 = vld [vmem:[%s176 + $0x658] sm:$0xff]
        %v436 = vld [vmem:[%s176 + $0x660] sm:$0xff]
        %v437 = vld [vmem:[%s176 + $0x668] sm:$0xff]
        %v438 = vld [vmem:[%s176 + $0x670] sm:$0xff]
        %v439 = vld [vmem:[%s176 + $0x678] sm:$0xff]
        %v440 = vld [vmem:[%s176 + $0x680] sm:$0xff]
        %v441 = vld [vmem:[%s176 + $0x688] sm:$0xff]
        %v442 = vld [vmem:[%s176 + $0x690] sm:$0xff]
        %v443 = vld [vmem:[%s176 + $0x698] sm:$0xff]
        %v444 = vld [vmem:[%s176 + $0x6a0] sm:$0xff]
        %v445 = vld [vmem:[%s176 + $0x6a8] sm:$0xff]
        %v446 = vld [vmem:[%s176 + $0x6b0] sm:$0xff]
        %v447 = vld [vmem:[%s176 + $0x6b8] sm:$0xff]
        %v448 = vld [vmem:[%s176 + $0x6c0] sm:$0xff]
        %v449 = vld [vmem:[%s176 + $0x6c8] sm:$0xff]
        %v450 = vld [vmem:[%s176 + $0x6d0] sm:$0xff]
        %v451 = vld [vmem:[%s176 + $0x6d8] sm:$0xff]
        %v452 = vld [vmem:[%s176 + $0x6e0] sm:$0xff]
        %v453 = vld [vmem:[%s176 + $0x6e8] sm:$0xff]
        %v454 = vld [vmem:[%s176 + $0x6f0] sm:$0xff]
        %v455 = vld [vmem:[%s176 + $0x6f8] sm:$0xff]
        %v456 = vld [vmem:[%s176 + $0x700] sm:$0xff]
        %v457 = vld [vmem:[%s176 + $0x708] sm:$0xff]
        %v458 = vld [vmem:[%s176 + $0x710] sm:$0xff]
        %v459 = vld [vmem:[%s176 + $0x718] sm:$0xff]
        %v460 = vld [vmem:[%s176 + $0x720] sm:$0xff]
        %v461 = vld [vmem:[%s176 + $0x728] sm:$0xff]
        %v462 = vld [vmem:[%s176 + $0x730] sm:$0xff]
        %v463 = vld [vmem:[%s176 + $0x738] sm:$0xff]
        %v464 = vld [vmem:[%s176 + $0x740] sm:$0xff]
        %v465 = vld [vmem:[%s176 + $0x748] sm:$0xff]
        %v466 = vld [vmem:[%s176 + $0x750] sm:$0xff]
        %v467 = vld [vmem:[%s176 + $0x758] sm:$0xff]
        %v468 = vld [vmem:[%s176 + $0x760] sm:$0xff]
        %v469 = vld [vmem:[%s176 + $0x768] sm:$0xff]
        %v470 = vld [vmem:[%s176 + $0x770] sm:$0xff]
        %v471 = vld [vmem:[%s176 + $0x778] sm:$0xff]
        %v472 = vld [vmem:[%s176 + $0x780] sm:$0xff]
        %v473 = vld [vmem:[%s176 + $0x788] sm:$0xff]
        %v474 = vld [vmem:[%s176 + $0x790] sm:$0xff]
        %v475 = vld [vmem:[%s176 + $0x798] sm:$0xff]
        %v476 = vld [vmem:[%s176 + $0x7a0] sm:$0xff]
        %v477 = vld [vmem:[%s176 + $0x7a8] sm:$0xff]
        %v478 = vld [vmem:[%s176 + $0x7b0] sm:$0xff]
        %v479 = vld [vmem:[%s176 + $0x7b8] sm:$0xff]
        %v480 = vld [vmem:[%s176 + $0x7c0] sm:$0xff]
        %v481 = vld [vmem:[%s176 + $0x7c8] sm:$0xff]
        %v482 = vld [vmem:[%s176 + $0x7d0] sm:$0xff]
        %v483 = vld [vmem:[%s176 + $0x7d8] sm:$0xff]
        %v484 = vld [vmem:[%s176 + $0x7e0] sm:$0xff]
        %v485 = vld [vmem:[%s176 + $0x7e8] sm:$0xff]
        %v486 = vld [vmem:[%s176 + $0x7f0] sm:$0xff]
        %v487 = vld [vmem:[%s176 + $0x7f8] sm:$0xff]
        %v488 = vld [vmem:[%s176 + $0x800] sm:$0xff]
        %v489 = vld [vmem:[%s176 + $0x808] sm:$0xff]
        %v490 = vld [vmem:[%s176 + $0x810] sm:$0xff]
        %v491 = vld [vmem:[%s176 + $0x818] sm:$0xff]
        %v492 = vld [vmem:[%s176 + $0x820] sm:$0xff]
        %v493 = vld [vmem:[%s176 + $0x828] sm:$0xff]
        %v494 = vld [vmem:[%s176 + $0x830] sm:$0xff]
        %v495 = vld [vmem:[%s176 + $0x838] sm:$0xff]
        %v496 = vld [vmem:[%s176 + $0x840] sm:$0xff]
        %v497 = vld [vmem:[%s176 + $0x848] sm:$0xff]
        %v498 = vld [vmem:[%s176 + $0x850] sm:$0xff]
        %v499 = vld [vmem:[%s176 + $0x858] sm:$0xff]
        %v500 = vld [vmem:[%s176 + $0x860] sm:$0xff]
        %v501 = vld [vmem:[%s176 + $0x868] sm:$0xff]
        %v502 = vld [vmem:[%s176 + $0x870] sm:$0xff]
        %v503 = vld [vmem:[%s176 + $0x878] sm:$0xff]
        %v504 = vld [vmem:[%s176 + $0x880] sm:$0xff]
        %v505 = vld [vmem:[%s176 + $0x888] sm:$0xff]
        %v506 = vld [vmem:[%s176 + $0x890] sm:$0xff]
        %v507 = vld [vmem:[%s176 + $0x898] sm:$0xff]
        %v508 = vld [vmem:[%s176 + $0x8a0] sm:$0xff]
        %v509 = vld [vmem:[%s176 + $0x8a8] sm:$0xff]
        %v510 = vld [vmem:[%s176 + $0x8b0] sm:$0xff]
        %v511 = vld [vmem:[%s176 + $0x8b8] sm:$0xff]
        %v512 = vld [vmem:[%s176 + $0x8c0] sm:$0xff]
        %v513 = vld [vmem:[%s176 + $0x8c8] sm:$0xff]
        %v514 = vld [vmem:[%s176 + $0x8d0] sm:$0xff]
        %v515 = vld [vmem:[%s176 + $0x8d8] sm:$0xff]
        %v516 = vld [vmem:[%s176 + $0x8e0] sm:$0xff]
        %v517 = vld [vmem:[%s176 + $0x8e8] sm:$0xff]
        %v518 = vld [vmem:[%s176 + $0x8f0] sm:$0xff]
        %v519 = vld [vmem:[%s176 + $0x8f8] sm:$0xff]
        %v520 = vld [vmem:[%s176 + $0x900] sm:$0xff]
        %v521 = vld [vmem:[%s176 + $0x908] sm:$0xff]
        %v522 = vld [vmem:[%s176 + $0x910] sm:$0xff]
        %v523 = vld [vmem:[%s176 + $0x918] sm:$0xff]
        %v524 = vld [vmem:[%s176 + $0x920] sm:$0xff]
        %v525 = vld [vmem:[%s176 + $0x928] sm:$0xff]
        %v526 = vld [vmem:[%s176 + $0x930] sm:$0xff]
        %v527 = vld [vmem:[%s176 + $0x938] sm:$0xff]
        %v528 = vld [vmem:[%s176 + $0x940] sm:$0xff]
        %v529 = vld [vmem:[%s176 + $0x948] sm:$0xff]
        %v530 = vld [vmem:[%s176 + $0x950] sm:$0xff]
        %v531 = vld [vmem:[%s176 + $0x958] sm:$0xff]
        %v532 = vld [vmem:[%s176 + $0x960] sm:$0xff]
        %v533 = vld [vmem:[%s176 + $0x968] sm:$0xff]
        %v534 = vld [vmem:[%s176 + $0x970] sm:$0xff]
        %v535 = vld [vmem:[%s176 + $0x978] sm:$0xff]
        %v536 = vld [vmem:[%s176 + $0x980] sm:$0xff]
        %v537 = vld [vmem:[%s176 + $0x988] sm:$0xff]
        %v538 = vld [vmem:[%s176 + $0x990] sm:$0xff]
        %v539 = vld [vmem:[%s176 + $0x998] sm:$0xff]
        %v540 = vld [vmem:[%s176 + $0x9a0] sm:$0xff]
        %v541 = vld [vmem:[%s176 + $0x9a8] sm:$0xff]
        %v542 = vld [vmem:[%s176 + $0x9b0] sm:$0xff]
        %v543 = vld [vmem:[%s176 + $0x9b8] sm:$0xff]
        %v544 = vld [vmem:[%s176 + $0x9c0] sm:$0xff]
        %v545 = vld [vmem:[%s176 + $0x9c8] sm:$0xff]
        %v546 = vld [vmem:[%s176 + $0x9d0] sm:$0xff]
        %v547 = vld [vmem:[%s176 + $0x9d8] sm:$0xff]
        %v548 = vld [vmem:[%s176 + $0x9e0] sm:$0xff]
        %v549 = vld [vmem:[%s176 + $0x9e8] sm:$0xff]
        %v550 = vld [vmem:[%s176 + $0x9f0] sm:$0xff]
        %v551 = vld [vmem:[%s176 + $0x9f8] sm:$0xff]
        %v552 = vld [vmem:[%s176 + $0xa00] sm:$0xff]
        %v553 = vld [vmem:[%s176 + $0xa08] sm:$0xff]
        %v554 = vld [vmem:[%s176 + $0xa10] sm:$0xff]
        %v555 = vld [vmem:[%s176 + $0xa18] sm:$0xff]
        %v556 = vld [vmem:[%s176 + $0xa20] sm:$0xff]
        %v557 = vld [vmem:[%s176 + $0xa28] sm:$0xff]
        %v558 = vld [vmem:[%s176 + $0xa30] sm:$0xff]
        %v559 = vld [vmem:[%s176 + $0xa38] sm:$0xff]
        %v560 = vld [vmem:[%s176 + $0xa40] sm:$0xff]
        %v561 = vld [vmem:[%s176 + $0xa48] sm:$0xff]
        %v562 = vld [vmem:[%s176 + $0xa50] sm:$0xff]
        %v563 = vld [vmem:[%s176 + $0xa58] sm:$0xff]
        %v564 = vld [vmem:[%s176 + $0xa60] sm:$0xff]
        %v565 = vld [vmem:[%s176 + $0xa68] sm:$0xff]
        %v566 = vld [vmem:[%s176 + $0xa70] sm:$0xff]
        %v567 = vld [vmem:[%s176 + $0xa78] sm:$0xff]
        %v568 = vld [vmem:[%s176 + $0xa80] sm:$0xff]
        %v569 = vld [vmem:[%s176 + $0xa88] sm:$0xff]
        %v570 = vld [vmem:[%s176 + $0xa90] sm:$0xff]
        %v571 = vld [vmem:[%s176 + $0xa98] sm:$0xff]
        %v572 = vld [vmem:[%s176 + $0xaa0] sm:$0xff]
        %v573 = vld [vmem:[%s176 + $0xaa8] sm:$0xff]
        %v574 = vld [vmem:[%s176 + $0xab0] sm:$0xff]
        %v575 = vld [vmem:[%s176 + $0xab8] sm:$0xff]
        %v576 = vld [vmem:[%s176 + $0xac0] sm:$0xff]
        %v577 = vld [vmem:[%s176 + $0xac8] sm:$0xff]
        %v578 = vld [vmem:[%s176 + $0xad0] sm:$0xff]
        %v579 = vld [vmem:[%s176 + $0xad8] sm:$0xff]
        %v580 = vld [vmem:[%s176 + $0xae0] sm:$0xff]
        %v581 = vld [vmem:[%s176 + $0xae8] sm:$0xff]
        %v582 = vld [vmem:[%s176 + $0xaf0] sm:$0xff]
        %v583 = vld [vmem:[%s176 + $0xaf8] sm:$0xff]
        %v584 = vld [vmem:[%s176 + $0xb00] sm:$0xff]
        %v585 = vld [vmem:[%s176 + $0xb08] sm:$0xff]
        %v586 = vld [vmem:[%s176 + $0xb10] sm:$0xff]
        %v587 = vld [vmem:[%s176 + $0xb18] sm:$0xff]
        %v588 = vld [vmem:[%s176 + $0xb20] sm:$0xff]
        %v589 = vld [vmem:[%s176 + $0xb28] sm:$0xff]
        %v590 = vld [vmem:[%s176 + $0xb30] sm:$0xff]
        %v591 = vld [vmem:[%s176 + $0xb38] sm:$0xff]
        %v592 = vld [vmem:[%s176 + $0xb40] sm:$0xff]
        %v593 = vld [vmem:[%s176 + $0xb48] sm:$0xff]
        %v594 = vld [vmem:[%s176 + $0xb50] sm:$0xff]
        %v595 = vld [vmem:[%s176 + $0xb58] sm:$0xff]
        %v596 = vld [vmem:[%s176 + $0xb60] sm:$0xff]
        %v597 = vld [vmem:[%s176 + $0xb68] sm:$0xff]
        %v598 = vld [vmem:[%s176 + $0xb70] sm:$0xff]
        %v599 = vld [vmem:[%s176 + $0xb78] sm:$0xff]
        %v600 = vld [vmem:[%s176 + $0xb80] sm:$0xff]
        %v601 = vld [vmem:[%s176 + $0xb88] sm:$0xff]
        %v602 = vld [vmem:[%s176 + $0xb90] sm:$0xff]
        %v603 = vld [vmem:[%s176 + $0xb98] sm:$0xff]
        %v604 = vld [vmem:[%s176 + $0xba0] sm:$0xff]
        %v605 = vld [vmem:[%s176 + $0xba8] sm:$0xff]
        %v606 = vld [vmem:[%s176 + $0xbb0] sm:$0xff]
        %v607 = vld [vmem:[%s176 + $0xbb8] sm:$0xff]
        %v608 = vld [vmem:[%s176 + $0xbc0] sm:$0xff]
        %v609 = vld [vmem:[%s176 + $0xbc8] sm:$0xff]
        %v610 = vld [vmem:[%s176 + $0xbd0] sm:$0xff]
        %v611 = vld [vmem:[%s176 + $0xbd8] sm:$0xff]
        %v612 = vld [vmem:[%s176 + $0xbe0] sm:$0xff]
        %v613 = vld [vmem:[%s176 + $0xbe8] sm:$0xff]
        %v614 = vld [vmem:[%s176 + $0xbf0] sm:$0xff]
        %v615 = vld [vmem:[%s176 + $0xbf8] sm:$0xff]
        %v616 = vld [vmem:[%s176 + $0xc00] sm:$0xff]
        %v617 = vld [vmem:[%s176 + $0xc08] sm:$0xff]
        %v618 = vld [vmem:[%s176 + $0xc10] sm:$0xff]
        %v619 = vld [vmem:[%s176 + $0xc18] sm:$0xff]
        %v620 = vld [vmem:[%s176 + $0xc20] sm:$0xff]
        %v621 = vld [vmem:[%s176 + $0xc28] sm:$0xff]
        %v622 = vld [vmem:[%s176 + $0xc30] sm:$0xff]
        %v623 = vld [vmem:[%s176 + $0xc38] sm:$0xff]
        %v624 = vld [vmem:[%s176 + $0xc40] sm:$0xff]
        %v625 = vld [vmem:[%s176 + $0xc48] sm:$0xff]
        %v626 = vld [vmem:[%s176 + $0xc50] sm:$0xff]
        %v627 = vld [vmem:[%s176 + $0xc58] sm:$0xff]
        %v628 = vld [vmem:[%s176 + $0xc60] sm:$0xff]
        %v629 = vld [vmem:[%s176 + $0xc68] sm:$0xff]
        %v630 = vld [vmem:[%s176 + $0xc70] sm:$0xff]
        %v631 = vld [vmem:[%s176 + $0xc78] sm:$0xff]
        %v632 = vld [vmem:[%s176 + $0xc80] sm:$0xff]
        %v633 = vld [vmem:[%s176 + $0xc88] sm:$0xff]
        %v634 = vld [vmem:[%s176 + $0xc90] sm:$0xff]
        %v635 = vld [vmem:[%s176 + $0xc98] sm:$0xff]
        %v636 = vld [vmem:[%s176 + $0xca0] sm:$0xff]
        %v637 = vld [vmem:[%s176 + $0xca8] sm:$0xff]
        %v638 = vld [vmem:[%s176 + $0xcb0] sm:$0xff]
        %v639 = vld [vmem:[%s176 + $0xcb8] sm:$0xff]
        %v640 = vld [vmem:[%s176 + $0xcc0] sm:$0xff]
        %v641 = vld [vmem:[%s176 + $0xcc8] sm:$0xff]
        %v642 = vld [vmem:[%s176 + $0xcd0] sm:$0xff]
        %v643 = vld [vmem:[%s176 + $0xcd8] sm:$0xff]
        %v644 = vld [vmem:[%s176 + $0xce0] sm:$0xff]
        %v645 = vld [vmem:[%s176 + $0xce8] sm:$0xff]
        %v646 = vld [vmem:[%s176 + $0xcf0] sm:$0xff]
        %v647 = vld [vmem:[%s176 + $0xcf8] sm:$0xff]
        %v648 = vld [vmem:[%s176 + $0xd00] sm:$0xff]
        %v649 = vld [vmem:[%s176 + $0xd08] sm:$0xff]
        %v650 = vld [vmem:[%s176 + $0xd10] sm:$0xff]
        %v651 = vld [vmem:[%s176 + $0xd18] sm:$0xff]
        %v652 = vld [vmem:[%s176 + $0xd20] sm:$0xff]
        %v653 = vld [vmem:[%s176 + $0xd28] sm:$0xff]
        %v654 = vld [vmem:[%s176 + $0xd30] sm:$0xff]
        %v655 = vld [vmem:[%s176 + $0xd38] sm:$0xff]
        %v656 = vld [vmem:[%s176 + $0xd40] sm:$0xff]
        %v657 = vld [vmem:[%s176 + $0xd48] sm:$0xff]
        %v658 = vld [vmem:[%s176 + $0xd50] sm:$0xff]
        %v659 = vld [vmem:[%s176 + $0xd58] sm:$0xff]
        %v660 = vld [vmem:[%s176 + $0xd60] sm:$0xff]
        %v661 = vld [vmem:[%s176 + $0xd68] sm:$0xff]
        %v662 = vld [vmem:[%s176 + $0xd70] sm:$0xff]
        %v663 = vld [vmem:[%s176 + $0xd78] sm:$0xff]
        %v664 = vld [vmem:[%s176 + $0xd80] sm:$0xff]
        %v665 = vld [vmem:[%s176 + $0xd88] sm:$0xff]
        %v666 = vld [vmem:[%s176 + $0xd90] sm:$0xff]
        %v667 = vld [vmem:[%s176 + $0xd98] sm:$0xff]
        %v668 = vld [vmem:[%s176 + $0xda0] sm:$0xff]
        %v669 = vld [vmem:[%s176 + $0xda8] sm:$0xff]
        %v670 = vld [vmem:[%s176 + $0xdb0] sm:$0xff]
        %v671 = vld [vmem:[%s176 + $0xdb8] sm:$0xff]
        %v672 = vld [vmem:[%s176 + $0xdc0] sm:$0xff]
        %v673 = vld [vmem:[%s176 + $0xdc8] sm:$0xff]
        %v674 = vld [vmem:[%s176 + $0xdd0] sm:$0xff]
        %v675 = vld [vmem:[%s176 + $0xdd8] sm:$0xff]
        %v676 = vld [vmem:[%s176 + $0xde0] sm:$0xff]
        %v677 = vld [vmem:[%s176 + $0xde8] sm:$0xff]
        %v678 = vld [vmem:[%s176 + $0xdf0] sm:$0xff]
        %v679 = vld [vmem:[%s176 + $0xdf8] sm:$0xff]
        %v680 = vld [vmem:[%s176 + $0xe00] sm:$0xff]
        %v681 = vld [vmem:[%s176 + $0xe08] sm:$0xff]
        %v682 = vld [vmem:[%s176 + $0xe10] sm:$0xff]
        %v683 = vld [vmem:[%s176 + $0xe18] sm:$0xff]
        %v684 = vld [vmem:[%s176 + $0xe20] sm:$0xff]
        %v685 = vld [vmem:[%s176 + $0xe28] sm:$0xff]
        %v686 = vld [vmem:[%s176 + $0xe30] sm:$0xff]
        %v687 = vld [vmem:[%s176 + $0xe38] sm:$0xff]
        %v688 = vld [vmem:[%s176 + $0xe40] sm:$0xff]
        %v689 = vld [vmem:[%s176 + $0xe48] sm:$0xff]
        %v690 = vld [vmem:[%s176 + $0xe50] sm:$0xff]
        %v691 = vld [vmem:[%s176 + $0xe58] sm:$0xff]
        %v692 = vld [vmem:[%s176 + $0xe60] sm:$0xff]
        %v693 = vld [vmem:[%s176 + $0xe68] sm:$0xff]
        %v694 = vld [vmem:[%s176 + $0xe70] sm:$0xff]
        %v695 = vld [vmem:[%s176 + $0xe78] sm:$0xff]
        %v696 = vld [vmem:[%s176 + $0xe80] sm:$0xff]
        %v697 = vld [vmem:[%s176 + $0xe88] sm:$0xff]
        %v698 = vld [vmem:[%s176 + $0xe90] sm:$0xff]
        %v699 = vld [vmem:[%s176 + $0xe98] sm:$0xff]
        %v700 = vld [vmem:[%s176 + $0xea0] sm:$0xff]
        %v701 = vld [vmem:[%s176 + $0xea8] sm:$0xff]
        %v702 = vld [vmem:[%s176 + $0xeb0] sm:$0xff]
        %v703 = vld [vmem:[%s176 + $0xeb8] sm:$0xff]
        %v704 = vld [vmem:[%s176 + $0xec0] sm:$0xff]
        %v705 = vld [vmem:[%s176 + $0xec8] sm:$0xff]
        %v706 = vld [vmem:[%s176 + $0xed0] sm:$0xff]
        %v707 = vld [vmem:[%s176 + $0xed8] sm:$0xff]
        %v708 = vld [vmem:[%s176 + $0xee0] sm:$0xff]
        %v709 = vld [vmem:[%s176 + $0xee8] sm:$0xff]
        %v710 = vld [vmem:[%s176 + $0xef0] sm:$0xff]
        %v711 = vld [vmem:[%s176 + $0xef8] sm:$0xff]
        %v712 = vld [vmem:[%s176 + $0xf00] sm:$0xff]
        %v713 = vld [vmem:[%s176 + $0xf08] sm:$0xff]
        %v714 = vld [vmem:[%s176 + $0xf10] sm:$0xff]
        %v715 = vld [vmem:[%s176 + $0xf18] sm:$0xff]
        %v716 = vld [vmem:[%s176 + $0xf20] sm:$0xff]
        %v717 = vld [vmem:[%s176 + $0xf28] sm:$0xff]
        %v718 = vld [vmem:[%s176 + $0xf30] sm:$0xff]
        %v719 = vld [vmem:[%s176 + $0xf38] sm:$0xff]
        %v720 = vld [vmem:[%s176 + $0xf40] sm:$0xff]
        %v721 = vld [vmem:[%s176 + $0xf48] sm:$0xff]
        %v722 = vld [vmem:[%s176 + $0xf50] sm:$0xff]
        %v723 = vld [vmem:[%s176 + $0xf58] sm:$0xff]
        %v724 = vld [vmem:[%s176 + $0xf60] sm:$0xff]
        %v725 = vld [vmem:[%s176 + $0xf68] sm:$0xff]
        %v726 = vld [vmem:[%s176 + $0xf70] sm:$0xff]
        %v727 = vld [vmem:[%s176 + $0xf78] sm:$0xff]
        %v728 = vld [vmem:[%s176 + $0xf80] sm:$0xff]
        %v729 = vld [vmem:[%s176 + $0xf88] sm:$0xff]
        %v730 = vld [vmem:[%s176 + $0xf90] sm:$0xff]
        %v731 = vld [vmem:[%s176 + $0xf98] sm:$0xff]
        %v732 = vld [vmem:[%s176 + $0xfa0] sm:$0xff]
        %v733 = vld [vmem:[%s176 + $0xfa8] sm:$0xff]
        %v734 = vld [vmem:[%s176 + $0xfb0] sm:$0xff]
        %v735 = vld [vmem:[%s176 + $0xfb8] sm:$0xff]
        %v736 = vld [vmem:[%s176 + $0xfc0] sm:$0xff]
        %v737 = vld [vmem:[%s176 + $0xfc8] sm:$0xff]
        %v738 = vld [vmem:[%s176 + $0xfd0] sm:$0xff]
        %v739 = vld [vmem:[%s176 + $0xfd8] sm:$0xff]
        %v740 = vld [vmem:[%s176 + $0xfe0] sm:$0xff]
        %v741 = vld [vmem:[%s176 + $0xfe8] sm:$0xff]
        %v742 = vld [vmem:[%s176 + $0xff0] sm:$0xff]
        %v743 = vld [vmem:[%s176 + $0xff8] sm:$0xff]
        %v744 = vld [vmem:[%s176 + $0x1000] sm:$0xff]
        %v745 = vld [vmem:[%s176 + $0x1008] sm:$0xff]
        %v746 = vld [vmem:[%s176 + $0x1010] sm:$0xff]
        %v747 = vld [vmem:[%s176 + $0x1018] sm:$0xff]
        %v748 = vld [vmem:[%s176 + $0x1020] sm:$0xff]
        %v749 = vld [vmem:[%s176 + $0x1028] sm:$0xff]
        %v750 = vld [vmem:[%s176 + $0x1030] sm:$0xff]
        %v751 = vld [vmem:[%s176 + $0x1038] sm:$0xff]
        %v752 = vld [vmem:[%s176 + $0x1040] sm:$0xff]
        %v753 = vld [vmem:[%s176 + $0x1048] sm:$0xff]
        %v754 = vld [vmem:[%s176 + $0x1050] sm:$0xff]
        %v755 = vld [vmem:[%s176 + $0x1058] sm:$0xff]
        %v756 = vld [vmem:[%s176 + $0x1060] sm:$0xff]
        %v757 = vld [vmem:[%s176 + $0x1068] sm:$0xff]
        %v758 = vld [vmem:[%s176 + $0x1070] sm:$0xff]
        %v759 = vld [vmem:[%s176 + $0x1078] sm:$0xff]
        %v760 = vld [vmem:[%s176 + $0x1080] sm:$0xff]
        %v761 = vld [vmem:[%s176 + $0x1088] sm:$0xff]
        %v762 = vld [vmem:[%s176 + $0x1090] sm:$0xff]
        %v763 = vld [vmem:[%s176 + $0x1098] sm:$0xff]
        %v764 = vld [vmem:[%s176 + $0x10a0] sm:$0xff]
        %v765 = vld [vmem:[%s176 + $0x10a8] sm:$0xff]
        %v766 = vld [vmem:[%s176 + $0x10b0] sm:$0xff]
        %v767 = vld [vmem:[%s176 + $0x10b8] sm:$0xff]
        %v768 = vld [vmem:[%s176 + $0x10c0] sm:$0xff]
        %v769 = vld [vmem:[%s176 + $0x10c8] sm:$0xff]
        %v770 = vld [vmem:[%s176 + $0x10d0] sm:$0xff]
        %v771 = vld [vmem:[%s176 + $0x10d8] sm:$0xff]
        %v772 = vld [vmem:[%s176 + $0x10e0] sm:$0xff]
        %v773 = vld [vmem:[%s176 + $0x10e8] sm:$0xff]
        %v774 = vld [vmem:[%s176 + $0x10f0] sm:$0xff]
        %v775 = vld [vmem:[%s176 + $0x10f8] sm:$0xff]
        %v776 = vld [vmem:[%s176 + $0x1100] sm:$0xff]
        %v777 = vld [vmem:[%s176 + $0x1108] sm:$0xff]
        %v778 = vld [vmem:[%s176 + $0x1110] sm:$0xff]
        %v779 = vld [vmem:[%s176 + $0x1118] sm:$0xff]
        %v780 = vld [vmem:[%s176 + $0x1120] sm:$0xff]
        %v781 = vld [vmem:[%s176 + $0x1128] sm:$0xff]
        %v782 = vld [vmem:[%s176 + $0x1130] sm:$0xff]
        %v783 = vld [vmem:[%s176 + $0x1138] sm:$0xff]
        %v784 = vld [vmem:[%s176 + $0x1140] sm:$0xff]
        %v785 = vld [vmem:[%s176 + $0x1148] sm:$0xff]
        %v786 = vld [vmem:[%s176 + $0x1150] sm:$0xff]
        %v787 = vld [vmem:[%s176 + $0x1158] sm:$0xff]
        %v788 = vld [vmem:[%s176 + $0x1160] sm:$0xff]
        %v789 = vld [vmem:[%s176 + $0x1168] sm:$0xff]
        %v790 = vld [vmem:[%s176 + $0x1170] sm:$0xff]
        %v791 = vld [vmem:[%s176 + $0x1178] sm:$0xff]
        %v792 = vld [vmem:[%s176 + $0x1180] sm:$0xff]
        %v793 = vld [vmem:[%s176 + $0x1188] sm:$0xff]
        %v794 = vld [vmem:[%s176 + $0x1190] sm:$0xff]
        %v795 = vld [vmem:[%s176 + $0x1198] sm:$0xff]
        %v796 = vld [vmem:[%s176 + $0x11a0] sm:$0xff]
        %v797 = vld [vmem:[%s176 + $0x11a8] sm:$0xff]
        %v798 = vld [vmem:[%s176 + $0x11b0] sm:$0xff]
        %v799 = vld [vmem:[%s176 + $0x11b8] sm:$0xff]
        %v800 = vld [vmem:[%s176 + $0x11c0] sm:$0xff]
        %v801 = vld [vmem:[%s176 + $0x11c8] sm:$0xff]
        %v802 = vld [vmem:[%s176 + $0x11d0] sm:$0xff]
        %v803 = vld [vmem:[%s176 + $0x11d8] sm:$0xff]
        %v804 = vld [vmem:[%s176 + $0x11e0] sm:$0xff]
        %v805 = vld [vmem:[%s176 + $0x11e8] sm:$0xff]
        %v806 = vld [vmem:[%s176 + $0x11f0] sm:$0xff]
        %v807 = vld [vmem:[%s176 + $0x11f8] sm:$0xff]
        %v808 = vld [vmem:[%s176 + $0x1200] sm:$0xff]
        %v809 = vld [vmem:[%s176 + $0x1208] sm:$0xff]
        %v810 = vld [vmem:[%s176 + $0x1210] sm:$0xff]
        %v811 = vld [vmem:[%s176 + $0x1218] sm:$0xff]
        %v812 = vld [vmem:[%s176 + $0x1220] sm:$0xff]
        %v813 = vld [vmem:[%s176 + $0x1228] sm:$0xff]
        %v814 = vld [vmem:[%s176 + $0x1230] sm:$0xff]
        %v815 = vld [vmem:[%s176 + $0x1238] sm:$0xff]
        %v816 = vld [vmem:[%s176 + $0x1240] sm:$0xff]
        %v817 = vld [vmem:[%s176 + $0x1248] sm:$0xff]
        %v818 = vld [vmem:[%s176 + $0x1250] sm:$0xff]
        %v819 = vld [vmem:[%s176 + $0x1258] sm:$0xff]
        %v820 = vld [vmem:[%s176 + $0x1260] sm:$0xff]
        %v821 = vld [vmem:[%s176 + $0x1268] sm:$0xff]
        %v822 = vld [vmem:[%s176 + $0x1270] sm:$0xff]
        %v823 = vld [vmem:[%s176 + $0x1278] sm:$0xff]
        %v824 = vld [vmem:[%s176 + $0x1280] sm:$0xff]
        %v825 = vld [vmem:[%s176 + $0x1288] sm:$0xff]
        %v826 = vld [vmem:[%s176 + $0x1290] sm:$0xff]
        %v827 = vld [vmem:[%s176 + $0x1298] sm:$0xff]
        %v828 = vld [vmem:[%s176 + $0x12a0] sm:$0xff]
        %v829 = vld [vmem:[%s176 + $0x12a8] sm:$0xff]
        %v830 = vld [vmem:[%s176 + $0x12b0] sm:$0xff]
        %v831 = vld [vmem:[%s176 + $0x12b8] sm:$0xff]
        %v832 = vld [vmem:[%s176 + $0x12c0] sm:$0xff]
        %v833 = vld [vmem:[%s176 + $0x12c8] sm:$0xff]
        %v834 = vld [vmem:[%s176 + $0x12d0] sm:$0xff]
        %v835 = vld [vmem:[%s176 + $0x12d8] sm:$0xff]
        %v836 = vld [vmem:[%s176 + $0x12e0] sm:$0xff]
        %v837 = vld [vmem:[%s176 + $0x12e8] sm:$0xff]
        %v838 = vld [vmem:[%s176 + $0x12f0] sm:$0xff]
        %v839 = vld [vmem:[%s176 + $0x12f8] sm:$0xff]
        %v840 = vld [vmem:[%s176 + $0x1300] sm:$0xff]
        %v841 = vld [vmem:[%s176 + $0x1308] sm:$0xff]
        %v842 = vld [vmem:[%s176 + $0x1310] sm:$0xff]
        %v843 = vld [vmem:[%s176 + $0x1318] sm:$0xff]
        %v844 = vld [vmem:[%s176 + $0x1320] sm:$0xff]
        %v845 = vld [vmem:[%s176 + $0x1328] sm:$0xff]
        %v846 = vld [vmem:[%s176 + $0x1330] sm:$0xff]
        %v847 = vld [vmem:[%s176 + $0x1338] sm:$0xff]
        %v848 = vld [vmem:[%s176 + $0x1340] sm:$0xff]
        %v849 = vld [vmem:[%s176 + $0x1348] sm:$0xff]
        %v850 = vld [vmem:[%s176 + $0x1350] sm:$0xff]
        %v851 = vld [vmem:[%s176 + $0x1358] sm:$0xff]
        %v852 = vld [vmem:[%s176 + $0x1360] sm:$0xff]
        %v853 = vld [vmem:[%s176 + $0x1368] sm:$0xff]
        %v854 = vld [vmem:[%s176 + $0x1370] sm:$0xff]
        %v855 = vld [vmem:[%s176 + $0x1378] sm:$0xff]
        %v856 = vld [vmem:[%s176 + $0x1380] sm:$0xff]
        %v857 = vld [vmem:[%s176 + $0x1388] sm:$0xff]
        %v858 = vld [vmem:[%s176 + $0x1390] sm:$0xff]
        %v859 = vld [vmem:[%s176 + $0x1398] sm:$0xff]
        %v860 = vld [vmem:[%s176 + $0x13a0] sm:$0xff]
        %v861 = vld [vmem:[%s176 + $0x13a8] sm:$0xff]
        %v862 = vld [vmem:[%s176 + $0x13b0] sm:$0xff]
        %v863 = vld [vmem:[%s176 + $0x13b8] sm:$0xff]
        %v864 = vld [vmem:[%s176 + $0x13c0] sm:$0xff]
        %v865 = vld [vmem:[%s176 + $0x13c8] sm:$0xff]
        %v866 = vld [vmem:[%s176 + $0x13d0] sm:$0xff]
        %v867 = vld [vmem:[%s176 + $0x13d8] sm:$0xff]
        %v868 = vld [vmem:[%s176 + $0x13e0] sm:$0xff]
        %v869 = vld [vmem:[%s176 + $0x13e8] sm:$0xff]
        %v870 = vld [vmem:[%s176 + $0x13f0] sm:$0xff]
        %v871 = vld [vmem:[%s176 + $0x13f8] sm:$0xff]
        %v872 = vld [vmem:[%s176 + $0x1400] sm:$0xff]
        %v873 = vld [vmem:[%s176 + $0x1408] sm:$0xff]
        %v874 = vld [vmem:[%s176 + $0x1410] sm:$0xff]
        %v875 = vld [vmem:[%s176 + $0x1418] sm:$0xff]
        %v876 = vld [vmem:[%s176 + $0x1420] sm:$0xff]
        %v877 = vld [vmem:[%s176 + $0x1428] sm:$0xff]
        %v878 = vld [vmem:[%s176 + $0x1430] sm:$0xff]
        %v879 = vld [vmem:[%s176 + $0x1438] sm:$0xff]
        %v880 = vld [vmem:[%s176 + $0x1440] sm:$0xff]
        %v881 = vld [vmem:[%s176 + $0x1448] sm:$0xff]
        %v882 = vld [vmem:[%s176 + $0x1450] sm:$0xff]
        %v883 = vld [vmem:[%s176 + $0x1458] sm:$0xff]
        %v884 = vld [vmem:[%s176 + $0x1460] sm:$0xff]
        %v885 = vld [vmem:[%s176 + $0x1468] sm:$0xff]
        %v886 = vld [vmem:[%s176 + $0x1470] sm:$0xff]
        %v887 = vld [vmem:[%s176 + $0x1478] sm:$0xff]
        %v888 = vld [vmem:[%s176 + $0x1480] sm:$0xff]
        %v889 = vld [vmem:[%s176 + $0x1488] sm:$0xff]
        %v890 = vld [vmem:[%s176 + $0x1490] sm:$0xff]
        %v891 = vld [vmem:[%s176 + $0x1498] sm:$0xff]
        %v892 = vld [vmem:[%s176 + $0x14a0] sm:$0xff]
        %v893 = vld [vmem:[%s176 + $0x14a8] sm:$0xff]
        %v894 = vld [vmem:[%s176 + $0x14b0] sm:$0xff]
        %v895 = vld [vmem:[%s176 + $0x14b8] sm:$0xff]
        %v896 = vld [vmem:[%s176 + $0x14c0] sm:$0xff]
        %v897 = vld [vmem:[%s176 + $0x14c8] sm:$0xff]
        %v898 = vld [vmem:[%s176 + $0x14d0] sm:$0xff]
        %v899 = vld [vmem:[%s176 + $0x14d8] sm:$0xff]
        %v900 = vld [vmem:[%s176 + $0x14e0] sm:$0xff]
        %v901 = vld [vmem:[%s176 + $0x14e8] sm:$0xff]
        %v902 = vld [vmem:[%s176 + $0x14f0] sm:$0xff]
        %v903 = vld [vmem:[%s176 + $0x14f8] sm:$0xff]
        %v904 = vld [vmem:[%s176 + $0x1500] sm:$0xff]
        %v905 = vld [vmem:[%s176 + $0x1508] sm:$0xff]
        %v906 = vld [vmem:[%s176 + $0x1510] sm:$0xff]
        %v907 = vld [vmem:[%s176 + $0x1518] sm:$0xff]
        %v908 = vld [vmem:[%s176 + $0x1520] sm:$0xff]
        %v909 = vld [vmem:[%s176 + $0x1528] sm:$0xff]
        %v910 = vld [vmem:[%s176 + $0x1530] sm:$0xff]
        %v911 = vld [vmem:[%s176 + $0x1538] sm:$0xff]
        %v912 = vld [vmem:[%s176 + $0x1540] sm:$0xff]
        %v913 = vld [vmem:[%s176 + $0x1548] sm:$0xff]
        %v914 = vld [vmem:[%s176 + $0x1550] sm:$0xff]
        %v915 = vld [vmem:[%s176 + $0x1558] sm:$0xff]
        %v916 = vld [vmem:[%s176 + $0x1560] sm:$0xff]
        %v917 = vld [vmem:[%s176 + $0x1568] sm:$0xff]
        %v918 = vld [vmem:[%s176 + $0x1570] sm:$0xff]
        %v919 = vld [vmem:[%s176 + $0x1578] sm:$0xff]
        %v920 = vld [vmem:[%s176 + $0x1580] sm:$0xff]
        %v921 = vld [vmem:[%s176 + $0x1588] sm:$0xff]
        %v922 = vld [vmem:[%s176 + $0x1590] sm:$0xff]
        %v923 = vld [vmem:[%s176 + $0x1598] sm:$0xff]
        %v924 = vld [vmem:[%s176 + $0x15a0] sm:$0xff]
        %v925 = vld [vmem:[%s176 + $0x15a8] sm:$0xff]
        %v926 = vld [vmem:[%s176 + $0x15b0] sm:$0xff]
        %v927 = vld [vmem:[%s176 + $0x15b8] sm:$0xff]
        %v928 = vld [vmem:[%s176 + $0x15c0] sm:$0xff]
        %v929 = vld [vmem:[%s176 + $0x15c8] sm:$0xff]
        %v930 = vld [vmem:[%s176 + $0x15d0] sm:$0xff]
        %v931 = vld [vmem:[%s176 + $0x15d8] sm:$0xff]
        %v932 = vld [vmem:[%s176 + $0x15e0] sm:$0xff]
        %v933 = vld [vmem:[%s176 + $0x15e8] sm:$0xff]
        %v934 = vld [vmem:[%s176 + $0x15f0] sm:$0xff]
        %v935 = vld [vmem:[%s176 + $0x15f8] sm:$0xff]
        %v936 = vld [vmem:[%s176 + $0x1600] sm:$0xff]
        %v937 = vld [vmem:[%s176 + $0x1608] sm:$0xff]
        %v938 = vld [vmem:[%s176 + $0x1610] sm:$0xff]
        %v939 = vld [vmem:[%s176 + $0x1618] sm:$0xff]
        %v940 = vld [vmem:[%s176 + $0x1620] sm:$0xff]
        %v941 = vld [vmem:[%s176 + $0x1628] sm:$0xff]
        %v942 = vld [vmem:[%s176 + $0x1630] sm:$0xff]
        %v943 = vld [vmem:[%s176 + $0x1638] sm:$0xff]
        %v944 = vld [vmem:[%s176 + $0x1640] sm:$0xff]
        %v945 = vld [vmem:[%s176 + $0x1648] sm:$0xff]
        %v946 = vld [vmem:[%s176 + $0x1650] sm:$0xff]
        %v947 = vld [vmem:[%s176 + $0x1658] sm:$0xff]
        %v948 = vld [vmem:[%s176 + $0x1660] sm:$0xff]
        %v949 = vld [vmem:[%s176 + $0x1668] sm:$0xff]
        %v950 = vld [vmem:[%s176 + $0x1670] sm:$0xff]
        %v951 = vld [vmem:[%s176 + $0x1678] sm:$0xff]
        %v952 = vld [vmem:[%s176 + $0x1680] sm:$0xff]
        %v953 = vld [vmem:[%s176 + $0x1688] sm:$0xff]
        %v954 = vld [vmem:[%s176 + $0x1690] sm:$0xff]
        %v955 = vld [vmem:[%s176 + $0x1698] sm:$0xff]
        %v956 = vld [vmem:[%s176 + $0x16a0] sm:$0xff]
        %v957 = vld [vmem:[%s176 + $0x16a8] sm:$0xff]
        %v958 = vld [vmem:[%s176 + $0x16b0] sm:$0xff]
        %v959 = vld [vmem:[%s176 + $0x16b8] sm:$0xff]
        %v960 = vld [vmem:[%s176 + $0x16c0] sm:$0xff]
        %v961 = vld [vmem:[%s176 + $0x16c8] sm:$0xff]
        %v962 = vld [vmem:[%s176 + $0x16d0] sm:$0xff]
        %v963 = vld [vmem:[%s176 + $0x16d8] sm:$0xff]
        %v964 = vld [vmem:[%s176 + $0x16e0] sm:$0xff]
        %v965 = vld [vmem:[%s176 + $0x16e8] sm:$0xff]
        %v966 = vld [vmem:[%s176 + $0x16f0] sm:$0xff]
        %v967 = vld [vmem:[%s176 + $0x16f8] sm:$0xff]
        %v968 = vld [vmem:[%s176 + $0x1700] sm:$0xff]
        %v969 = vld [vmem:[%s176 + $0x1708] sm:$0xff]
        %v970 = vld [vmem:[%s176 + $0x1710] sm:$0xff]
        %v971 = vld [vmem:[%s176 + $0x1718] sm:$0xff]
        %v972 = vld [vmem:[%s176 + $0x1720] sm:$0xff]
        %v973 = vld [vmem:[%s176 + $0x1728] sm:$0xff]
        %v974 = vld [vmem:[%s176 + $0x1730] sm:$0xff]
        %v975 = vld [vmem:[%s176 + $0x1738] sm:$0xff]
        %v976 = vld [vmem:[%s176 + $0x1740] sm:$0xff]
        %v977 = vld [vmem:[%s176 + $0x1748] sm:$0xff]
        %v978 = vld [vmem:[%s176 + $0x1750] sm:$0xff]
        %v979 = vld [vmem:[%s176 + $0x1758] sm:$0xff]
        %v980 = vld [vmem:[%s176 + $0x1760] sm:$0xff]
        %v981 = vld [vmem:[%s176 + $0x1768] sm:$0xff]
        %v982 = vld [vmem:[%s176 + $0x1770] sm:$0xff]
        %v983 = vld [vmem:[%s176 + $0x1778] sm:$0xff]
        %v984 = vld [vmem:[%s176 + $0x1780] sm:$0xff]
        %v985 = vld [vmem:[%s176 + $0x1788] sm:$0xff]
        %v986 = vld [vmem:[%s176 + $0x1790] sm:$0xff]
        %v987 = vld [vmem:[%s176 + $0x1798] sm:$0xff]
        %v988 = vld [vmem:[%s176 + $0x17a0] sm:$0xff]
        %v989 = vld [vmem:[%s176 + $0x17a8] sm:$0xff]
        %v990 = vld [vmem:[%s176 + $0x17b0] sm:$0xff]
        %v991 = vld [vmem:[%s176 + $0x17b8] sm:$0xff]
        %v992 = vld [vmem:[%s176 + $0x17c0] sm:$0xff]
        %v993 = vld [vmem:[%s176 + $0x17c8] sm:$0xff]
        %v994 = vld [vmem:[%s176 + $0x17d0] sm:$0xff]
        %v995 = vld [vmem:[%s176 + $0x17d8] sm:$0xff]
        %v996 = vld [vmem:[%s176 + $0x17e0] sm:$0xff]
        %v997 = vld [vmem:[%s176 + $0x17e8] sm:$0xff]
        %v998 = vld [vmem:[%s176 + $0x17f0] sm:$0xff]
        %v999 = vld [vmem:[%s176 + $0x17f8] sm:$0xff]
        %v1000 = vld [vmem:[%s176 + $0x1800] sm:$0xff]
        %v1001 = vld [vmem:[%s176 + $0x1808] sm:$0xff]
        %v1002 = vld [vmem:[%s176 + $0x1810] sm:$0xff]
        %v1003 = vld [vmem:[%s176 + $0x1818] sm:$0xff]
        %v1004 = vld [vmem:[%s176 + $0x1820] sm:$0xff]
        %v1005 = vld [vmem:[%s176 + $0x1828] sm:$0xff]
        %v1006 = vld [vmem:[%s176 + $0x1830] sm:$0xff]
        %v1007 = vld [vmem:[%s176 + $0x1838] sm:$0xff]
        %v1008 = vld [vmem:[%s176 + $0x1840] sm:$0xff]
        %v1009 = vld [vmem:[%s176 + $0x1848] sm:$0xff]
        %v1010 = vld [vmem:[%s176 + $0x1850] sm:$0xff]
        %v1011 = vld [vmem:[%s176 + $0x1858] sm:$0xff]
        %v1012 = vld [vmem:[%s176 + $0x1860] sm:$0xff]
        %v1013 = vld [vmem:[%s176 + $0x1868] sm:$0xff]
        %v1014 = vld [vmem:[%s176 + $0x1870] sm:$0xff]
        %v1015 = vld [vmem:[%s176 + $0x1878] sm:$0xff]
        %v1016 = vld [vmem:[%s176 + $0x1880] sm:$0xff]
        %v1017 = vld [vmem:[%s176 + $0x1888] sm:$0xff]
        %v1018 = vld [vmem:[%s176 + $0x1890] sm:$0xff]
        %v1019 = vld [vmem:[%s176 + $0x1898] sm:$0xff]
        %v1020 = vld [vmem:[%s176 + $0x18a0] sm:$0xff]
        %v1021 = vld [vmem:[%s176 + $0x18a8] sm:$0xff]
        %v1022 = vld [vmem:[%s176 + $0x18b0] sm:$0xff]
        %v1023 = vld [vmem:[%s176 + $0x18b8] sm:$0xff]
        %v1024 = vld [vmem:[%s176 + $0x18c0] sm:$0xff]
        %v1025 = vld [vmem:[%s176 + $0x18c8] sm:$0xff]
        %v1026 = vld [vmem:[%s176 + $0x18d0] sm:$0xff]
        %v1027 = vld [vmem:[%s176 + $0x18d8] sm:$0xff]
        %v1028 = vld [vmem:[%s176 + $0x18e0] sm:$0xff]
        %v1029 = vld [vmem:[%s176 + $0x18e8] sm:$0xff]
        %v1030 = vld [vmem:[%s176 + $0x18f0] sm:$0xff]
        %v1031 = vld [vmem:[%s176 + $0x18f8] sm:$0xff]
        %v1032 = vld [vmem:[%s176 + $0x1900] sm:$0xff]
        %v1033 = vld [vmem:[%s176 + $0x1908] sm:$0xff]
        %v1034 = vld [vmem:[%s176 + $0x1910] sm:$0xff]
        %v1035 = vld [vmem:[%s176 + $0x1918] sm:$0xff]
        %v1036 = vld [vmem:[%s176 + $0x1920] sm:$0xff]
        %v1037 = vld [vmem:[%s176 + $0x1928] sm:$0xff]
        %v1038 = vld [vmem:[%s176 + $0x1930] sm:$0xff]
        %v1039 = vld [vmem:[%s176 + $0x1938] sm:$0xff]
        %v1040 = vld [vmem:[%s176 + $0x1940] sm:$0xff]
        %v1041 = vld [vmem:[%s176 + $0x1948] sm:$0xff]
        %v1042 = vld [vmem:[%s176 + $0x1950] sm:$0xff]
        %v1043 = vld [vmem:[%s176 + $0x1958] sm:$0xff]
        %v1044 = vld [vmem:[%s176 + $0x1960] sm:$0xff]
        %v1045 = vld [vmem:[%s176 + $0x1968] sm:$0xff]
        %v1046 = vld [vmem:[%s176 + $0x1970] sm:$0xff]
        %v1047 = vld [vmem:[%s176 + $0x1978] sm:$0xff]
        %v1048 = vld [vmem:[%s176 + $0x1980] sm:$0xff]
        %v1049 = vld [vmem:[%s176 + $0x1988] sm:$0xff]
        %v1050 = vld [vmem:[%s176 + $0x1990] sm:$0xff]
        %v1051 = vld [vmem:[%s176 + $0x1998] sm:$0xff]
        %v1052 = vld [vmem:[%s176 + $0x19a0] sm:$0xff]
        %v1053 = vld [vmem:[%s176 + $0x19a8] sm:$0xff]
        %v1054 = vld [vmem:[%s176 + $0x19b0] sm:$0xff]
        %v1055 = vld [vmem:[%s176 + $0x19b8] sm:$0xff]
        %v1056 = vld [vmem:[%s176 + $0x19c0] sm:$0xff]
        %v1057 = vld [vmem:[%s176 + $0x19c8] sm:$0xff]
        %v1058 = vld [vmem:[%s176 + $0x19d0] sm:$0xff]
        %v1059 = vld [vmem:[%s176 + $0x19d8] sm:$0xff]
        %v1060 = vld [vmem:[%s176 + $0x19e0] sm:$0xff]
        %v1061 = vld [vmem:[%s176 + $0x19e8] sm:$0xff]
        %v1062 = vld [vmem:[%s176 + $0x19f0] sm:$0xff]
        %v1063 = vld [vmem:[%s176 + $0x19f8] sm:$0xff]
        %v1064 = vld [vmem:[%s176 + $0x1a00] sm:$0xff]
        %v1065 = vld [vmem:[%s176 + $0x1a08] sm:$0xff]
        %v1066 = vld [vmem:[%s176 + $0x1a10] sm:$0xff]
        %v1067 = vld [vmem:[%s176 + $0x1a18] sm:$0xff]
        %v1068 = vld [vmem:[%s176 + $0x1a20] sm:$0xff]
        %v1069 = vld [vmem:[%s176 + $0x1a28] sm:$0xff]
        %v1070 = vld [vmem:[%s176 + $0x1a30] sm:$0xff]
        %v1071 = vld [vmem:[%s176 + $0x1a38] sm:$0xff]
        %v1072 = vld [vmem:[%s176 + $0x1a40] sm:$0xff]
        %v1073 = vld [vmem:[%s176 + $0x1a48] sm:$0xff]
        %v1074 = vld [vmem:[%s176 + $0x1a50] sm:$0xff]
        %v1075 = vld [vmem:[%s176 + $0x1a58] sm:$0xff]
        %v1076 = vld [vmem:[%s176 + $0x1a60] sm:$0xff]
        %v1077 = vld [vmem:[%s176 + $0x1a68] sm:$0xff]
        %v1078 = vld [vmem:[%s176 + $0x1a70] sm:$0xff]
        %v1079 = vld [vmem:[%s176 + $0x1a78] sm:$0xff]
        %v1080 = vld [vmem:[%s176 + $0x1a80] sm:$0xff]
        %v1081 = vld [vmem:[%s176 + $0x1a88] sm:$0xff]
        %v1082 = vld [vmem:[%s176 + $0x1a90] sm:$0xff]
        %v1083 = vld [vmem:[%s176 + $0x1a98] sm:$0xff]
        %v1084 = vld [vmem:[%s176 + $0x1aa0] sm:$0xff]
        %v1085 = vld [vmem:[%s176 + $0x1aa8] sm:$0xff]
        %v1086 = vld [vmem:[%s176 + $0x1ab0] sm:$0xff]
        %v1087 = vld [vmem:[%s176 + $0x1ab8] sm:$0xff]
        %v1088 = vld [vmem:[%s176 + $0x1ac0] sm:$0xff]
        %v1089 = vld [vmem:[%s176 + $0x1ac8] sm:$0xff]
        %v1090 = vld [vmem:[%s176 + $0x1ad0] sm:$0xff]
        %v1091 = vld [vmem:[%s176 + $0x1ad8] sm:$0xff]
        %v1092 = vld [vmem:[%s176 + $0x1ae0] sm:$0xff]
        %v1093 = vld [vmem:[%s176 + $0x1ae8] sm:$0xff]
        %v1094 = vld [vmem:[%s176 + $0x1af0] sm:$0xff]
        %v1095 = vld [vmem:[%s176 + $0x1af8] sm:$0xff]
        %v1096 = vld [vmem:[%s176 + $0x1b00] sm:$0xff]
        %v1097 = vld [vmem:[%s176 + $0x1b08] sm:$0xff]
        %v1098 = vld [vmem:[%s176 + $0x1b10] sm:$0xff]
        %v1099 = vld [vmem:[%s176 + $0x1b18] sm:$0xff]
        %v1100 = vld [vmem:[%s176 + $0x1b20] sm:$0xff]
        %v1101 = vld [vmem:[%s176 + $0x1b28] sm:$0xff]
        %v1102 = vld [vmem:[%s176 + $0x1b30] sm:$0xff]
        %v1103 = vld [vmem:[%s176 + $0x1b38] sm:$0xff]
        %v1104 = vld [vmem:[%s176 + $0x1b40] sm:$0xff]
        %v1105 = vld [vmem:[%s176 + $0x1b48] sm:$0xff]
        %v1106 = vld [vmem:[%s176 + $0x1b50] sm:$0xff]
        %v1107 = vld [vmem:[%s176 + $0x1b58] sm:$0xff]
        %v1108 = vld [vmem:[%s176 + $0x1b60] sm:$0xff]
        %v1109 = vld [vmem:[%s176 + $0x1b68] sm:$0xff]
        %v1110 = vld [vmem:[%s176 + $0x1b70] sm:$0xff]
        %v1111 = vld [vmem:[%s176 + $0x1b78] sm:$0xff]
        %v1112 = vld [vmem:[%s176 + $0x1b80] sm:$0xff]
        %v1113 = vld [vmem:[%s176 + $0x1b88] sm:$0xff]
        %v1114 = vld [vmem:[%s176 + $0x1b90] sm:$0xff]
        %v1115 = vld [vmem:[%s176 + $0x1b98] sm:$0xff]
        %v1116 = vld [vmem:[%s176 + $0x1ba0] sm:$0xff]
        %v1117 = vld [vmem:[%s176 + $0x1ba8] sm:$0xff]
        %v1118 = vld [vmem:[%s176 + $0x1bb0] sm:$0xff]
        %v1119 = vld [vmem:[%s176 + $0x1bb8] sm:$0xff]
        %v1120 = vld [vmem:[%s176 + $0x1bc0] sm:$0xff]
        %v1121 = vld [vmem:[%s176 + $0x1bc8] sm:$0xff]
        %v1122 = vld [vmem:[%s176 + $0x1bd0] sm:$0xff]
        %v1123 = vld [vmem:[%s176 + $0x1bd8] sm:$0xff]
        %v1124 = vld [vmem:[%s176 + $0x1be0] sm:$0xff]
        %v1125 = vld [vmem:[%s176 + $0x1be8] sm:$0xff]
        %v1126 = vld [vmem:[%s176 + $0x1bf0] sm:$0xff]
        %v1127 = vld [vmem:[%s176 + $0x1bf8] sm:$0xff]
        %v1128 = vld [vmem:[%s176 + $0x1c00] sm:$0xff]
        %v1129 = vld [vmem:[%s176 + $0x1c08] sm:$0xff]
        %v1130 = vld [vmem:[%s176 + $0x1c10] sm:$0xff]
        %v1131 = vld [vmem:[%s176 + $0x1c18] sm:$0xff]
        %v1132 = vld [vmem:[%s176 + $0x1c20] sm:$0xff]
        %v1133 = vld [vmem:[%s176 + $0x1c28] sm:$0xff]
        %v1134 = vld [vmem:[%s176 + $0x1c30] sm:$0xff]
        %v1135 = vld [vmem:[%s176 + $0x1c38] sm:$0xff]
        %v1136 = vld [vmem:[%s176 + $0x1c40] sm:$0xff]
        %v1137 = vld [vmem:[%s176 + $0x1c48] sm:$0xff]
        %v1138 = vld [vmem:[%s176 + $0x1c50] sm:$0xff]
        %v1139 = vld [vmem:[%s176 + $0x1c58] sm:$0xff]
        %v1140 = vld [vmem:[%s176 + $0x1c60] sm:$0xff]
        %v1141 = vld [vmem:[%s176 + $0x1c68] sm:$0xff]
        %v1142 = vld [vmem:[%s176 + $0x1c70] sm:$0xff]
        %v1143 = vld [vmem:[%s176 + $0x1c78] sm:$0xff]
        %v1144 = vld [vmem:[%s176 + $0x1c80] sm:$0xff]
        %v1145 = vld [vmem:[%s176 + $0x1c88] sm:$0xff]
        %v1146 = vld [vmem:[%s176 + $0x1c90] sm:$0xff]
        %v1147 = vld [vmem:[%s176 + $0x1c98] sm:$0xff]
        %v1148 = vld [vmem:[%s176 + $0x1ca0] sm:$0xff]
        %v1149 = vld [vmem:[%s176 + $0x1ca8] sm:$0xff]
        %v1150 = vld [vmem:[%s176 + $0x1cb0] sm:$0xff]
        %v1151 = vld [vmem:[%s176 + $0x1cb8] sm:$0xff]
        %v1152 = vld [vmem:[%s176 + $0x1cc0] sm:$0xff]
        %v1153 = vld [vmem:[%s176 + $0x1cc8] sm:$0xff]
        %v1154 = vld [vmem:[%s176 + $0x1cd0] sm:$0xff]
        %v1155 = vld [vmem:[%s176 + $0x1cd8] sm:$0xff]
        %v1156 = vld [vmem:[%s176 + $0x1ce0] sm:$0xff]
        %v1157 = vld [vmem:[%s176 + $0x1ce8] sm:$0xff]
        %v1158 = vld [vmem:[%s176 + $0x1cf0] sm:$0xff]
        %v1159 = vld [vmem:[%s176 + $0x1cf8] sm:$0xff]
        %v1160 = vld [vmem:[%s176 + $0x1d00] sm:$0xff]
        %v1161 = vld [vmem:[%s176 + $0x1d08] sm:$0xff]
        %v1162 = vld [vmem:[%s176 + $0x1d10] sm:$0xff]
        %v1163 = vld [vmem:[%s176 + $0x1d18] sm:$0xff]
        %v1164 = vld [vmem:[%s176 + $0x1d20] sm:$0xff]
        %v1165 = vld [vmem:[%s176 + $0x1d28] sm:$0xff]
        %v1166 = vld [vmem:[%s176 + $0x1d30] sm:$0xff]
        %v1167 = vld [vmem:[%s176 + $0x1d38] sm:$0xff]
        %v1168 = vld [vmem:[%s176 + $0x1d40] sm:$0xff]
        %v1169 = vld [vmem:[%s176 + $0x1d48] sm:$0xff]
        %v1170 = vld [vmem:[%s176 + $0x1d50] sm:$0xff]
        %v1171 = vld [vmem:[%s176 + $0x1d58] sm:$0xff]
        %v1172 = vld [vmem:[%s176 + $0x1d60] sm:$0xff]
        %v1173 = vld [vmem:[%s176 + $0x1d68] sm:$0xff]
        %v1174 = vld [vmem:[%s176 + $0x1d70] sm:$0xff]
        %v1175 = vld [vmem:[%s176 + $0x1d78] sm:$0xff]
        %v1176 = vld [vmem:[%s176 + $0x1d80] sm:$0xff]
        %v1177 = vld [vmem:[%s176 + $0x1d88] sm:$0xff]
        %v1178 = vld [vmem:[%s176 + $0x1d90] sm:$0xff]
        %v1179 = vld [vmem:[%s176 + $0x1d98] sm:$0xff]
        %v1180 = vld [vmem:[%s176 + $0x1da0] sm:$0xff]
        %v1181 = vld [vmem:[%s176 + $0x1da8] sm:$0xff]
        %v1182 = vld [vmem:[%s176 + $0x1db0] sm:$0xff]
        %v1183 = vld [vmem:[%s176 + $0x1db8] sm:$0xff]
        %v1184 = vld [vmem:[%s176 + $0x1dc0] sm:$0xff]
        %v1185 = vld [vmem:[%s176 + $0x1dc8] sm:$0xff]
        %v1186 = vld [vmem:[%s176 + $0x1dd0] sm:$0xff]
        %v1187 = vld [vmem:[%s176 + $0x1dd8] sm:$0xff]
        %v1188 = vld [vmem:[%s176 + $0x1de0] sm:$0xff]
        %v1189 = vld [vmem:[%s176 + $0x1de8] sm:$0xff]
        %v1190 = vld [vmem:[%s176 + $0x1df0] sm:$0xff]
        %v1191 = vld [vmem:[%s176 + $0x1df8] sm:$0xff]
        %v1192 = vld [vmem:[%s176 + $0x1e00] sm:$0xff]
        %v1193 = vld [vmem:[%s176 + $0x1e08] sm:$0xff]
        %v1194 = vld [vmem:[%s176 + $0x1e10] sm:$0xff]
        %v1195 = vld [vmem:[%s176 + $0x1e18] sm:$0xff]
        %v1196 = vld [vmem:[%s176 + $0x1e20] sm:$0xff]
        %v1197 = vld [vmem:[%s176 + $0x1e28] sm:$0xff]
        %v1198 = vld [vmem:[%s176 + $0x1e30] sm:$0xff]
        %v1199 = vld [vmem:[%s176 + $0x1e38] sm:$0xff]
        %v1200 = vld [vmem:[%s176 + $0x1e40] sm:$0xff]
        %v1201 = vld [vmem:[%s176 + $0x1e48] sm:$0xff]
        %v1202 = vld [vmem:[%s176 + $0x1e50] sm:$0xff]
        %v1203 = vld [vmem:[%s176 + $0x1e58] sm:$0xff]
        %v1204 = vld [vmem:[%s176 + $0x1e60] sm:$0xff]
        %v1205 = vld [vmem:[%s176 + $0x1e68] sm:$0xff]
        %v1206 = vld [vmem:[%s176 + $0x1e70] sm:$0xff]
        %v1207 = vld [vmem:[%s176 + $0x1e78] sm:$0xff]
        %v1208 = vld [vmem:[%s176 + $0x1e80] sm:$0xff]
        %v1209 = vld [vmem:[%s176 + $0x1e88] sm:$0xff]
        %v1210 = vld [vmem:[%s176 + $0x1e90] sm:$0xff]
        %v1211 = vld [vmem:[%s176 + $0x1e98] sm:$0xff]
        %v1212 = vld [vmem:[%s176 + $0x1ea0] sm:$0xff]
        %v1213 = vld [vmem:[%s176 + $0x1ea8] sm:$0xff]
        %v1214 = vld [vmem:[%s176 + $0x1eb0] sm:$0xff]
        %v1215 = vld [vmem:[%s176 + $0x1eb8] sm:$0xff]
        %v1216 = vld [vmem:[%s176 + $0x1ec0] sm:$0xff]
        %v1217 = vld [vmem:[%s176 + $0x1ec8] sm:$0xff]
        %v1218 = vld [vmem:[%s176 + $0x1ed0] sm:$0xff]
        %v1219 = vld [vmem:[%s176 + $0x1ed8] sm:$0xff]
        %v1220 = vld [vmem:[%s176 + $0x1ee0] sm:$0xff]
        %v1221 = vld [vmem:[%s176 + $0x1ee8] sm:$0xff]
        %v1222 = vld [vmem:[%s176 + $0x1ef0] sm:$0xff]
        %v1223 = vld [vmem:[%s176 + $0x1ef8] sm:$0xff]
        %v1224 = vld [vmem:[%s176 + $0x1f00] sm:$0xff]
        %v1225 = vld [vmem:[%s176 + $0x1f08] sm:$0xff]
        %v1226 = vld [vmem:[%s176 + $0x1f10] sm:$0xff]
        %v1227 = vld [vmem:[%s176 + $0x1f18] sm:$0xff]
        %v1228 = vld [vmem:[%s176 + $0x1f20] sm:$0xff]
        %v1229 = vld [vmem:[%s176 + $0x1f28] sm:$0xff]
        %v1230 = vld [vmem:[%s176 + $0x1f30] sm:$0xff]
        %v1231 = vld [vmem:[%s176 + $0x1f38] sm:$0xff]
        %v1232 = vld [vmem:[%s176 + $0x1f40] sm:$0xff]
        %v1233 = vld [vmem:[%s176 + $0x1f48] sm:$0xff]
        %v1234 = vld [vmem:[%s176 + $0x1f50] sm:$0xff]
        %v1235 = vld [vmem:[%s176 + $0x1f58] sm:$0xff]
        %v1236 = vld [vmem:[%s176 + $0x1f60] sm:$0xff]
        %v1237 = vld [vmem:[%s176 + $0x1f68] sm:$0xff]
        %v1238 = vld [vmem:[%s176 + $0x1f70] sm:$0xff]
        %v1239 = vld [vmem:[%s176 + $0x1f78] sm:$0xff]
        %v1240 = vld [vmem:[%s176 + $0x1f80] sm:$0xff]
        %v1241 = vld [vmem:[%s176 + $0x1f88] sm:$0xff]
        %v1242 = vld [vmem:[%s176 + $0x1f90] sm:$0xff]
        %v1243 = vld [vmem:[%s176 + $0x1f98] sm:$0xff]
        %v1244 = vld [vmem:[%s176 + $0x1fa0] sm:$0xff]
        %v1245 = vld [vmem:[%s176 + $0x1fa8] sm:$0xff]
        %v1246 = vld [vmem:[%s176 + $0x1fb0] sm:$0xff]
        %v1247 = vld [vmem:[%s176 + $0x1fb8] sm:$0xff]
        %v1248 = vld [vmem:[%s176 + $0x1fc0] sm:$0xff]
        %v1249 = vld [vmem:[%s176 + $0x1fc8] sm:$0xff]
        %v1250 = vld [vmem:[%s176 + $0x1fd0] sm:$0xff]
        %v1251 = vld [vmem:[%s176 + $0x1fd8] sm:$0xff]
        %v1252 = vld [vmem:[%s176 + $0x1fe0] sm:$0xff]
        %v1253 = vld [vmem:[%s176 + $0x1fe8] sm:$0xff]
        %v1254 = vld [vmem:[%s176 + $0x1ff0] sm:$0xff]
        %v1255 = vld [vmem:[%s176 + $0x1ff8] sm:$0xff]
        %v1260 = vcombine.high %v228, %v228
        %v1262 = vunpack.c.l.s4 1983009808
        %v1263 = vunpack.c.0.s8 %v1262
        %v1264 = vlaneseq
        %v1265 = vshrl.u32 %v1264, 7
        %v1266 = vsub.s32 %v1263, %v1265
        %v1267 = vrot.slane %v228, %v1266
        %v1269 = vunpack.c.l.s4 1983009808
        %v1270 = vunpack.c.0.s8 %v1269
        %v1271 = vlaneseq
        %v1272 = vshrl.u32 %v1271, 7
        %v1273 = vsub.s32 %v1270, %v1272
        %v1274 = vrot.slane %v1260, %v1273
        %v1275 = vcombine.high %v1267, %v1267
        %v1276 = vcombine.high %v1274, %v1274
        %v1277 = vcombine.high %v229, %v229
        %v1279 = vunpack.c.l.s4 1983009808
        %v1280 = vunpack.c.0.s8 %v1279
        %v1281 = vlaneseq
        %v1282 = vshrl.u32 %v1281, 7
        %v1283 = vsub.s32 %v1280, %v1282
        %v1284 = vrot.slane %v229, %v1283
        %v1286 = vunpack.c.l.s4 1983009808
        %v1287 = vunpack.c.0.s8 %v1286
        %v1288 = vlaneseq
        %v1289 = vshrl.u32 %v1288, 7
        %v1290 = vsub.s32 %v1287, %v1289
        %v1291 = vrot.slane %v1277, %v1290
        %v1292 = vcombine.high %v1284, %v1284
        %v1293 = vcombine.high %v1291, %v1291
        %v1294 = vcombine.high %v230, %v230
        %v1296 = vunpack.c.l.s4 1983009808
        %v1297 = vunpack.c.0.s8 %v1296
        %v1298 = vlaneseq
        %v1299 = vshrl.u32 %v1298, 7
        %v1300 = vsub.s32 %v1297, %v1299
        %v1301 = vrot.slane %v230, %v1300
        %v1303 = vunpack.c.l.s4 1983009808
        %v1304 = vunpack.c.0.s8 %v1303
        %v1305 = vlaneseq
        %v1306 = vshrl.u32 %v1305, 7
        %v1307 = vsub.s32 %v1304, %v1306
        %v1308 = vrot.slane %v1294, %v1307
        %v1309 = vcombine.high %v1301, %v1301
        %v1310 = vcombine.high %v1308, %v1308
        %v1311 = vcombine.high %v231, %v231
        %v1313 = vunpack.c.l.s4 1983009808
        %v1314 = vunpack.c.0.s8 %v1313
        %v1315 = vlaneseq
        %v1316 = vshrl.u32 %v1315, 7
        %v1317 = vsub.s32 %v1314, %v1316
        %v1318 = vrot.slane %v231, %v1317
        %v1320 = vunpack.c.l.s4 1983009808
        %v1321 = vunpack.c.0.s8 %v1320
        %v1322 = vlaneseq
        %v1323 = vshrl.u32 %v1322, 7
        %v1324 = vsub.s32 %v1321, %v1323
        %v1325 = vrot.slane %v1311, %v1324
        %v1326 = vcombine.high %v1318, %v1318
        %v1327 = vcombine.high %v1325, %v1325
        %1344 = vmatprep.subr.mxu0 %v233
        %1345 = vmatpush1.msra.mxu0 %v232
        %1346 = vmatprep.subr.mxu0 %v237
        %1347 = vmatpush1.msra.mxu0 %v236
        %1348 = vmatprep.subr.mxu0 %v241
        %1349 = vmatpush1.msra.mxu0 %v240
        %1350 = vmatprep.subr.mxu0 %v245
        %1351 = vmatpush1.msra.mxu0 %v244
        %1352 = vmatprep.subr.mxu0 %v249
        %1353 = vmatpush1.msra.mxu0 %v248
        %1354 = vmatprep.subr.mxu0 %v253
        %1355 = vmatpush1.msra.mxu0 %v252
        %1356 = vmatprep.subr.mxu0 %v257
        %1357 = vmatpush1.msra.mxu0 %v256
        %1358 = vmatprep.subr.mxu0 %v261
        %1359 = vmatpush1.msra.mxu0 %v260
        %1360 = vmatprep.subr.mxu0 %v265
        %1361 = vmatpush1.msra.mxu0 %v264
        %1362 = vmatprep.subr.mxu0 %v269
        %1363 = vmatpush1.msra.mxu0 %v268
        %1364 = vmatprep.subr.mxu0 %v273
        %1365 = vmatpush1.msra.mxu0 %v272
        %1366 = vmatprep.subr.mxu0 %v277
        %1367 = vmatpush1.msra.mxu0 %v276
        %1368 = vmatprep.subr.mxu0 %v281
        %1369 = vmatpush1.msra.mxu0 %v280
        %1370 = vmatprep.subr.mxu0 %v285
        %1371 = vmatpush1.msra.mxu0 %v284
        %1372 = vmatprep.subr.mxu0 %v289
        %1373 = vmatpush1.msra.mxu0 %v288
        %1374 = vmatprep.subr.mxu0 %v293
        %1375 = vmatpush1.msra.mxu0 %v292
        %1376 = vmatprep.subr.mxu0 %v297
        %1377 = vmatpush1.msra.mxu0 %v296
        %1378 = vmatprep.subr.mxu0 %v301
        %1379 = vmatpush1.msra.mxu0 %v300
        %1380 = vmatprep.subr.mxu0 %v305
        %1381 = vmatpush1.msra.mxu0 %v304
        %1382 = vmatprep.subr.mxu0 %v309
        %1383 = vmatpush1.msra.mxu0 %v308
        %1384 = vmatprep.subr.mxu0 %v313
        %1385 = vmatpush1.msra.mxu0 %v312
        %1386 = vmatprep.subr.mxu0 %v317
        %1387 = vmatpush1.msra.mxu0 %v316
        %1388 = vmatprep.subr.mxu0 %v321
        %1389 = vmatpush1.msra.mxu0 %v320
        %1390 = vmatprep.subr.mxu0 %v325
        %1391 = vmatpush1.msra.mxu0 %v324
        %1392 = vmatprep.subr.mxu0 %v329
        %1393 = vmatpush1.msra.mxu0 %v328
        %1394 = vmatprep.subr.mxu0 %v333
        %1395 = vmatpush1.msra.mxu0 %v332
        %1396 = vmatprep.subr.mxu0 %v337
        %1397 = vmatpush1.msra.mxu0 %v336
        %1398 = vmatprep.subr.mxu0 %v341
        %1399 = vmatpush1.msra.mxu0 %v340
        %1400 = vmatprep.subr.mxu0 %v345
        %1401 = vmatpush1.msra.mxu0 %v344
        %1402 = vmatprep.subr.mxu0 %v349
        %1403 = vmatpush1.msra.mxu0 %v348
        %1404 = vmatprep.subr.mxu0 %v353
        %1405 = vmatpush1.msra.mxu0 %v352
        %1406 = vmatprep.subr.mxu0 %v357
        %1407 = vmatpush1.msra.mxu0 %v356
        %1408 = vmatprep.mubr.f32.mxu0 %v1275
        %1409 = vmatmul.mubr.f32.gmra.mrb[0].mxu0 %v1267
        %v1410 = vpop.f32.mrb[0].mxu0
        %v1411 = vadd.f32 0.0, %v1410
        %v1412 = vpop.f32.mrb[0].mxu0
        %v1413 = vadd.f32 0.0, %v1412
        %1414 = vdwg.mxu0
        %1415 = vmatprep.subr.mxu0 %v361
        %1416 = vmatpush1.msra.mxu0 %v360
        %1417 = vmatprep.subr.mxu0 %v365
        %1418 = vmatpush1.msra.mxu0 %v364
        %1419 = vmatprep.subr.mxu0 %v369
        %1420 = vmatpush1.msra.mxu0 %v368
        %1421 = vmatprep.subr.mxu0 %v373
        %1422 = vmatpush1.msra.mxu0 %v372
        %1423 = vmatprep.subr.mxu0 %v377
        %1424 = vmatpush1.msra.mxu0 %v376
        %1425 = vmatprep.subr.mxu0 %v381
        %1426 = vmatpush1.msra.mxu0 %v380
        %1427 = vmatprep.subr.mxu0 %v385
        %1428 = vmatpush1.msra.mxu0 %v384
        %1429 = vmatprep.subr.mxu0 %v389
        %1430 = vmatpush1.msra.mxu0 %v388
        %1431 = vmatprep.subr.mxu0 %v393
        %1432 = vmatpush1.msra.mxu0 %v392
        %1433 = vmatprep.subr.mxu0 %v397
        %1434 = vmatpush1.msra.mxu0 %v396
        %1435 = vmatprep.subr.mxu0 %v401
        %1436 = vmatpush1.msra.mxu0 %v400
        %1437 = vmatprep.subr.mxu0 %v405
        %1438 = vmatpush1.msra.mxu0 %v404
        %1439 = vmatprep.subr.mxu0 %v409
        %1440 = vmatpush1.msra.mxu0 %v408
        %1441 = vmatprep.subr.mxu0 %v413
        %1442 = vmatpush1.msra.mxu0 %v412
        %1443 = vmatprep.subr.mxu0 %v417
        %1444 = vmatpush1.msra.mxu0 %v416
        %1445 = vmatprep.subr.mxu0 %v421
        %1446 = vmatpush1.msra.mxu0 %v420
        %1447 = vmatprep.subr.mxu0 %v425
        %1448 = vmatpush1.msra.mxu0 %v424
        %1449 = vmatprep.subr.mxu0 %v429
        %1450 = vmatpush1.msra.mxu0 %v428
        %1451 = vmatprep.subr.mxu0 %v433
        %1452 = vmatpush1.msra.mxu0 %v432
        %1453 = vmatprep.subr.mxu0 %v437
        %1454 = vmatpush1.msra.mxu0 %v436
        %1455 = vmatprep.subr.mxu0 %v441
        %1456 = vmatpush1.msra.mxu0 %v440
        %1457 = vmatprep.subr.mxu0 %v445
        %1458 = vmatpush1.msra.mxu0 %v444
        %1459 = vmatprep.subr.mxu0 %v449
        %1460 = vmatpush1.msra.mxu0 %v448
        %1461 = vmatprep.subr.mxu0 %v453
        %1462 = vmatpush1.msra.mxu0 %v452
        %1463 = vmatprep.subr.mxu0 %v457
        %1464 = vmatpush1.msra.mxu0 %v456
        %1465 = vmatprep.subr.mxu0 %v461
        %1466 = vmatpush1.msra.mxu0 %v460
        %1467 = vmatprep.subr.mxu0 %v465
        %1468 = vmatpush1.msra.mxu0 %v464
        %1469 = vmatprep.subr.mxu0 %v469
        %1470 = vmatpush1.msra.mxu0 %v468
        %1471 = vmatprep.subr.mxu0 %v473
        %1472 = vmatpush1.msra.mxu0 %v472
        %1473 = vmatprep.subr.mxu0 %v477
        %1474 = vmatpush1.msra.mxu0 %v476
        %1475 = vmatprep.subr.mxu0 %v481
        %1476 = vmatpush1.msra.mxu0 %v480
        %1477 = vmatprep.subr.mxu0 %v485
        %1478 = vmatpush1.msra.mxu0 %v484
        %1479 = vmatprep.mubr.f32.mxu0 %v1276
        %1480 = vmatmul.mubr.f32.gmra.mrb[0].mxu0 %v1274
        %v1481 = vpop.f32.mrb[0].mxu0
        %v1482 = vadd.f32 %v1411, %v1481
        %v1483 = vpop.f32.mrb[0].mxu0
        %v1484 = vadd.f32 %v1413, %v1483
        %1485 = vdwg.mxu0
        %1486 = vmatprep.subr.mxu0 %v489
        %1487 = vmatpush1.msra.mxu0 %v488
        %1488 = vmatprep.subr.mxu0 %v493
        %1489 = vmatpush1.msra.mxu0 %v492
        %1490 = vmatprep.subr.mxu0 %v497
        %1491 = vmatpush1.msra.mxu0 %v496
        %1492 = vmatprep.subr.mxu0 %v501
        %1493 = vmatpush1.msra.mxu0 %v500
        %1494 = vmatprep.subr.mxu0 %v505
        %1495 = vmatpush1.msra.mxu0 %v504
        %1496 = vmatprep.subr.mxu0 %v509
        %1497 = vmatpush1.msra.mxu0 %v508
        %1498 = vmatprep.subr.mxu0 %v513
        %1499 = vmatpush1.msra.mxu0 %v512
        %1500 = vmatprep.subr.mxu0 %v517
        %1501 = vmatpush1.msra.mxu0 %v516
        %1502 = vmatprep.subr.mxu0 %v521
        %1503 = vmatpush1.msra.mxu0 %v520
        %1504 = vmatprep.subr.mxu0 %v525
        %1505 = vmatpush1.msra.mxu0 %v524
        %1506 = vmatprep.subr.mxu0 %v529
        %1507 = vmatpush1.msra.mxu0 %v528
        %1508 = vmatprep.subr.mxu0 %v533
        %1509 = vmatpush1.msra.mxu0 %v532
        %1510 = vmatprep.subr.mxu0 %v537
        %1511 = vmatpush1.msra.mxu0 %v536
        %1512 = vmatprep.subr.mxu0 %v541
        %1513 = vmatpush1.msra.mxu0 %v540
        %1514 = vmatprep.subr.mxu0 %v545
        %1515 = vmatpush1.msra.mxu0 %v544
        %1516 = vmatprep.subr.mxu0 %v549
        %1517 = vmatpush1.msra.mxu0 %v548
        %1518 = vmatprep.subr.mxu0 %v553
        %1519 = vmatpush1.msra.mxu0 %v552
        %1520 = vmatprep.subr.mxu0 %v557
        %1521 = vmatpush1.msra.mxu0 %v556
        %1522 = vmatprep.subr.mxu0 %v561
        %1523 = vmatpush1.msra.mxu0 %v560
        %1524 = vmatprep.subr.mxu0 %v565
        %1525 = vmatpush1.msra.mxu0 %v564
        %1526 = vmatprep.subr.mxu0 %v569
        %1527 = vmatpush1.msra.mxu0 %v568
        %1528 = vmatprep.subr.mxu0 %v573
        %1529 = vmatpush1.msra.mxu0 %v572
        %1530 = vmatprep.subr.mxu0 %v577
        %1531 = vmatpush1.msra.mxu0 %v576
        %1532 = vmatprep.subr.mxu0 %v581
        %1533 = vmatpush1.msra.mxu0 %v580
        %1534 = vmatprep.subr.mxu0 %v585
        %1535 = vmatpush1.msra.mxu0 %v584
        %1536 = vmatprep.subr.mxu0 %v589
        %1537 = vmatpush1.msra.mxu0 %v588
        %1538 = vmatprep.subr.mxu0 %v593
        %1539 = vmatpush1.msra.mxu0 %v592
        %1540 = vmatprep.subr.mxu0 %v597
        %1541 = vmatpush1.msra.mxu0 %v596
        %1542 = vmatprep.subr.mxu0 %v601
        %1543 = vmatpush1.msra.mxu0 %v600
        %1544 = vmatprep.subr.mxu0 %v605
        %1545 = vmatpush1.msra.mxu0 %v604
        %1546 = vmatprep.subr.mxu0 %v609
        %1547 = vmatpush1.msra.mxu0 %v608
        %1548 = vmatprep.subr.mxu0 %v613
        %1549 = vmatpush1.msra.mxu0 %v612
        %1550 = vmatprep.mubr.f32.mxu0 %v1292
        %1551 = vmatmul.mubr.f32.gmra.mrb[0].mxu0 %v1284
        %v1552 = vpop.f32.mrb[0].mxu0
        %v1553 = vadd.f32 %v1482, %v1552
        %v1554 = vpop.f32.mrb[0].mxu0
        %v1555 = vadd.f32 %v1484, %v1554
        %1556 = vdwg.mxu0
        %1557 = vmatprep.subr.mxu0 %v617
        %1558 = vmatpush1.msra.mxu0 %v616
        %1559 = vmatprep.subr.mxu0 %v621
        %1560 = vmatpush1.msra.mxu0 %v620
        %1561 = vmatprep.subr.mxu0 %v625
        %1562 = vmatpush1.msra.mxu0 %v624
        %1563 = vmatprep.subr.mxu0 %v629
        %1564 = vmatpush1.msra.mxu0 %v628
        %1565 = vmatprep.subr.mxu0 %v633
        %1566 = vmatpush1.msra.mxu0 %v632
        %1567 = vmatprep.subr.mxu0 %v637
        %1568 = vmatpush1.msra.mxu0 %v636
        %1569 = vmatprep.subr.mxu0 %v641
        %1570 = vmatpush1.msra.mxu0 %v640
        %1571 = vmatprep.subr.mxu0 %v645
        %1572 = vmatpush1.msra.mxu0 %v644
        %1573 = vmatprep.subr.mxu0 %v649
        %1574 = vmatpush1.msra.mxu0 %v648
        %1575 = vmatprep.subr.mxu0 %v653
        %1576 = vmatpush1.msra.mxu0 %v652
        %1577 = vmatprep.subr.mxu0 %v657
        %1578 = vmatpush1.msra.mxu0 %v656
        %1579 = vmatprep.subr.mxu0 %v661
        %1580 = vmatpush1.msra.mxu0 %v660
        %1581 = vmatprep.subr.mxu0 %v665
        %1582 = vmatpush1.msra.mxu0 %v664
        %1583 = vmatprep.subr.mxu0 %v669
        %1584 = vmatpush1.msra.mxu0 %v668
        %1585 = vmatprep.subr.mxu0 %v673
        %1586 = vmatpush1.msra.mxu0 %v672
        %1587 = vmatprep.subr.mxu0 %v677
        %1588 = vmatpush1.msra.mxu0 %v676
        %1589 = vmatprep.subr.mxu0 %v681
        %1590 = vmatpush1.msra.mxu0 %v680
        %1591 = vmatprep.subr.mxu0 %v685
        %1592 = vmatpush1.msra.mxu0 %v684
        %1593 = vmatprep.subr.mxu0 %v689
        %1594 = vmatpush1.msra.mxu0 %v688
        %1595 = vmatprep.subr.mxu0 %v693
        %1596 = vmatpush1.msra.mxu0 %v692
        %1597 = vmatprep.subr.mxu0 %v697
        %1598 = vmatpush1.msra.mxu0 %v696
        %1599 = vmatprep.subr.mxu0 %v701
        %1600 = vmatpush1.msra.mxu0 %v700
        %1601 = vmatprep.subr.mxu0 %v705
        %1602 = vmatpush1.msra.mxu0 %v704
        %1603 = vmatprep.subr.mxu0 %v709
        %1604 = vmatpush1.msra.mxu0 %v708
        %1605 = vmatprep.subr.mxu0 %v713
        %1606 = vmatpush1.msra.mxu0 %v712
        %1607 = vmatprep.subr.mxu0 %v717
        %1608 = vmatpush1.msra.mxu0 %v716
        %1609 = vmatprep.subr.mxu0 %v721
        %1610 = vmatpush1.msra.mxu0 %v720
        %1611 = vmatprep.subr.mxu0 %v725
        %1612 = vmatpush1.msra.mxu0 %v724
        %1613 = vmatprep.subr.mxu0 %v729
        %1614 = vmatpush1.msra.mxu0 %v728
        %1615 = vmatprep.subr.mxu0 %v733
        %1616 = vmatpush1.msra.mxu0 %v732
        %1617 = vmatprep.subr.mxu0 %v737
        %1618 = vmatpush1.msra.mxu0 %v736
        %1619 = vmatprep.subr.mxu0 %v741
        %1620 = vmatpush1.msra.mxu0 %v740
        %1621 = vmatprep.mubr.f32.mxu0 %v1293
        %1622 = vmatmul.mubr.f32.gmra.mrb[0].mxu0 %v1291
        %v1623 = vpop.f32.mrb[0].mxu0
        %v1624 = vadd.f32 %v1553, %v1623
        %v1625 = vpop.f32.mrb[0].mxu0
        %v1626 = vadd.f32 %v1555, %v1625
        %1627 = vdwg.mxu0
        %1628 = vmatprep.subr.mxu0 %v745
        %1629 = vmatpush1.msra.mxu0 %v744
        %1630 = vmatprep.subr.mxu0 %v749
        %1631 = vmatpush1.msra.mxu0 %v748
        %1632 = vmatprep.subr.mxu0 %v753
        %1633 = vmatpush1.msra.mxu0 %v752
        %1634 = vmatprep.subr.mxu0 %v757
        %1635 = vmatpush1.msra.mxu0 %v756
        %1636 = vmatprep.subr.mxu0 %v761
        %1637 = vmatpush1.msra.mxu0 %v760
        %1638 = vmatprep.subr.mxu0 %v765
        %1639 = vmatpush1.msra.mxu0 %v764
        %1640 = vmatprep.subr.mxu0 %v769
        %1641 = vmatpush1.msra.mxu0 %v768
        %1642 = vmatprep.subr.mxu0 %v773
        %1643 = vmatpush1.msra.mxu0 %v772
        %1644 = vmatprep.subr.mxu0 %v777
        %1645 = vmatpush1.msra.mxu0 %v776
        %1646 = vmatprep.subr.mxu0 %v781
        %1647 = vmatpush1.msra.mxu0 %v780
        %1648 = vmatprep.subr.mxu0 %v785
        %1649 = vmatpush1.msra.mxu0 %v784
        %1650 = vmatprep.subr.mxu0 %v789
        %1651 = vmatpush1.msra.mxu0 %v788
        %1652 = vmatprep.subr.mxu0 %v793
        %1653 = vmatpush1.msra.mxu0 %v792
        %1654 = vmatprep.subr.mxu0 %v797
        %1655 = vmatpush1.msra.mxu0 %v796
        %1656 = vmatprep.subr.mxu0 %v801
        %1657 = vmatpush1.msra.mxu0 %v800
        %1658 = vmatprep.subr.mxu0 %v805
        %1659 = vmatpush1.msra.mxu0 %v804
        %1660 = vmatprep.subr.mxu0 %v809
        %1661 = vmatpush1.msra.mxu0 %v808
        %1662 = vmatprep.subr.mxu0 %v813
        %1663 = vmatpush1.msra.mxu0 %v812
        %1664 = vmatprep.subr.mxu0 %v817
        %1665 = vmatpush1.msra.mxu0 %v816
        %1666 = vmatprep.subr.mxu0 %v821
        %1667 = vmatpush1.msra.mxu0 %v820
        %1668 = vmatprep.subr.mxu0 %v825
        %1669 = vmatpush1.msra.mxu0 %v824
        %1670 = vmatprep.subr.mxu0 %v829
        %1671 = vmatpush1.msra.mxu0 %v828
        %1672 = vmatprep.subr.mxu0 %v833
        %1673 = vmatpush1.msra.mxu0 %v832
        %1674 = vmatprep.subr.mxu0 %v837
        %1675 = vmatpush1.msra.mxu0 %v836
        %1676 = vmatprep.subr.mxu0 %v841
        %1677 = vmatpush1.msra.mxu0 %v840
        %1678 = vmatprep.subr.mxu0 %v845
        %1679 = vmatpush1.msra.mxu0 %v844
        %1680 = vmatprep.subr.mxu0 %v849
        %1681 = vmatpush1.msra.mxu0 %v848
        %1682 = vmatprep.subr.mxu0 %v853
        %1683 = vmatpush1.msra.mxu0 %v852
        %1684 = vmatprep.subr.mxu0 %v857
        %1685 = vmatpush1.msra.mxu0 %v856
        %1686 = vmatprep.subr.mxu0 %v861
        %1687 = vmatpush1.msra.mxu0 %v860
        %1688 = vmatprep.subr.mxu0 %v865
        %1689 = vmatpush1.msra.mxu0 %v864
        %1690 = vmatprep.subr.mxu0 %v869
        %1691 = vmatpush1.msra.mxu0 %v868
        %1692 = vmatprep.mubr.f32.mxu0 %v1309
        %1693 = vmatmul.mubr.f32.gmra.mrb[0].mxu0 %v1301
        %v1694 = vpop.f32.mrb[0].mxu0
        %v1695 = vadd.f32 %v1624, %v1694
        %v1696 = vpop.f32.mrb[0].mxu0
        %v1697 = vadd.f32 %v1626, %v1696
        %1698 = vdwg.mxu0
        %1699 = vmatprep.subr.mxu0 %v873
        %1700 = vmatpush1.msra.mxu0 %v872
        %1701 = vmatprep.subr.mxu0 %v877
        %1702 = vmatpush1.msra.mxu0 %v876
        %1703 = vmatprep.subr.mxu0 %v881
        %1704 = vmatpush1.msra.mxu0 %v880
        %1705 = vmatprep.subr.mxu0 %v885
        %1706 = vmatpush1.msra.mxu0 %v884
        %1707 = vmatprep.subr.mxu0 %v889
        %1708 = vmatpush1.msra.mxu0 %v888
        %1709 = vmatprep.subr.mxu0 %v893
        %1710 = vmatpush1.msra.mxu0 %v892
        %1711 = vmatprep.subr.mxu0 %v897
        %1712 = vmatpush1.msra.mxu0 %v896
        %1713 = vmatprep.subr.mxu0 %v901
        %1714 = vmatpush1.msra.mxu0 %v900
        %1715 = vmatprep.subr.mxu0 %v905
        %1716 = vmatpush1.msra.mxu0 %v904
        %1717 = vmatprep.subr.mxu0 %v909
        %1718 = vmatpush1.msra.mxu0 %v908
        %1719 = vmatprep.subr.mxu0 %v913
        %1720 = vmatpush1.msra.mxu0 %v912
        %1721 = vmatprep.subr.mxu0 %v917
        %1722 = vmatpush1.msra.mxu0 %v916
        %1723 = vmatprep.subr.mxu0 %v921
        %1724 = vmatpush1.msra.mxu0 %v920
        %1725 = vmatprep.subr.mxu0 %v925
        %1726 = vmatpush1.msra.mxu0 %v924
        %1727 = vmatprep.subr.mxu0 %v929
        %1728 = vmatpush1.msra.mxu0 %v928
        %1729 = vmatprep.subr.mxu0 %v933
        %1730 = vmatpush1.msra.mxu0 %v932
        %1731 = vmatprep.subr.mxu0 %v937
        %1732 = vmatpush1.msra.mxu0 %v936
        %1733 = vmatprep.subr.mxu0 %v941
        %1734 = vmatpush1.msra.mxu0 %v940
        %1735 = vmatprep.subr.mxu0 %v945
        %1736 = vmatpush1.msra.mxu0 %v944
        %1737 = vmatprep.subr.mxu0 %v949
        %1738 = vmatpush1.msra.mxu0 %v948
        %1739 = vmatprep.subr.mxu0 %v953
        %1740 = vmatpush1.msra.mxu0 %v952
        %1741 = vmatprep.subr.mxu0 %v957
        %1742 = vmatpush1.msra.mxu0 %v956
        %1743 = vmatprep.subr.mxu0 %v961
        %1744 = vmatpush1.msra.mxu0 %v960
        %1745 = vmatprep.subr.mxu0 %v965
        %1746 = vmatpush1.msra.mxu0 %v964
        %1747 = vmatprep.subr.mxu0 %v969
        %1748 = vmatpush1.msra.mxu0 %v968
        %1749 = vmatprep.subr.mxu0 %v973
        %1750 = vmatpush1.msra.mxu0 %v972
        %1751 = vmatprep.subr.mxu0 %v977
        %1752 = vmatpush1.msra.mxu0 %v976
        %1753 = vmatprep.subr.mxu0 %v981
        %1754 = vmatpush1.msra.mxu0 %v980
        %1755 = vmatprep.subr.mxu0 %v985
        %1756 = vmatpush1.msra.mxu0 %v984
        %1757 = vmatprep.subr.mxu0 %v989
        %1758 = vmatpush1.msra.mxu0 %v988
        %1759 = vmatprep.subr.mxu0 %v993
        %1760 = vmatpush1.msra.mxu0 %v992
        %1761 = vmatprep.subr.mxu0 %v997
        %1762 = vmatpush1.msra.mxu0 %v996
        %1763 = vmatprep.mubr.f32.mxu0 %v1310
        %1764 = vmatmul.mubr.f32.gmra.mrb[0].mxu0 %v1308
        %v1765 = vpop.f32.mrb[0].mxu0
        %v1766 = vadd.f32 %v1695, %v1765
        %v1767 = vpop.f32.mrb[0].mxu0
        %v1768 = vadd.f32 %v1697, %v1767
        %1769 = vdwg.mxu0
        %1770 = vmatprep.subr.mxu0 %v1001
        %1771 = vmatpush1.msra.mxu0 %v1000
        %1772 = vmatprep.subr.mxu0 %v1005
        %1773 = vmatpush1.msra.mxu0 %v1004
        %1774 = vmatprep.subr.mxu0 %v1009
        %1775 = vmatpush1.msra.mxu0 %v1008
        %1776 = vmatprep.subr.mxu0 %v1013
        %1777 = vmatpush1.msra.mxu0 %v1012
        %1778 = vmatprep.subr.mxu0 %v1017
        %1779 = vmatpush1.msra.mxu0 %v1016
        %1780 = vmatprep.subr.mxu0 %v1021
        %1781 = vmatpush1.msra.mxu0 %v1020
        %1782 = vmatprep.subr.mxu0 %v1025
        %1783 = vmatpush1.msra.mxu0 %v1024
        %1784 = vmatprep.subr.mxu0 %v1029
        %1785 = vmatpush1.msra.mxu0 %v1028
        %1786 = vmatprep.subr.mxu0 %v1033
        %1787 = vmatpush1.msra.mxu0 %v1032
        %1788 = vmatprep.subr.mxu0 %v1037
        %1789 = vmatpush1.msra.mxu0 %v1036
        %1790 = vmatprep.subr.mxu0 %v1041
        %1791 = vmatpush1.msra.mxu0 %v1040
        %1792 = vmatprep.subr.mxu0 %v1045
        %1793 = vmatpush1.msra.mxu0 %v1044
        %1794 = vmatprep.subr.mxu0 %v1049
        %1795 = vmatpush1.msra.mxu0 %v1048
        %1796 = vmatprep.subr.mxu0 %v1053
        %1797 = vmatpush1.msra.mxu0 %v1052
        %1798 = vmatprep.subr.mxu0 %v1057
        %1799 = vmatpush1.msra.mxu0 %v1056
        %1800 = vmatprep.subr.mxu0 %v1061
        %1801 = vmatpush1.msra.mxu0 %v1060
        %1802 = vmatprep.subr.mxu0 %v1065
        %1803 = vmatpush1.msra.mxu0 %v1064
        %1804 = vmatprep.subr.mxu0 %v1069
        %1805 = vmatpush1.msra.mxu0 %v1068
        %1806 = vmatprep.subr.mxu0 %v1073
        %1807 = vmatpush1.msra.mxu0 %v1072
        %1808 = vmatprep.subr.mxu0 %v1077
        %1809 = vmatpush1.msra.mxu0 %v1076
        %1810 = vmatprep.subr.mxu0 %v1081
        %1811 = vmatpush1.msra.mxu0 %v1080
        %1812 = vmatprep.subr.mxu0 %v1085
        %1813 = vmatpush1.msra.mxu0 %v1084
        %1814 = vmatprep.subr.mxu0 %v1089
        %1815 = vmatpush1.msra.mxu0 %v1088
        %1816 = vmatprep.subr.mxu0 %v1093
        %1817 = vmatpush1.msra.mxu0 %v1092
        %1818 = vmatprep.subr.mxu0 %v1097
        %1819 = vmatpush1.msra.mxu0 %v1096
        %1820 = vmatprep.subr.mxu0 %v1101
        %1821 = vmatpush1.msra.mxu0 %v1100
        %1822 = vmatprep.subr.mxu0 %v1105
        %1823 = vmatpush1.msra.mxu0 %v1104
        %1824 = vmatprep.subr.mxu0 %v1109
        %1825 = vmatpush1.msra.mxu0 %v1108
        %1826 = vmatprep.subr.mxu0 %v1113
        %1827 = vmatpush1.msra.mxu0 %v1112
        %1828 = vmatprep.subr.mxu0 %v1117
        %1829 = vmatpush1.msra.mxu0 %v1116
        %1830 = vmatprep.subr.mxu0 %v1121
        %1831 = vmatpush1.msra.mxu0 %v1120
        %1832 = vmatprep.subr.mxu0 %v1125
        %1833 = vmatpush1.msra.mxu0 %v1124
        %1834 = vmatprep.mubr.f32.mxu0 %v1326
        %1835 = vmatmul.mubr.f32.gmra.mrb[0].mxu0 %v1318
        %v1836 = vpop.f32.mrb[0].mxu0
        %v1837 = vadd.f32 %v1766, %v1836
        %v1838 = vpop.f32.mrb[0].mxu0
        %v1839 = vadd.f32 %v1768, %v1838
        %1840 = vdwg.mxu0
        %1841 = vmatprep.subr.mxu0 %v1129
        %1842 = vmatpush1.msra.mxu0 %v1128
        %1843 = vmatprep.subr.mxu0 %v1133
        %1844 = vmatpush1.msra.mxu0 %v1132
        %1845 = vmatprep.subr.mxu0 %v1137
        %1846 = vmatpush1.msra.mxu0 %v1136
        %1847 = vmatprep.subr.mxu0 %v1141
        %1848 = vmatpush1.msra.mxu0 %v1140
        %1849 = vmatprep.subr.mxu0 %v1145
        %1850 = vmatpush1.msra.mxu0 %v1144
        %1851 = vmatprep.subr.mxu0 %v1149
        %1852 = vmatpush1.msra.mxu0 %v1148
        %1853 = vmatprep.subr.mxu0 %v1153
        %1854 = vmatpush1.msra.mxu0 %v1152
        %1855 = vmatprep.subr.mxu0 %v1157
        %1856 = vmatpush1.msra.mxu0 %v1156
        %1857 = vmatprep.subr.mxu0 %v1161
        %1858 = vmatpush1.msra.mxu0 %v1160
        %1859 = vmatprep.subr.mxu0 %v1165
        %1860 = vmatpush1.msra.mxu0 %v1164
        %1861 = vmatprep.subr.mxu0 %v1169
        %1862 = vmatpush1.msra.mxu0 %v1168
        %1863 = vmatprep.subr.mxu0 %v1173
        %1864 = vmatpush1.msra.mxu0 %v1172
        %1865 = vmatprep.subr.mxu0 %v1177
        %1866 = vmatpush1.msra.mxu0 %v1176
        %1867 = vmatprep.subr.mxu0 %v1181
        %1868 = vmatpush1.msra.mxu0 %v1180
        %1869 = vmatprep.subr.mxu0 %v1185
        %1870 = vmatpush1.msra.mxu0 %v1184
        %1871 = vmatprep.subr.mxu0 %v1189
        %1872 = vmatpush1.msra.mxu0 %v1188
        %1873 = vmatprep.subr.mxu0 %v1193
        %1874 = vmatpush1.msra.mxu0 %v1192
        %1875 = vmatprep.subr.mxu0 %v1197
        %1876 = vmatpush1.msra.mxu0 %v1196
        %1877 = vmatprep.subr.mxu0 %v1201
        %1878 = vmatpush1.msra.mxu0 %v1200
        %1879 = vmatprep.subr.mxu0 %v1205
        %1880 = vmatpush1.msra.mxu0 %v1204
        %1881 = vmatprep.subr.mxu0 %v1209
        %1882 = vmatpush1.msra.mxu0 %v1208
        %1883 = vmatprep.subr.mxu0 %v1213
        %1884 = vmatpush1.msra.mxu0 %v1212
        %1885 = vmatprep.subr.mxu0 %v1217
        %1886 = vmatpush1.msra.mxu0 %v1216
        %1887 = vmatprep.subr.mxu0 %v1221
        %1888 = vmatpush1.msra.mxu0 %v1220
        %1889 = vmatprep.subr.mxu0 %v1225
        %1890 = vmatpush1.msra.mxu0 %v1224
        %1891 = vmatprep.subr.mxu0 %v1229
        %1892 = vmatpush1.msra.mxu0 %v1228
        %1893 = vmatprep.subr.mxu0 %v1233
        %1894 = vmatpush1.msra.mxu0 %v1232
        %1895 = vmatprep.subr.mxu0 %v1237
        %1896 = vmatpush1.msra.mxu0 %v1236
        %1897 = vmatprep.subr.mxu0 %v1241
        %1898 = vmatpush1.msra.mxu0 %v1240
        %1899 = vmatprep.subr.mxu0 %v1245
        %1900 = vmatpush1.msra.mxu0 %v1244
        %1901 = vmatprep.subr.mxu0 %v1249
        %1902 = vmatpush1.msra.mxu0 %v1248
        %1903 = vmatprep.subr.mxu0 %v1253
        %1904 = vmatpush1.msra.mxu0 %v1252
        %1905 = vmatprep.mubr.f32.mxu0 %v1327
        %1906 = vmatmul.mubr.f32.gmra.mrb[0].mxu0 %v1325
        %v1907 = vpop.f32.mrb[0].mxu0
        %v1908 = vadd.f32 %v1837, %v1907
        %v1909 = vpop.f32.mrb[0].mxu0
        %v1910 = vadd.f32 %v1839, %v1909
        %1911 = vdwg.mxu0
        %1912 = vmatprep.subr.mxu0 %v235
        %1913 = vmatpush1.msra.mxu0 %v234
        %1914 = vmatprep.subr.mxu0 %v239
        %1915 = vmatpush1.msra.mxu0 %v238
        %1916 = vmatprep.subr.mxu0 %v243
        %1917 = vmatpush1.msra.mxu0 %v242
        %1918 = vmatprep.subr.mxu0 %v247
        %1919 = vmatpush1.msra.mxu0 %v246
        %1920 = vmatprep.subr.mxu0 %v251
        %1921 = vmatpush1.msra.mxu0 %v250
        %1922 = vmatprep.subr.mxu0 %v255
        %1923 = vmatpush1.msra.mxu0 %v254
        %1924 = vmatprep.subr.mxu0 %v259
        %1925 = vmatpush1.msra.mxu0 %v258
        %1926 = vmatprep.subr.mxu0 %v263
        %1927 = vmatpush1.msra.mxu0 %v262
        %1928 = vmatprep.subr.mxu0 %v267
        %1929 = vmatpush1.msra.mxu0 %v266
        %1930 = vmatprep.subr.mxu0 %v271
        %1931 = vmatpush1.msra.mxu0 %v270
        %1932 = vmatprep.subr.mxu0 %v275
        %1933 = vmatpush1.msra.mxu0 %v274
        %1934 = vmatprep.subr.mxu0 %v279
        %1935 = vmatpush1.msra.mxu0 %v278
        %1936 = vmatprep.subr.mxu0 %v283
        %1937 = vmatpush1.msra.mxu0 %v282
        %1938 = vmatprep.subr.mxu0 %v287
        %1939 = vmatpush1.msra.mxu0 %v286
        %1940 = vmatprep.subr.mxu0 %v291
        %1941 = vmatpush1.msra.mxu0 %v290
        %1942 = vmatprep.subr.mxu0 %v295
        %1943 = vmatpush1.msra.mxu0 %v294
        %1944 = vmatprep.subr.mxu0 %v299
        %1945 = vmatpush1.msra.mxu0 %v298
        %1946 = vmatprep.subr.mxu0 %v303
        %1947 = vmatpush1.msra.mxu0 %v302
        %1948 = vmatprep.subr.mxu0 %v307
        %1949 = vmatpush1.msra.mxu0 %v306
        %1950 = vmatprep.subr.mxu0 %v311
        %1951 = vmatpush1.msra.mxu0 %v310
        %1952 = vmatprep.subr.mxu0 %v315
        %1953 = vmatpush1.msra.mxu0 %v314
        %1954 = vmatprep.subr.mxu0 %v319
        %1955 = vmatpush1.msra.mxu0 %v318
        %1956 = vmatprep.subr.mxu0 %v323
        %1957 = vmatpush1.msra.mxu0 %v322
        %1958 = vmatprep.subr.mxu0 %v327
        %1959 = vmatpush1.msra.mxu0 %v326
        %1960 = vmatprep.subr.mxu0 %v331
        %1961 = vmatpush1.msra.mxu0 %v330
        %1962 = vmatprep.subr.mxu0 %v335
        %1963 = vmatpush1.msra.mxu0 %v334
        %1964 = vmatprep.subr.mxu0 %v339
        %1965 = vmatpush1.msra.mxu0 %v338
        %1966 = vmatprep.subr.mxu0 %v343
        %1967 = vmatpush1.msra.mxu0 %v342
        %1968 = vmatprep.subr.mxu0 %v347
        %1969 = vmatpush1.msra.mxu0 %v346
        %1970 = vmatprep.subr.mxu0 %v351
        %1971 = vmatpush1.msra.mxu0 %v350
        %1972 = vmatprep.subr.mxu0 %v355
        %1973 = vmatpush1.msra.mxu0 %v354
        %1974 = vmatprep.subr.mxu0 %v359
        %1975 = vmatpush1.msra.mxu0 %v358
        %1976 = vmatprep.mubr.f32.mxu0 %v1275
        %1977 = vmatmul.mubr.f32.gmra.mrb[0].mxu0 %v1267
        %v1978 = vpop.f32.mrb[0].mxu0
        %v1979 = vadd.f32 0.0, %v1978
        %v1980 = vpop.f32.mrb[0].mxu0
        %v1981 = vadd.f32 0.0, %v1980
        %1982 = vdwg.mxu0
        %1983 = vmatprep.subr.mxu0 %v363
        %1984 = vmatpush1.msra.mxu0 %v362
        %1985 = vmatprep.subr.mxu0 %v367
        %1986 = vmatpush1.msra.mxu0 %v366
        %1987 = vmatprep.subr.mxu0 %v371
        %1988 = vmatpush1.msra.mxu0 %v370
        %1989 = vmatprep.subr.mxu0 %v375
        %1990 = vmatpush1.msra.mxu0 %v374
        %1991 = vmatprep.subr.mxu0 %v379
        %1992 = vmatpush1.msra.mxu0 %v378
        %1993 = vmatprep.subr.mxu0 %v383
        %1994 = vmatpush1.msra.mxu0 %v382
        %1995 = vmatprep.subr.mxu0 %v387
        %1996 = vmatpush1.msra.mxu0 %v386
        %1997 = vmatprep.subr.mxu0 %v391
        %1998 = vmatpush1.msra.mxu0 %v390
        %1999 = vmatprep.subr.mxu0 %v395
        %2000 = vmatpush1.msra.mxu0 %v394
        %2001 = vmatprep.subr.mxu0 %v399
        %2002 = vmatpush1.msra.mxu0 %v398
        %2003 = vmatprep.subr.mxu0 %v403
        %2004 = vmatpush1.msra.mxu0 %v402
        %2005 = vmatprep.subr.mxu0 %v407
        %2006 = vmatpush1.msra.mxu0 %v406
        %2007 = vmatprep.subr.mxu0 %v411
        %2008 = vmatpush1.msra.mxu0 %v410
        %2009 = vmatprep.subr.mxu0 %v415
        %2010 = vmatpush1.msra.mxu0 %v414
        %2011 = vmatprep.subr.mxu0 %v419
        %2012 = vmatpush1.msra.mxu0 %v418
        %2013 = vmatprep.subr.mxu0 %v423
        %2014 = vmatpush1.msra.mxu0 %v422
        %2015 = vmatprep.subr.mxu0 %v427
        %2016 = vmatpush1.msra.mxu0 %v426
        %2017 = vmatprep.subr.mxu0 %v431
        %2018 = vmatpush1.msra.mxu0 %v430
        %2019 = vmatprep.subr.mxu0 %v435
        %2020 = vmatpush1.msra.mxu0 %v434
        %2021 = vmatprep.subr.mxu0 %v439
        %2022 = vmatpush1.msra.mxu0 %v438
        %2023 = vmatprep.subr.mxu0 %v443
        %2024 = vmatpush1.msra.mxu0 %v442
        %2025 = vmatprep.subr.mxu0 %v447
        %2026 = vmatpush1.msra.mxu0 %v446
        %2027 = vmatprep.subr.mxu0 %v451
        %2028 = vmatpush1.msra.mxu0 %v450
        %2029 = vmatprep.subr.mxu0 %v455
        %2030 = vmatpush1.msra.mxu0 %v454
        %2031 = vmatprep.subr.mxu0 %v459
        %2032 = vmatpush1.msra.mxu0 %v458
        %2033 = vmatprep.subr.mxu0 %v463
        %2034 = vmatpush1.msra.mxu0 %v462
        %2035 = vmatprep.subr.mxu0 %v467
        %2036 = vmatpush1.msra.mxu0 %v466
        %2037 = vmatprep.subr.mxu0 %v471
        %2038 = vmatpush1.msra.mxu0 %v470
        %2039 = vmatprep.subr.mxu0 %v475
        %2040 = vmatpush1.msra.mxu0 %v474
        %2041 = vmatprep.subr.mxu0 %v479
        %2042 = vmatpush1.msra.mxu0 %v478
        %2043 = vmatprep.subr.mxu0 %v483
        %2044 = vmatpush1.msra.mxu0 %v482
        %2045 = vmatprep.subr.mxu0 %v487
        %2046 = vmatpush1.msra.mxu0 %v486
        %2047 = vmatprep.mubr.f32.mxu0 %v1276
        %2048 = vmatmul.mubr.f32.gmra.mrb[0].mxu0 %v1274
        %v2049 = vpop.f32.mrb[0].mxu0
        %v2050 = vadd.f32 %v1979, %v2049
        %v2051 = vpop.f32.mrb[0].mxu0
        %v2052 = vadd.f32 %v1981, %v2051
        %2053 = vdwg.mxu0
        %2054 = vmatprep.subr.mxu0 %v491
        %2055 = vmatpush1.msra.mxu0 %v490
        %2056 = vmatprep.subr.mxu0 %v495
        %2057 = vmatpush1.msra.mxu0 %v494
        %2058 = vmatprep.subr.mxu0 %v499
        %2059 = vmatpush1.msra.mxu0 %v498
        %2060 = vmatprep.subr.mxu0 %v503
        %2061 = vmatpush1.msra.mxu0 %v502
        %2062 = vmatprep.subr.mxu0 %v507
        %2063 = vmatpush1.msra.mxu0 %v506
        %2064 = vmatprep.subr.mxu0 %v511
        %2065 = vmatpush1.msra.mxu0 %v510
        %2066 = vmatprep.subr.mxu0 %v515
        %2067 = vmatpush1.msra.mxu0 %v514
        %2068 = vmatprep.subr.mxu0 %v519
        %2069 = vmatpush1.msra.mxu0 %v518
        %2070 = vmatprep.subr.mxu0 %v523
        %2071 = vmatpush1.msra.mxu0 %v522
        %2072 = vmatprep.subr.mxu0 %v527
        %2073 = vmatpush1.msra.mxu0 %v526
        %2074 = vmatprep.subr.mxu0 %v531
        %2075 = vmatpush1.msra.mxu0 %v530
        %2076 = vmatprep.subr.mxu0 %v535
        %2077 = vmatpush1.msra.mxu0 %v534
        %2078 = vmatprep.subr.mxu0 %v539
        %2079 = vmatpush1.msra.mxu0 %v538
        %2080 = vmatprep.subr.mxu0 %v543
        %2081 = vmatpush1.msra.mxu0 %v542
        %2082 = vmatprep.subr.mxu0 %v547
        %2083 = vmatpush1.msra.mxu0 %v546
        %2084 = vmatprep.subr.mxu0 %v551
        %2085 = vmatpush1.msra.mxu0 %v550
        %2086 = vmatprep.subr.mxu0 %v555
        %2087 = vmatpush1.msra.mxu0 %v554
        %2088 = vmatprep.subr.mxu0 %v559
        %2089 = vmatpush1.msra.mxu0 %v558
        %2090 = vmatprep.subr.mxu0 %v563
        %2091 = vmatpush1.msra.mxu0 %v562
        %2092 = vmatprep.subr.mxu0 %v567
        %2093 = vmatpush1.msra.mxu0 %v566
        %2094 = vmatprep.subr.mxu0 %v571
        %2095 = vmatpush1.msra.mxu0 %v570
        %2096 = vmatprep.subr.mxu0 %v575
        %2097 = vmatpush1.msra.mxu0 %v574
        %2098 = vmatprep.subr.mxu0 %v579
        %2099 = vmatpush1.msra.mxu0 %v578
        %2100 = vmatprep.subr.mxu0 %v583
        %2101 = vmatpush1.msra.mxu0 %v582
        %2102 = vmatprep.subr.mxu0 %v587
        %2103 = vmatpush1.msra.mxu0 %v586
        %2104 = vmatprep.subr.mxu0 %v591
        %2105 = vmatpush1.msra.mxu0 %v590
        %2106 = vmatprep.subr.mxu0 %v595
        %2107 = vmatpush1.msra.mxu0 %v594
        %2108 = vmatprep.subr.mxu0 %v599
        %2109 = vmatpush1.msra.mxu0 %v598
        %2110 = vmatprep.subr.mxu0 %v603
        %2111 = vmatpush1.msra.mxu0 %v602
        %2112 = vmatprep.subr.mxu0 %v607
        %2113 = vmatpush1.msra.mxu0 %v606
        %2114 = vmatprep.subr.mxu0 %v611
        %2115 = vmatpush1.msra.mxu0 %v610
        %2116 = vmatprep.subr.mxu0 %v615
        %2117 = vmatpush1.msra.mxu0 %v614
        %2118 = vmatprep.mubr.f32.mxu0 %v1292
        %2119 = vmatmul.mubr.f32.gmra.mrb[0].mxu0 %v1284
        %v2120 = vpop.f32.mrb[0].mxu0
        %v2121 = vadd.f32 %v2050, %v2120
        %v2122 = vpop.f32.mrb[0].mxu0
        %v2123 = vadd.f32 %v2052, %v2122
        %2124 = vdwg.mxu0
        %2125 = vmatprep.subr.mxu0 %v619
        %2126 = vmatpush1.msra.mxu0 %v618
        %2127 = vmatprep.subr.mxu0 %v623
        %2128 = vmatpush1.msra.mxu0 %v622
        %2129 = vmatprep.subr.mxu0 %v627
        %2130 = vmatpush1.msra.mxu0 %v626
        %2131 = vmatprep.subr.mxu0 %v631
        %2132 = vmatpush1.msra.mxu0 %v630
        %2133 = vmatprep.subr.mxu0 %v635
        %2134 = vmatpush1.msra.mxu0 %v634
        %2135 = vmatprep.subr.mxu0 %v639
        %2136 = vmatpush1.msra.mxu0 %v638
        %2137 = vmatprep.subr.mxu0 %v643
        %2138 = vmatpush1.msra.mxu0 %v642
        %2139 = vmatprep.subr.mxu0 %v647
        %2140 = vmatpush1.msra.mxu0 %v646
        %2141 = vmatprep.subr.mxu0 %v651
        %2142 = vmatpush1.msra.mxu0 %v650
        %2143 = vmatprep.subr.mxu0 %v655
        %2144 = vmatpush1.msra.mxu0 %v654
        %2145 = vmatprep.subr.mxu0 %v659
        %2146 = vmatpush1.msra.mxu0 %v658
        %2147 = vmatprep.subr.mxu0 %v663
        %2148 = vmatpush1.msra.mxu0 %v662
        %2149 = vmatprep.subr.mxu0 %v667
        %2150 = vmatpush1.msra.mxu0 %v666
        %2151 = vmatprep.subr.mxu0 %v671
        %2152 = vmatpush1.msra.mxu0 %v670
        %2153 = vmatprep.subr.mxu0 %v675
        %2154 = vmatpush1.msra.mxu0 %v674
        %2155 = vmatprep.subr.mxu0 %v679
        %2156 = vmatpush1.msra.mxu0 %v678
        %2157 = vmatprep.subr.mxu0 %v683
        %2158 = vmatpush1.msra.mxu0 %v682
        %2159 = vmatprep.subr.mxu0 %v687
        %2160 = vmatpush1.msra.mxu0 %v686
        %2161 = vmatprep.subr.mxu0 %v691
        %2162 = vmatpush1.msra.mxu0 %v690
        %2163 = vmatprep.subr.mxu0 %v695
        %2164 = vmatpush1.msra.mxu0 %v694
        %2165 = vmatprep.subr.mxu0 %v699
        %2166 = vmatpush1.msra.mxu0 %v698
        %2167 = vmatprep.subr.mxu0 %v703
        %2168 = vmatpush1.msra.mxu0 %v702
        %2169 = vmatprep.subr.mxu0 %v707
        %2170 = vmatpush1.msra.mxu0 %v706
        %2171 = vmatprep.subr.mxu0 %v711
        %2172 = vmatpush1.msra.mxu0 %v710
        %2173 = vmatprep.subr.mxu0 %v715
        %2174 = vmatpush1.msra.mxu0 %v714
        %2175 = vmatprep.subr.mxu0 %v719
        %2176 = vmatpush1.msra.mxu0 %v718
        %2177 = vmatprep.subr.mxu0 %v723
        %2178 = vmatpush1.msra.mxu0 %v722
        %2179 = vmatprep.subr.mxu0 %v727
        %2180 = vmatpush1.msra.mxu0 %v726
        %2181 = vmatprep.subr.mxu0 %v731
        %2182 = vmatpush1.msra.mxu0 %v730
        %2183 = vmatprep.subr.mxu0 %v735
        %2184 = vmatpush1.msra.mxu0 %v734
        %2185 = vmatprep.subr.mxu0 %v739
        %2186 = vmatpush1.msra.mxu0 %v738
        %2187 = vmatprep.subr.mxu0 %v743
        %2188 = vmatpush1.msra.mxu0 %v742
        %2189 = vmatprep.mubr.f32.mxu0 %v1293
        %2190 = vmatmul.mubr.f32.gmra.mrb[0].mxu0 %v1291
        %v2191 = vpop.f32.mrb[0].mxu0
        %v2192 = vadd.f32 %v2121, %v2191
        %v2193 = vpop.f32.mrb[0].mxu0
        %v2194 = vadd.f32 %v2123, %v2193
        %2195 = vdwg.mxu0
        %2196 = vmatprep.subr.mxu0 %v747
        %2197 = vmatpush1.msra.mxu0 %v746
        %2198 = vmatprep.subr.mxu0 %v751
        %2199 = vmatpush1.msra.mxu0 %v750
        %2200 = vmatprep.subr.mxu0 %v755
        %2201 = vmatpush1.msra.mxu0 %v754
        %2202 = vmatprep.subr.mxu0 %v759
        %2203 = vmatpush1.msra.mxu0 %v758
        %2204 = vmatprep.subr.mxu0 %v763
        %2205 = vmatpush1.msra.mxu0 %v762
        %2206 = vmatprep.subr.mxu0 %v767
        %2207 = vmatpush1.msra.mxu0 %v766
        %2208 = vmatprep.subr.mxu0 %v771
        %2209 = vmatpush1.msra.mxu0 %v770
        %2210 = vmatprep.subr.mxu0 %v775
        %2211 = vmatpush1.msra.mxu0 %v774
        %2212 = vmatprep.subr.mxu0 %v779
        %2213 = vmatpush1.msra.mxu0 %v778
        %2214 = vmatprep.subr.mxu0 %v783
        %2215 = vmatpush1.msra.mxu0 %v782
        %2216 = vmatprep.subr.mxu0 %v787
        %2217 = vmatpush1.msra.mxu0 %v786
        %2218 = vmatprep.subr.mxu0 %v791
        %2219 = vmatpush1.msra.mxu0 %v790
        %2220 = vmatprep.subr.mxu0 %v795
        %2221 = vmatpush1.msra.mxu0 %v794
        %2222 = vmatprep.subr.mxu0 %v799
        %2223 = vmatpush1.msra.mxu0 %v798
        %2224 = vmatprep.subr.mxu0 %v803
        %2225 = vmatpush1.msra.mxu0 %v802
        %2226 = vmatprep.subr.mxu0 %v807
        %2227 = vmatpush1.msra.mxu0 %v806
        %2228 = vmatprep.subr.mxu0 %v811
        %2229 = vmatpush1.msra.mxu0 %v810
        %2230 = vmatprep.subr.mxu0 %v815
        %2231 = vmatpush1.msra.mxu0 %v814
        %2232 = vmatprep.subr.mxu0 %v819
        %2233 = vmatpush1.msra.mxu0 %v818
        %2234 = vmatprep.subr.mxu0 %v823
        %2235 = vmatpush1.msra.mxu0 %v822
        %2236 = vmatprep.subr.mxu0 %v827
        %2237 = vmatpush1.msra.mxu0 %v826
        %2238 = vmatprep.subr.mxu0 %v831
        %2239 = vmatpush1.msra.mxu0 %v830
        %2240 = vmatprep.subr.mxu0 %v835
        %2241 = vmatpush1.msra.mxu0 %v834
        %2242 = vmatprep.subr.mxu0 %v839
        %2243 = vmatpush1.msra.mxu0 %v838
        %2244 = vmatprep.subr.mxu0 %v843
        %2245 = vmatpush1.msra.mxu0 %v842
        %2246 = vmatprep.subr.mxu0 %v847
        %2247 = vmatpush1.msra.mxu0 %v846
        %2248 = vmatprep.subr.mxu0 %v851
        %2249 = vmatpush1.msra.mxu0 %v850
        %2250 = vmatprep.subr.mxu0 %v855
        %2251 = vmatpush1.msra.mxu0 %v854
        %2252 = vmatprep.subr.mxu0 %v859
        %2253 = vmatpush1.msra.mxu0 %v858
        %2254 = vmatprep.subr.mxu0 %v863
        %2255 = vmatpush1.msra.mxu0 %v862
        %2256 = vmatprep.subr.mxu0 %v867
        %2257 = vmatpush1.msra.mxu0 %v866
        %2258 = vmatprep.subr.mxu0 %v871
        %2259 = vmatpush1.msra.mxu0 %v870
        %2260 = vmatprep.mubr.f32.mxu0 %v1309
        %2261 = vmatmul.mubr.f32.gmra.mrb[0].mxu0 %v1301
        %v2262 = vpop.f32.mrb[0].mxu0
        %v2263 = vadd.f32 %v2192, %v2262
        %v2264 = vpop.f32.mrb[0].mxu0
        %v2265 = vadd.f32 %v2194, %v2264
        %2266 = vdwg.mxu0
        %2267 = vmatprep.subr.mxu0 %v875
        %2268 = vmatpush1.msra.mxu0 %v874
        %2269 = vmatprep.subr.mxu0 %v879
        %2270 = vmatpush1.msra.mxu0 %v878
        %2271 = vmatprep.subr.mxu0 %v883
        %2272 = vmatpush1.msra.mxu0 %v882
        %2273 = vmatprep.subr.mxu0 %v887
        %2274 = vmatpush1.msra.mxu0 %v886
        %2275 = vmatprep.subr.mxu0 %v891
        %2276 = vmatpush1.msra.mxu0 %v890
        %2277 = vmatprep.subr.mxu0 %v895
        %2278 = vmatpush1.msra.mxu0 %v894
        %2279 = vmatprep.subr.mxu0 %v899
        %2280 = vmatpush1.msra.mxu0 %v898
        %2281 = vmatprep.subr.mxu0 %v903
        %2282 = vmatpush1.msra.mxu0 %v902
        %2283 = vmatprep.subr.mxu0 %v907
        %2284 = vmatpush1.msra.mxu0 %v906
        %2285 = vmatprep.subr.mxu0 %v911
        %2286 = vmatpush1.msra.mxu0 %v910
        %2287 = vmatprep.subr.mxu0 %v915
        %2288 = vmatpush1.msra.mxu0 %v914
        %2289 = vmatprep.subr.mxu0 %v919
        %2290 = vmatpush1.msra.mxu0 %v918
        %2291 = vmatprep.subr.mxu0 %v923
        %2292 = vmatpush1.msra.mxu0 %v922
        %2293 = vmatprep.subr.mxu0 %v927
        %2294 = vmatpush1.msra.mxu0 %v926
        %2295 = vmatprep.subr.mxu0 %v931
        %2296 = vmatpush1.msra.mxu0 %v930
        %2297 = vmatprep.subr.mxu0 %v935
        %2298 = vmatpush1.msra.mxu0 %v934
        %2299 = vmatprep.subr.mxu0 %v939
        %2300 = vmatpush1.msra.mxu0 %v938
        %2301 = vmatprep.subr.mxu0 %v943
        %2302 = vmatpush1.msra.mxu0 %v942
        %2303 = vmatprep.subr.mxu0 %v947
        %2304 = vmatpush1.msra.mxu0 %v946
        %2305 = vmatprep.subr.mxu0 %v951
        %2306 = vmatpush1.msra.mxu0 %v950
        %2307 = vmatprep.subr.mxu0 %v955
        %2308 = vmatpush1.msra.mxu0 %v954
        %2309 = vmatprep.subr.mxu0 %v959
        %2310 = vmatpush1.msra.mxu0 %v958
        %2311 = vmatprep.subr.mxu0 %v963
        %2312 = vmatpush1.msra.mxu0 %v962
        %2313 = vmatprep.subr.mxu0 %v967
        %2314 = vmatpush1.msra.mxu0 %v966
        %2315 = vmatprep.subr.mxu0 %v971
        %2316 = vmatpush1.msra.mxu0 %v970
        %2317 = vmatprep.subr.mxu0 %v975
        %2318 = vmatpush1.msra.mxu0 %v974
        %2319 = vmatprep.subr.mxu0 %v979
        %2320 = vmatpush1.msra.mxu0 %v978
        %2321 = vmatprep.subr.mxu0 %v983
        %2322 = vmatpush1.msra.mxu0 %v982
        %2323 = vmatprep.subr.mxu0 %v987
        %2324 = vmatpush1.msra.mxu0 %v986
        %2325 = vmatprep.subr.mxu0 %v991
        %2326 = vmatpush1.msra.mxu0 %v990
        %2327 = vmatprep.subr.mxu0 %v995
        %2328 = vmatpush1.msra.mxu0 %v994
        %2329 = vmatprep.subr.mxu0 %v999
        %2330 = vmatpush1.msra.mxu0 %v998
        %2331 = vmatprep.mubr.f32.mxu0 %v1310
        %2332 = vmatmul.mubr.f32.gmra.mrb[0].mxu0 %v1308
        %v2333 = vpop.f32.mrb[0].mxu0
        %v2334 = vadd.f32 %v2263, %v2333
        %v2335 = vpop.f32.mrb[0].mxu0
        %v2336 = vadd.f32 %v2265, %v2335
        %2337 = vdwg.mxu0
        %2338 = vmatprep.subr.mxu0 %v1003
        %2339 = vmatpush1.msra.mxu0 %v1002
        %2340 = vmatprep.subr.mxu0 %v1007
        %2341 = vmatpush1.msra.mxu0 %v1006
        %2342 = vmatprep.subr.mxu0 %v1011
        %2343 = vmatpush1.msra.mxu0 %v1010
        %2344 = vmatprep.subr.mxu0 %v1015
        %2345 = vmatpush1.msra.mxu0 %v1014
        %2346 = vmatprep.subr.mxu0 %v1019
        %2347 = vmatpush1.msra.mxu0 %v1018
        %2348 = vmatprep.subr.mxu0 %v1023
        %2349 = vmatpush1.msra.mxu0 %v1022
        %2350 = vmatprep.subr.mxu0 %v1027
        %2351 = vmatpush1.msra.mxu0 %v1026
        %2352 = vmatprep.subr.mxu0 %v1031
        %2353 = vmatpush1.msra.mxu0 %v1030
        %2354 = vmatprep.subr.mxu0 %v1035
        %2355 = vmatpush1.msra.mxu0 %v1034
        %2356 = vmatprep.subr.mxu0 %v1039
        %2357 = vmatpush1.msra.mxu0 %v1038
        %2358 = vmatprep.subr.mxu0 %v1043
        %2359 = vmatpush1.msra.mxu0 %v1042
        %2360 = vmatprep.subr.mxu0 %v1047
        %2361 = vmatpush1.msra.mxu0 %v1046
        %2362 = vmatprep.subr.mxu0 %v1051
        %2363 = vmatpush1.msra.mxu0 %v1050
        %2364 = vmatprep.subr.mxu0 %v1055
        %2365 = vmatpush1.msra.mxu0 %v1054
        %2366 = vmatprep.subr.mxu0 %v1059
        %2367 = vmatpush1.msra.mxu0 %v1058
        %2368 = vmatprep.subr.mxu0 %v1063
        %2369 = vmatpush1.msra.mxu0 %v1062
        %2370 = vmatprep.subr.mxu0 %v1067
        %2371 = vmatpush1.msra.mxu0 %v1066
        %2372 = vmatprep.subr.mxu0 %v1071
        %2373 = vmatpush1.msra.mxu0 %v1070
        %2374 = vmatprep.subr.mxu0 %v1075
        %2375 = vmatpush1.msra.mxu0 %v1074
        %2376 = vmatprep.subr.mxu0 %v1079
        %2377 = vmatpush1.msra.mxu0 %v1078
        %2378 = vmatprep.subr.mxu0 %v1083
        %2379 = vmatpush1.msra.mxu0 %v1082
        %2380 = vmatprep.subr.mxu0 %v1087
        %2381 = vmatpush1.msra.mxu0 %v1086
        %2382 = vmatprep.subr.mxu0 %v1091
        %2383 = vmatpush1.msra.mxu0 %v1090
        %2384 = vmatprep.subr.mxu0 %v1095
        %2385 = vmatpush1.msra.mxu0 %v1094
        %2386 = vmatprep.subr.mxu0 %v1099
        %2387 = vmatpush1.msra.mxu0 %v1098
        %2388 = vmatprep.subr.mxu0 %v1103
        %2389 = vmatpush1.msra.mxu0 %v1102
        %2390 = vmatprep.subr.mxu0 %v1107
        %2391 = vmatpush1.msra.mxu0 %v1106
        %2392 = vmatprep.subr.mxu0 %v1111
        %2393 = vmatpush1.msra.mxu0 %v1110
        %2394 = vmatprep.subr.mxu0 %v1115
        %2395 = vmatpush1.msra.mxu0 %v1114
        %2396 = vmatprep.subr.mxu0 %v1119
        %2397 = vmatpush1.msra.mxu0 %v1118
        %2398 = vmatprep.subr.mxu0 %v1123
        %2399 = vmatpush1.msra.mxu0 %v1122
        %2400 = vmatprep.subr.mxu0 %v1127
        %2401 = vmatpush1.msra.mxu0 %v1126
        %2402 = vmatprep.mubr.f32.mxu0 %v1326
        %2403 = vmatmul.mubr.f32.gmra.mrb[0].mxu0 %v1318
        %v2404 = vpop.f32.mrb[0].mxu0
        %v2405 = vadd.f32 %v2334, %v2404
        %v2406 = vpop.f32.mrb[0].mxu0
        %v2407 = vadd.f32 %v2336, %v2406
        %2408 = vdwg.mxu0
        %2409 = vmatprep.subr.mxu0 %v1131
        %2410 = vmatpush1.msra.mxu0 %v1130
        %2411 = vmatprep.subr.mxu0 %v1135
        %2412 = vmatpush1.msra.mxu0 %v1134
        %2413 = vmatprep.subr.mxu0 %v1139
        %2414 = vmatpush1.msra.mxu0 %v1138
        %2415 = vmatprep.subr.mxu0 %v1143
        %2416 = vmatpush1.msra.mxu0 %v1142
        %2417 = vmatprep.subr.mxu0 %v1147
        %2418 = vmatpush1.msra.mxu0 %v1146
        %2419 = vmatprep.subr.mxu0 %v1151
        %2420 = vmatpush1.msra.mxu0 %v1150
        %2421 = vmatprep.subr.mxu0 %v1155
        %2422 = vmatpush1.msra.mxu0 %v1154
        %2423 = vmatprep.subr.mxu0 %v1159
        %2424 = vmatpush1.msra.mxu0 %v1158
        %2425 = vmatprep.subr.mxu0 %v1163
        %2426 = vmatpush1.msra.mxu0 %v1162
        %2427 = vmatprep.subr.mxu0 %v1167
        %2428 = vmatpush1.msra.mxu0 %v1166
        %2429 = vmatprep.subr.mxu0 %v1171
        %2430 = vmatpush1.msra.mxu0 %v1170
        %2431 = vmatprep.subr.mxu0 %v1175
        %2432 = vmatpush1.msra.mxu0 %v1174
        %2433 = vmatprep.subr.mxu0 %v1179
        %2434 = vmatpush1.msra.mxu0 %v1178
        %2435 = vmatprep.subr.mxu0 %v1183
        %2436 = vmatpush1.msra.mxu0 %v1182
        %2437 = vmatprep.subr.mxu0 %v1187
        %2438 = vmatpush1.msra.mxu0 %v1186
        %2439 = vmatprep.subr.mxu0 %v1191
        %2440 = vmatpush1.msra.mxu0 %v1190
        %2441 = vmatprep.subr.mxu0 %v1195
        %2442 = vmatpush1.msra.mxu0 %v1194
        %2443 = vmatprep.subr.mxu0 %v1199
        %2444 = vmatpush1.msra.mxu0 %v1198
        %2445 = vmatprep.subr.mxu0 %v1203
        %2446 = vmatpush1.msra.mxu0 %v1202
        %2447 = vmatprep.subr.mxu0 %v1207
        %2448 = vmatpush1.msra.mxu0 %v1206
        %2449 = vmatprep.subr.mxu0 %v1211
        %2450 = vmatpush1.msra.mxu0 %v1210
        %2451 = vmatprep.subr.mxu0 %v1215
        %2452 = vmatpush1.msra.mxu0 %v1214
        %2453 = vmatprep.subr.mxu0 %v1219
        %2454 = vmatpush1.msra.mxu0 %v1218
        %2455 = vmatprep.subr.mxu0 %v1223
        %2456 = vmatpush1.msra.mxu0 %v1222
        %2457 = vmatprep.subr.mxu0 %v1227
        %2458 = vmatpush1.msra.mxu0 %v1226
        %2459 = vmatprep.subr.mxu0 %v1231
        %2460 = vmatpush1.msra.mxu0 %v1230
        %2461 = vmatprep.subr.mxu0 %v1235
        %2462 = vmatpush1.msra.mxu0 %v1234
        %2463 = vmatprep.subr.mxu0 %v1239
        %2464 = vmatpush1.msra.mxu0 %v1238
        %2465 = vmatprep.subr.mxu0 %v1243
        %2466 = vmatpush1.msra.mxu0 %v1242
        %2467 = vmatprep.subr.mxu0 %v1247
        %2468 = vmatpush1.msra.mxu0 %v1246
        %2469 = vmatprep.subr.mxu0 %v1251
        %2470 = vmatpush1.msra.mxu0 %v1250
        %2471 = vmatprep.subr.mxu0 %v1255
        %2472 = vmatpush1.msra.mxu0 %v1254
        %2473 = vmatprep.mubr.f32.mxu0 %v1327
        %2474 = vmatmul.mubr.f32.gmra.mrb[0].mxu0 %v1325
        %v2475 = vpop.f32.mrb[0].mxu0
        %v2476 = vadd.f32 %v2405, %v2475
        %v2477 = vpop.f32.mrb[0].mxu0
        %v2478 = vadd.f32 %v2407, %v2477
        %2479 = vdwg.mxu0
        %v2484 = vcombine.low %v1908, %v1910
        %v2485 = vcombine.low %v2476, %v2478
        %v2487 = vunpack.c.l.s4 1983009808
        %v2488 = vunpack.c.0.s8 %v2487
        %v2489 = vlaneseq
        %v2490 = vshrl.u32 %v2489, 7
        %v2491 = vsub.s32 %v2488, %v2490
        %v2492 = vrot.slane %v2484, %v2491
        %v2494 = vunpack.c.l.s4 1983009808
        %v2495 = vunpack.c.0.s8 %v2494
        %v2496 = vlaneseq
        %v2497 = vshrl.u32 %v2496, 7
        %v2498 = vsub.s32 %v2495, %v2497
        %v2499 = vrot.slane %v2485, %v2498
        %v2500 = vcombine.low %v2492, %v2499
        %v2502 = vadd.f32 %v227, %v2500
        %2503 = vst [vmem:[#allocation2] sm:$0xff] %v2502
        %p2504 = scmp.eq.s32.totalorder %s21, 10
        // Predicated region
        $region37: #{discriminator_forward.2} parent=27 // pred_check
          %p2505 = pneg %p2504
        $region38: #{discriminator_forward.2} parent=27 // pred_check_branch
          %2507 = sbr.rel (%p2505) target = $region40
        $region39: #{discriminator_forward.2} parent=27 // pred_region
          %v2508 = vld [vmem:[#allocation2] sm:$0xff]
          %2509 = vst [vmem:[%s221] sm:$0xff] %v2508
        $region40: #{discriminator_forward.2} parent=27 // pred_fallthru
          _
        %p2510 = scmp.lt.s32.totalorder %s20, 1
        %s2511 = scalar_select %p2510, %s20, 1
        %s2512 = smul.addr %s2511, 4
        %s2513 = smul.addr %s2512, 2
        %s2514 = scalar_lea.vmem %s2, %s2513
        // Predicated region
        $region41: #{discriminator_forward.2} parent=27 // pred_check
          %p2515 = pneg %p106
        $region42: #{discriminator_forward.2} parent=27 // pred_check_branch
          %2517 = sbr.rel (%p2515) target = $region44
        $region43: #{discriminator_forward.2} parent=27 // pred_region
          _
        $region44: #{discriminator_forward.2} parent=27 // pred_fallthru
          _
      $region28: #{discriminator_forward.2} parent=5 // pred_fallthru
        _
      %p2518 = scmp.le.s32.totalorder 2, %s11
      // Predicated region
      $region45: #{discriminator_forward.2} parent=5 // pred_check
        %p2519 = pneg %p2518
      $region46: #{discriminator_forward.2} parent=5 // pred_check_branch
        %2521 = sbr.rel (%p2519) target = $region48
      $region47: #{discriminator_forward.2} parent=5 // pred_region
        %s2522 = ssub.s32 %s11, 2
        // Predicated region
        $region49: #{discriminator_forward.2} parent=47 // pred_check
          %p2523 = pneg %p112
        $region50: #{discriminator_forward.2} parent=47 // pred_check_branch
          %2525 = sbr.rel (%p2523) target = $region52
        $region51: #{discriminator_forward.2} parent=47 // pred_region
          %p2526 = scmp.lt.s32.totalorder %s22, 1
          %s2527 = scalar_select %p2526, %s22, 1
          %s2528 = smul.addr %s2527, 4
          %s2529 = smul.addr %s2528, 2
          %s2530 = scalar_lea.vmem %s2, %s2529
        $region52: #{discriminator_forward.2} parent=47 // pred_fallthru
          _
      $region48: #{discriminator_forward.2} parent=5 // pred_fallthru
        _
    $region6: #{discriminator_forward.2} parent=1 // loop_footer
      %s15 = sadd.s32 1, %s11
    $region7: #{discriminator_forward.2} parent=1 // loop_footer_branch
      %10 = sbr.rel target = $region3
    $region8: #{discriminator_forward.2} parent=1 // loop_exit
      _
    %2531 = vsyncpa [#allocation4], 1
    %s2532 = scalar_lea.sflag [#allocation4], 1
    %2533 = vsyncpa %s2532, 1

</llo_original>
